<compile_context>
chip_gen: v7x
topology: tpu7x:2x2x1
jax: 0.10.0
libtpu: 0.0.40
codegen_flags: <defaults>
</compile_context>

<pallas_src>
import math
import functools

import jax
import jax.numpy as jnp
from jax import lax
from jax.experimental import pallas as pl
from jax.experimental.pallas import tpu as pltpu


def ln_attention_kernel(x_ref, gamma_ref, beta_ref, wqkv_ref, bqkv_ref, wout_ref,
                        bout_ref, o_ref, *, heads, scale, eps):
    # Grid: (batch,).  Per step:
    #   x_ref:    (1, N, D)      current batch row
    #   gamma/beta: (1, D)       LayerNorm affine params
    #   wqkv_ref: (3D, D) bf16   fused q/k/v weight, PyTorch (out, in) layout
    #   bqkv_ref: (1, 3D) f32    fused q/k/v bias (lane-dense)
    #   wout_ref: (D, D)  bf16   out-proj weight, PyTorch (out, in) layout
    #   bout_ref: (1, D)  f32    out-proj bias
    #   o_ref:    (1, N, D)      output block
    N, D = x_ref.shape[1], x_ref.shape[2]
    d = D // heads
    dn_t = (((1,), (1,)), ((), ()))  # contract trailing dims ("x @ W^T", trans-B)

    # ---- LayerNorm in f32 (PyTorch semantics: biased variance, eps inside sqrt). ----
    x = x_ref[0].astype(jnp.float32)                                   # (N, D)
    mean = jnp.mean(x, axis=-1, keepdims=True)
    xc = x - mean
    var = jnp.mean(xc * xc, axis=-1, keepdims=True)
    ln = (xc * lax.rsqrt(var + eps) * gamma_ref[...] + beta_ref[...]).astype(jnp.bfloat16)

    # ---- Fused QKV projection: one (N, D) @ (D, 3D) matmul. ----
    qkv = lax.dot_general(ln, wqkv_ref[...], dn_t,
                          preferred_element_type=jnp.float32) + bqkv_ref[...]   # (N, 3D)

    # Fold softmax scale into q before the bf16 cast (N*D mults, not heads*N*N).
    q = (qkv[:, :D] * scale).astype(jnp.bfloat16)                      # (N, D)
    k = qkv[:, D:2 * D].astype(jnp.bfloat16)                           # (N, D)
    v = qkv[:, 2 * D:3 * D].astype(jnp.bfloat16)                       # (N, D)

    # ---- Per-head scaled dot-product attention (softmax math in f32). ----
    head_outs = []
    for h in range(heads):                                             # static unroll, heads small
        sl = slice(h * d, (h + 1) * d)
        qh, kh, vh = q[:, sl], k[:, sl], v[:, sl]                      # (N, d) each
        dots = lax.dot_general(qh, kh, dn_t,
                               preferred_element_type=jnp.float32)     # (N, N), pre-scaled
        dots = dots - jnp.max(dots, axis=-1, keepdims=True)
        p = jnp.exp(dots)
        attn = p * pl.reciprocal(jnp.sum(p, axis=-1, keepdims=True), approx=True)
        head_outs.append(jnp.dot(attn.astype(jnp.bfloat16), vh,
                                 preferred_element_type=jnp.float32))  # (N, d)

    head_out = jnp.concatenate(head_outs, axis=-1).astype(jnp.bfloat16)  # (N, D) 'h d -> (h d)'

    # ---- Output projection: single (N, D) @ (D, D) matmul + bias. ----
    y = lax.dot_general(head_out, wout_ref[...], dn_t,
                        preferred_element_type=jnp.float32) + bout_ref[...]     # (N, D)
    o_ref[0] = y.astype(o_ref.dtype)


def layernorm_attention_pallas(x, gamma, beta, w_qkv, b_qkv, w_out, b_out,
                               *, heads, eps=1e-5):
    B, N, D = x.shape
    assert D % heads == 0
    d = D // heads
    # Lane/sublane friendly demo layout (see perf notes in header).
    assert D % 128 == 0 and d % 8 == 0 and N % 8 == 0
    scale = float(D) ** -0.5   # module uses full dim, not per-head dim

    cdt = jnp.bfloat16
    # Native PyTorch (out_features, in_features) layouts; no transposes, only dtype prep.
    w_qkv_c = w_qkv.astype(cdt)                                        # (3D, D)
    w_out_c = w_out.astype(cdt)                                        # (D, D)
    b_qkv_r = b_qkv.astype(jnp.float32).reshape(1, 3 * D)              # lane-dense (1, 3D)
    b_out_r = b_out.astype(jnp.float32).reshape(1, D)
    gamma_r = gamma.astype(jnp.float32).reshape(1, D)
    beta_r = beta.astype(jnp.float32).reshape(1, D)

    kernel = functools.partial(ln_attention_kernel, heads=heads, scale=scale, eps=eps)
    return pl.pallas_call(
        kernel,
        out_shape=jax.ShapeDtypeStruct((B, N, D), x.dtype),
        grid_spec=pltpu.PrefetchScalarGridSpec(
            num_scalar_prefetch=0,
            grid=(B,),
            in_specs=[
                pl.BlockSpec((1, N, D), lambda b: (b, 0, 0)),          # x (per batch row)
                pl.BlockSpec((1, D), lambda b: (0, 0)),                # gamma
                pl.BlockSpec((1, D), lambda b: (0, 0)),                # beta
                pl.BlockSpec((3 * D, D), lambda b: (0, 0)),            # fused qkv weight
                pl.BlockSpec((1, 3 * D), lambda b: (0, 0)),            # fused qkv bias
                pl.BlockSpec((D, D), lambda b: (0, 0)),                # out-proj weight
                pl.BlockSpec((1, D), lambda b: (0, 0)),                # out-proj bias
            ],
            out_specs=pl.BlockSpec((1, N, D), lambda b: (b, 0, 0)),
        ),
        compiler_params=pltpu.CompilerParams(
            dimension_semantics=("parallel",),
            vmem_limit_bytes=32 * 1024 * 1024,
        ),
    )(x, gamma_r, beta_r, w_qkv_c, b_qkv_r, w_out_c, b_out_r)


def layernorm_attention_reference(x, gamma, beta, w_qkv, b_qkv, w_out, b_out,
                                  *, heads, eps=1e-5):
    B, N, D = x.shape
    d = D // heads
    scale = D ** (-0.5)
    mean = x.mean(-1, keepdims=True)
    var = ((x - mean) ** 2).mean(-1, keepdims=True)
    ln = (x - mean) / jnp.sqrt(var + eps) * gamma + beta
    qkv = jnp.einsum("bnd,od->bno", ln, w_qkv) + b_qkv                 # (B, N, 3D)
    qkv = qkv.reshape(B, N, 3, heads, d)                               # (qkv, h, d) split
    q = jnp.transpose(qkv[:, :, 0], (0, 2, 1, 3))                      # (B, h, N, d)
    k = jnp.transpose(qkv[:, :, 1], (0, 2, 1, 3))
    v = jnp.transpose(qkv[:, :, 2], (0, 2, 1, 3))
    dots = jnp.einsum("bhid,bhjd->bhij", q, k) * scale
    attn = jax.nn.softmax(dots, axis=-1)
    out = jnp.einsum("bhij,bhjd->bhid", attn, v)
    out = jnp.transpose(out, (0, 2, 1, 3)).reshape(B, N, D)            # 'b h n d -> b n (h d)'
    return jnp.einsum("bnd,od->bno", out, w_out) + b_out


def xavier_uniform(key, out_features, in_features, dtype=jnp.float32):
    bound = math.sqrt(6.0 / (in_features + out_features))
    return jax.random.uniform(key, (out_features, in_features), dtype,
                              minval=-bound, maxval=bound)


if __name__ == "__main__":
    B, N, DIM, HEADS = 2, 128, 128, 4   # lane-dense toy config (D = N = 128)

    key = jax.random.PRNGKey(0)
    k_x, k_g, k_be, k_wqkv, k_bqkv, k_wout, k_bout = jax.random.split(key, 7)

    x = jax.random.normal(k_x, (B, N, DIM), jnp.float32)
    # LayerNorm affine params (module init is ones/zeros; perturb to exercise the path).
    gamma = 1.0 + 0.1 * jax.random.normal(k_g, (DIM,), jnp.float32)
    beta = 0.1 * jax.random.normal(k_be, (DIM,), jnp.float32)
    # Attention params, PyTorch (out, in) layout; module init is xavier weight + zero bias
    # (small random biases used here to exercise the bias path).
    w_qkv = xavier_uniform(k_wqkv, 3 * DIM, DIM)
    b_qkv = 0.02 * jax.random.normal(k_bqkv, (3 * DIM,), jnp.float32)
    w_out = xavier_uniform(k_wout, DIM, DIM)
    b_out = 0.02 * jax.random.normal(k_bout, (DIM,), jnp.float32)

    y = layernorm_attention_pallas(x, gamma, beta, w_qkv, b_qkv, w_out, b_out, heads=HEADS)
    y = jax.block_until_ready(y)

    y_ref = layernorm_attention_reference(x, gamma, beta, w_qkv, b_qkv, w_out, b_out,
                                          heads=HEADS)
    max_err = jnp.max(jnp.abs(y - y_ref))
    # bf16 MXU operands + approx reciprocal vs. f32 reference -> relaxed tolerance.
    assert jnp.allclose(y, y_ref, atol=2e-2, rtol=2e-2), f"mismatch (max abs err {max_err})"
    print("KERNEL_OK")
</pallas_src>

<mosaic_0001>
module attributes {stable_mosaic.version = 11 : i64} {
  func.func @ln_attention_kernel(%arg0: i32, %arg1: memref<1x128x128xf32, #tpu.memory_space<vmem>>, %arg2: memref<1x128xf32, #tpu.memory_space<vmem>>, %arg3: memref<1x128xf32, #tpu.memory_space<vmem>>, %arg4: memref<384x128xbf16, #tpu.memory_space<vmem>>, %arg5: memref<1x384xf32, #tpu.memory_space<vmem>>, %arg6: memref<128x128xbf16, #tpu.memory_space<vmem>>, %arg7: memref<1x128xf32, #tpu.memory_space<vmem>>, %arg8: memref<1x128x128xf32, #tpu.memory_space<vmem>>) attributes {dimension_semantics = [#tpu.dimension_semantics<parallel>], iteration_bounds = array<i64: 2>, scalar_prefetch = 0 : i64, scratch_operands = 0 : i64, tpu.core_type = #tpu.core_type<tc>, window_params = [{transform_indices = @transform_0, window_bounds = array<i64: 1, 128, 128>}, {pipeline_mode = #tpu.pipeline_mode<synchronous>, transform_indices = @transform_1, window_bounds = array<i64: 1, 128>}, {pipeline_mode = #tpu.pipeline_mode<synchronous>, transform_indices = @transform_2, window_bounds = array<i64: 1, 128>}, {pipeline_mode = #tpu.pipeline_mode<synchronous>, transform_indices = @transform_3, window_bounds = array<i64: 384, 128>}, {pipeline_mode = #tpu.pipeline_mode<synchronous>, transform_indices = @transform_4, window_bounds = array<i64: 1, 384>}, {pipeline_mode = #tpu.pipeline_mode<synchronous>, transform_indices = @transform_5, window_bounds = array<i64: 128, 128>}, {pipeline_mode = #tpu.pipeline_mode<synchronous>, transform_indices = @transform_6, window_bounds = array<i64: 1, 128>}, {transform_indices = @transform_7, window_bounds = array<i64: 1, 128, 128>}]} {
    %c0 = arith.constant 0 : index
    %c0_0 = arith.constant 0 : index
    %c0_1 = arith.constant 0 : index
    %0 = vector.load %arg1[%c0, %c0_0, %c0_1] : memref<1x128x128xf32, #tpu.memory_space<vmem>>, vector<1x128x128xf32>
    %1 = vector.shape_cast %0 : vector<1x128x128xf32> to vector<128x128xf32>
    %cst = arith.constant dense<0.000000e+00> : vector<128xf32>
    %2 = vector.multi_reduction <add>, %1, %cst [1] : vector<128x128xf32> to vector<128xf32>
    %3 = vector.shape_cast %2 : vector<128xf32> to vector<128x1xf32>
    %cst_2 = arith.constant 1.280000e+02 : f32
    %4 = vector.broadcast %cst_2 : f32 to vector<128x1xf32>
    %5 = arith.divf %3, %4 : vector<128x1xf32>
    %6 = vector.broadcast %5 : vector<128x1xf32> to vector<128x128xf32>
    %7 = arith.subf %1, %6 : vector<128x128xf32>
    %8 = arith.mulf %7, %7 : vector<128x128xf32>
    %cst_3 = arith.constant dense<0.000000e+00> : vector<128xf32>
    %9 = vector.multi_reduction <add>, %8, %cst_3 [1] : vector<128x128xf32> to vector<128xf32>
    %10 = vector.shape_cast %9 : vector<128xf32> to vector<128x1xf32>
    %cst_4 = arith.constant 1.280000e+02 : f32
    %11 = vector.broadcast %cst_4 : f32 to vector<128x1xf32>
    %12 = arith.divf %10, %11 : vector<128x1xf32>
    %cst_5 = arith.constant 9.99999974E-6 : f32
    %13 = vector.broadcast %cst_5 : f32 to vector<128x1xf32>
    %14 = arith.addf %12, %13 : vector<128x1xf32>
    %15 = math.rsqrt %14 : vector<128x1xf32>
    %16 = vector.broadcast %15 : vector<128x1xf32> to vector<128x128xf32>
    %17 = arith.mulf %7, %16 : vector<128x128xf32>
    %c0_6 = arith.constant 0 : index
    %c0_7 = arith.constant 0 : index
    %18 = vector.load %arg2[%c0_6, %c0_7] : memref<1x128xf32, #tpu.memory_space<vmem>>, vector<1x128xf32>
    %19 = vector.broadcast %18 : vector<1x128xf32> to vector<128x128xf32>
    %20 = arith.mulf %17, %19 : vector<128x128xf32>
    %c0_8 = arith.constant 0 : index
    %c0_9 = arith.constant 0 : index
    %21 = vector.load %arg3[%c0_8, %c0_9] : memref<1x128xf32, #tpu.memory_space<vmem>>, vector<1x128xf32>
    %22 = vector.broadcast %21 : vector<1x128xf32> to vector<128x128xf32>
    %23 = arith.addf %20, %22 : vector<128x128xf32>
    %24 = arith.truncf %23 : vector<128x128xf32> to vector<128x128xbf16>
    %c0_10 = arith.constant 0 : index
    %c0_11 = arith.constant 0 : index
    %25 = vector.load %arg4[%c0_10, %c0_11] : memref<384x128xbf16, #tpu.memory_space<vmem>>, vector<384x128xbf16>
    %cst_12 = arith.constant dense<0.000000e+00> : vector<128x384xf32>
    %26 = tpu.matmul %24, %25, %cst_12 {dimension_numbers = #tpu.dot_dimension_numbers<[1], [1], [0], [0], [0, 0, 1, 0], [], []>} : vector<128x128xbf16>, vector<384x128xbf16>, vector<128x384xf32> -> vector<128x384xf32>
    %c0_13 = arith.constant 0 : index
    %c0_14 = arith.constant 0 : index
    %27 = vector.load %arg5[%c0_13, %c0_14] : memref<1x384xf32, #tpu.memory_space<vmem>>, vector<1x384xf32>
    %28 = vector.broadcast %27 : vector<1x384xf32> to vector<128x384xf32>
    %29 = arith.addf %26, %28 : vector<128x384xf32>
    %30 = vector.extract_strided_slice %29 {offsets = [0, 0], sizes = [128, 128], strides = [1, 1]} : vector<128x384xf32> to vector<128x128xf32>
    %cst_15 = arith.constant 0.0883883461 : f32
    %31 = vector.broadcast %cst_15 : f32 to vector<128x128xf32>
    %32 = arith.mulf %30, %31 : vector<128x128xf32>
    %33 = arith.truncf %32 : vector<128x128xf32> to vector<128x128xbf16>
    %34 = vector.extract_strided_slice %29 {offsets = [0, 128], sizes = [128, 128], strides = [1, 1]} : vector<128x384xf32> to vector<128x128xf32>
    %35 = arith.truncf %34 : vector<128x128xf32> to vector<128x128xbf16>
    %36 = vector.extract_strided_slice %29 {offsets = [0, 256], sizes = [128, 128], strides = [1, 1]} : vector<128x384xf32> to vector<128x128xf32>
    %37 = arith.truncf %36 : vector<128x128xf32> to vector<128x128xbf16>
    %38 = vector.extract_strided_slice %33 {offsets = [0, 0], sizes = [128, 32], strides = [1, 1]} : vector<128x128xbf16> to vector<128x32xbf16>
    %39 = vector.extract_strided_slice %35 {offsets = [0, 0], sizes = [128, 32], strides = [1, 1]} : vector<128x128xbf16> to vector<128x32xbf16>
    %40 = vector.extract_strided_slice %37 {offsets = [0, 0], sizes = [128, 32], strides = [1, 1]} : vector<128x128xbf16> to vector<128x32xbf16>
    %cst_16 = arith.constant dense<0.000000e+00> : vector<128x128xf32>
    %41 = tpu.matmul %38, %39, %cst_16 {dimension_numbers = #tpu.dot_dimension_numbers<[1], [1], [0], [0], [0, 0, 1, 0], [], []>} : vector<128x32xbf16>, vector<128x32xbf16>, vector<128x128xf32> -> vector<128x128xf32>
    %cst_17 = arith.constant dense<0xFF800000> : vector<128xf32>
    %42 = vector.multi_reduction <maximumf>, %41, %cst_17 [1] : vector<128x128xf32> to vector<128xf32>
    %43 = vector.shape_cast %42 : vector<128xf32> to vector<128x1xf32>
    %44 = vector.broadcast %43 : vector<128x1xf32> to vector<128x128xf32>
    %45 = arith.subf %41, %44 : vector<128x128xf32>
    %46 = math.exp %45 : vector<128x128xf32>
    %cst_18 = arith.constant dense<0.000000e+00> : vector<128xf32>
    %47 = vector.multi_reduction <add>, %46, %cst_18 [1] : vector<128x128xf32> to vector<128xf32>
    %48 = vector.shape_cast %47 : vector<128xf32> to vector<128x1xf32>
    %49 = tpu.reciprocal %48 {approx = true} : vector<128x1xf32> -> vector<128x1xf32>
    %50 = vector.broadcast %49 : vector<128x1xf32> to vector<128x128xf32>
    %51 = arith.mulf %46, %50 : vector<128x128xf32>
    %52 = arith.truncf %51 : vector<128x128xf32> to vector<128x128xbf16>
    %cst_19 = arith.constant dense<0.000000e+00> : vector<128x32xf32>
    %53 = tpu.matmul %52, %40, %cst_19 {dimension_numbers = #tpu.dot_dimension_numbers<[1], [0], [0], [1], [0, 0, 1, 1], [], []>} : vector<128x128xbf16>, vector<128x32xbf16>, vector<128x32xf32> -> vector<128x32xf32>
    %54 = vector.extract_strided_slice %33 {offsets = [0, 32], sizes = [128, 32], strides = [1, 1]} : vector<128x128xbf16> to vector<128x32xbf16>
    %55 = vector.extract_strided_slice %35 {offsets = [0, 32], sizes = [128, 32], strides = [1, 1]} : vector<128x128xbf16> to vector<128x32xbf16>
    %56 = vector.extract_strided_slice %37 {offsets = [0, 32], sizes = [128, 32], strides = [1, 1]} : vector<128x128xbf16> to vector<128x32xbf16>
    %cst_20 = arith.constant dense<0.000000e+00> : vector<128x128xf32>
    %57 = tpu.matmul %54, %55, %cst_20 {dimension_numbers = #tpu.dot_dimension_numbers<[1], [1], [0], [0], [0, 0, 1, 0], [], []>} : vector<128x32xbf16>, vector<128x32xbf16>, vector<128x128xf32> -> vector<128x128xf32>
    %cst_21 = arith.constant dense<0xFF800000> : vector<128xf32>
    %58 = vector.multi_reduction <maximumf>, %57, %cst_21 [1] : vector<128x128xf32> to vector<128xf32>
    %59 = vector.shape_cast %58 : vector<128xf32> to vector<128x1xf32>
    %60 = vector.broadcast %59 : vector<128x1xf32> to vector<128x128xf32>
    %61 = arith.subf %57, %60 : vector<128x128xf32>
    %62 = math.exp %61 : vector<128x128xf32>
    %cst_22 = arith.constant dense<0.000000e+00> : vector<128xf32>
    %63 = vector.multi_reduction <add>, %62, %cst_22 [1] : vector<128x128xf32> to vector<128xf32>
    %64 = vector.shape_cast %63 : vector<128xf32> to vector<128x1xf32>
    %65 = tpu.reciprocal %64 {approx = true} : vector<128x1xf32> -> vector<128x1xf32>
    %66 = vector.broadcast %65 : vector<128x1xf32> to vector<128x128xf32>
    %67 = arith.mulf %62, %66 : vector<128x128xf32>
    %68 = arith.truncf %67 : vector<128x128xf32> to vector<128x128xbf16>
    %cst_23 = arith.constant dense<0.000000e+00> : vector<128x32xf32>
    %69 = tpu.matmul %68, %56, %cst_23 {dimension_numbers = #tpu.dot_dimension_numbers<[1], [0], [0], [1], [0, 0, 1, 1], [], []>} : vector<128x128xbf16>, vector<128x32xbf16>, vector<128x32xf32> -> vector<128x32xf32>
    %70 = vector.extract_strided_slice %33 {offsets = [0, 64], sizes = [128, 32], strides = [1, 1]} : vector<128x128xbf16> to vector<128x32xbf16>
    %71 = vector.extract_strided_slice %35 {offsets = [0, 64], sizes = [128, 32], strides = [1, 1]} : vector<128x128xbf16> to vector<128x32xbf16>
    %72 = vector.extract_strided_slice %37 {offsets = [0, 64], sizes = [128, 32], strides = [1, 1]} : vector<128x128xbf16> to vector<128x32xbf16>
    %cst_24 = arith.constant dense<0.000000e+00> : vector<128x128xf32>
    %73 = tpu.matmul %70, %71, %cst_24 {dimension_numbers = #tpu.dot_dimension_numbers<[1], [1], [0], [0], [0, 0, 1, 0], [], []>} : vector<128x32xbf16>, vector<128x32xbf16>, vector<128x128xf32> -> vector<128x128xf32>
    %cst_25 = arith.constant dense<0xFF800000> : vector<128xf32>
    %74 = vector.multi_reduction <maximumf>, %73, %cst_25 [1] : vector<128x128xf32> to vector<128xf32>
    %75 = vector.shape_cast %74 : vector<128xf32> to vector<128x1xf32>
    %76 = vector.broadcast %75 : vector<128x1xf32> to vector<128x128xf32>
    %77 = arith.subf %73, %76 : vector<128x128xf32>
    %78 = math.exp %77 : vector<128x128xf32>
    %cst_26 = arith.constant dense<0.000000e+00> : vector<128xf32>
    %79 = vector.multi_reduction <add>, %78, %cst_26 [1] : vector<128x128xf32> to vector<128xf32>
    %80 = vector.shape_cast %79 : vector<128xf32> to vector<128x1xf32>
    %81 = tpu.reciprocal %80 {approx = true} : vector<128x1xf32> -> vector<128x1xf32>
    %82 = vector.broadcast %81 : vector<128x1xf32> to vector<128x128xf32>
    %83 = arith.mulf %78, %82 : vector<128x128xf32>
    %84 = arith.truncf %83 : vector<128x128xf32> to vector<128x128xbf16>
    %cst_27 = arith.constant dense<0.000000e+00> : vector<128x32xf32>
    %85 = tpu.matmul %84, %72, %cst_27 {dimension_numbers = #tpu.dot_dimension_numbers<[1], [0], [0], [1], [0, 0, 1, 1], [], []>} : vector<128x128xbf16>, vector<128x32xbf16>, vector<128x32xf32> -> vector<128x32xf32>
    %86 = vector.extract_strided_slice %33 {offsets = [0, 96], sizes = [128, 32], strides = [1, 1]} : vector<128x128xbf16> to vector<128x32xbf16>
    %87 = vector.extract_strided_slice %35 {offsets = [0, 96], sizes = [128, 32], strides = [1, 1]} : vector<128x128xbf16> to vector<128x32xbf16>
    %88 = vector.extract_strided_slice %37 {offsets = [0, 96], sizes = [128, 32], strides = [1, 1]} : vector<128x128xbf16> to vector<128x32xbf16>
    %cst_28 = arith.constant dense<0.000000e+00> : vector<128x128xf32>
    %89 = tpu.matmul %86, %87, %cst_28 {dimension_numbers = #tpu.dot_dimension_numbers<[1], [1], [0], [0], [0, 0, 1, 0], [], []>} : vector<128x32xbf16>, vector<128x32xbf16>, vector<128x128xf32> -> vector<128x128xf32>
    %cst_29 = arith.constant dense<0xFF800000> : vector<128xf32>
    %90 = vector.multi_reduction <maximumf>, %89, %cst_29 [1] : vector<128x128xf32> to vector<128xf32>
    %91 = vector.shape_cast %90 : vector<128xf32> to vector<128x1xf32>
    %92 = vector.broadcast %91 : vector<128x1xf32> to vector<128x128xf32>
    %93 = arith.subf %89, %92 : vector<128x128xf32>
    %94 = math.exp %93 : vector<128x128xf32>
    %cst_30 = arith.constant dense<0.000000e+00> : vector<128xf32>
    %95 = vector.multi_reduction <add>, %94, %cst_30 [1] : vector<128x128xf32> to vector<128xf32>
    %96 = vector.shape_cast %95 : vector<128xf32> to vector<128x1xf32>
    %97 = tpu.reciprocal %96 {approx = true} : vector<128x1xf32> -> vector<128x1xf32>
    %98 = vector.broadcast %97 : vector<128x1xf32> to vector<128x128xf32>
    %99 = arith.mulf %94, %98 : vector<128x128xf32>
    %100 = arith.truncf %99 : vector<128x128xf32> to vector<128x128xbf16>
    %cst_31 = arith.constant dense<0.000000e+00> : vector<128x32xf32>
    %101 = tpu.matmul %100, %88, %cst_31 {dimension_numbers = #tpu.dot_dimension_numbers<[1], [0], [0], [1], [0, 0, 1, 1], [], []>} : vector<128x128xbf16>, vector<128x32xbf16>, vector<128x32xf32> -> vector<128x32xf32>
    %102 = tpu.concatenate %53, %69, %85, %101 in 1 : vector<128x32xf32>, vector<128x32xf32>, vector<128x32xf32>, vector<128x32xf32> -> vector<128x128xf32>
    %103 = arith.truncf %102 : vector<128x128xf32> to vector<128x128xbf16>
    %c0_32 = arith.constant 0 : index
    %c0_33 = arith.constant 0 : index
    %104 = vector.load %arg6[%c0_32, %c0_33] : memref<128x128xbf16, #tpu.memory_space<vmem>>, vector<128x128xbf16>
    %cst_34 = arith.constant dense<0.000000e+00> : vector<128x128xf32>
    %105 = tpu.matmul %103, %104, %cst_34 {dimension_numbers = #tpu.dot_dimension_numbers<[1], [1], [0], [0], [0, 0, 1, 0], [], []>} : vector<128x128xbf16>, vector<128x128xbf16>, vector<128x128xf32> -> vector<128x128xf32>
    %c0_35 = arith.constant 0 : index
    %c0_36 = arith.constant 0 : index
    %106 = vector.load %arg7[%c0_35, %c0_36] : memref<1x128xf32, #tpu.memory_space<vmem>>, vector<1x128xf32>
    %107 = vector.broadcast %106 : vector<1x128xf32> to vector<128x128xf32>
    %108 = arith.addf %105, %107 : vector<128x128xf32>
    %c0_37 = arith.constant 0 : index
    %c0_38 = arith.constant 0 : index
    %c0_39 = arith.constant 0 : index
    %109 = vector.load %arg8[%c0_37, %c0_38, %c0_39] : memref<1x128x128xf32, #tpu.memory_space<vmem>>, vector<1x128x128xf32>
    %110 = vector.shape_cast %109 : vector<1x128x128xf32> to vector<128x128xf32>
    %111 = vector.shape_cast %108 : vector<128x128xf32> to vector<1x128x128xf32>
    tpu.vector_store %arg8[%c0_37, %c0_38, %c0_39], %111 {strides = array<i32>} : memref<1x128x128xf32, #tpu.memory_space<vmem>>, vector<1x128x128xf32>,
    return
  }
  func.func @transform_0(%arg0: i32) -> (i32, i32, i32) {
    %c0_i32 = arith.constant 0 : i32
    %c0_i32_0 = arith.constant 0 : i32
    %c0_i32_1 = arith.constant 0 : i32
    return %arg0, %c0_i32, %c0_i32_0 : i32, i32, i32
  }
  func.func @transform_1(%arg0: i32) -> (i32, i32) {
    %c0_i32 = arith.constant 0 : i32
    %c0_i32_0 = arith.constant 0 : i32
    %c0_i32_1 = arith.constant 0 : i32
    return %c0_i32, %c0_i32_0 : i32, i32
  }
  func.func @transform_2(%arg0: i32) -> (i32, i32) {
    %c0_i32 = arith.constant 0 : i32
    %c0_i32_0 = arith.constant 0 : i32
    %c0_i32_1 = arith.constant 0 : i32
    return %c0_i32, %c0_i32_0 : i32, i32
  }
  func.func @transform_3(%arg0: i32) -> (i32, i32) {
    %c0_i32 = arith.constant 0 : i32
    %c0_i32_0 = arith.constant 0 : i32
    %c0_i32_1 = arith.constant 0 : i32
    return %c0_i32, %c0_i32_0 : i32, i32
  }
  func.func @transform_4(%arg0: i32) -> (i32, i32) {
    %c0_i32 = arith.constant 0 : i32
    %c0_i32_0 = arith.constant 0 : i32
    %c0_i32_1 = arith.constant 0 : i32
    return %c0_i32, %c0_i32_0 : i32, i32
  }
  func.func @transform_5(%arg0: i32) -> (i32, i32) {
    %c0_i32 = arith.constant 0 : i32
    %c0_i32_0 = arith.constant 0 : i32
    %c0_i32_1 = arith.constant 0 : i32
    return %c0_i32, %c0_i32_0 : i32, i32
  }
  func.func @transform_6(%arg0: i32) -> (i32, i32) {
    %c0_i32 = arith.constant 0 : i32
    %c0_i32_0 = arith.constant 0 : i32
    %c0_i32_1 = arith.constant 0 : i32
    return %c0_i32, %c0_i32_0 : i32, i32
  }
  func.func @transform_7(%arg0: i32) -> (i32, i32, i32) {
    %c0_i32 = arith.constant 0 : i32
    %c0_i32_0 = arith.constant 0 : i32
    %c0_i32_1 = arith.constant 0 : i32
    return %arg0, %c0_i32, %c0_i32_0 : i32, i32, i32
  }
}

</mosaic_0001>

<llo_original>
// kernel: tpu_custom_call.1
$region0: #{tpu_custom_call.1}
  #allocation0 [shape = 'u32[]', space=smem, size = 0x4, offset = 0x4, fixed_abs, tag = 'smem constant byte address 0x4 - core index']
  #allocation1 [shape = 'u32[144,128]{1,0:T(1,128)}', space=vmem, size = 0x12000, scoped, tag = 'internal scratch']
  %s0 = inlined_call_operand.hbm [shape: f32[2,128,128], index: 0, kind: input, shape index: {}]
  %s1 = inlined_call_operand.vmem [shape: f32[1,128], index: 1, kind: input, shape index: {}]
  %s2 = inlined_call_operand.vmem [shape: f32[1,128], index: 2, kind: input, shape index: {}]
  %s3 = inlined_call_operand.hbm [shape: bf16[384,128], index: 3, kind: input, shape index: {}]
  %s4 = inlined_call_operand.vmem [shape: f32[1,384], index: 4, kind: input, shape index: {}]
  %s5 = inlined_call_operand.hbm [shape: bf16[128,128], index: 5, kind: input, shape index: {}]
  %s6 = inlined_call_operand.vmem [shape: f32[1,128], index: 6, kind: input, shape index: {}]
  %s7 = inlined_call_operand.hbm [shape: f32[2,128,128], index: 7, kind: output, shape index: {}]
  %s8 = sld [smem:[#allocation0]]
  $region73: #{tpu_custom_call.1} parent=0
    _
  %s10 = ssub.s32 1, %s8
  %s11 = scalar_select 0, %s10, %s8
  $region1: #{tpu_custom_call.1} parent=0
    #allocation2 [shape = 'u8[131072]{0}', space=vmem, size = 0x20000, scoped, tag = 'input window, operand 0']
    #allocation3 [shape = 's32[2]{0}', space=sflag, size = 0x8, scoped, tag = 'scoped memory for tpu_custom_call.1']
    #allocation4 [shape = 's32[2]{0}', space=sflag, size = 0x8, scoped, tag = 'scoped memory for tpu_custom_call.1']
    #allocation5 [shape = 'u8[98304]{0}', space=vmem, size = 0x18000, scoped, tag = 'input window, operand 3, single buffered']
    #allocation6 [shape = 's32[1]{0}', space=sflag, size = 0x4, scoped, tag = 'scoped memory for tpu_custom_call.1']
    #allocation7 [shape = 'u8[32768]{0}', space=vmem, size = 0x8000, scoped, tag = 'input window, operand 5, single buffered']
    #allocation8 [shape = 'u8[131072]{0}', space=vmem, size = 0x20000, scoped, tag = 'output window, operand 0']
    %12 = vsyncpa [#allocation3], 0
    %s13 = scalar_lea.sflag [#allocation3], 1
    %14 = vsyncpa %s13, 0
    %15 = vsyncpa [#allocation6], 0
    %16 = vsyncpa [#allocation4], 0
    %s17 = scalar_lea.sflag [#allocation4], 1
    %18 = vsyncpa %s17, 0
    loop: start=0, step=1, limit=4
    $region2: #{tpu_custom_call.1} parent=1 // loop_pre_header
      _
    $region3: #{tpu_custom_call.1} parent=1 // loop_header
      %s20 = sphi 0, %s24
      %p21 = scmp.ge.s32.totalorder %s20, 4
      %s30 = sphi 0, %s32
      %s33 = sphi 0, %s30
      %s34 = sphi 0, %s33
      %s50 = sphi 0, %s34
      %s54 = sphi 0, %s54
      %s56 = sphi 0, %s54
      %s57 = sphi 0, %s56
      %s71 = sphi 0, %s57
      %s75 = sphi 0, %s75
      %s77 = sphi 0, %s75
      %s78 = sphi 0, %s77
      %s92 = sphi 0, %s78
      %s96 = sphi 0, %s96
      %s98 = sphi 0, %s96
      %s99 = sphi 0, %s98
      %s113 = sphi 0, %s99
      %s117 = sphi 0, %s117
      %s119 = sphi 0, %s117
      %s120 = sphi 0, %s119
      %s134 = sphi 0, %s120
      %s138 = sphi 0, %s138
      %s140 = sphi 0, %s138
      %s141 = sphi 0, %s140
      %s155 = sphi 0, %s141
      %s159 = sphi 0, %s159
      %s161 = sphi 0, %s159
      %s162 = sphi 0, %s161
      %s176 = sphi 0, %s162
      %s182 = sphi 0, %s184
      %s185 = sphi 0, %s182
      %s186 = sphi 0, %s185
      %s202 = sphi 0, %s186
    $region4: #{tpu_custom_call.1} parent=1 // loop_header_branch
      %23 = sbr.rel (%p21) target = $region8
    $region5: #{tpu_custom_call.1} parent=1 // loop_body
      %s25 = ssub.s32 %s20, 1
      %s26 = ssub.s32 %s20, 2
      %s27 = sadd.s32 %s20, 1
      %s28 = ssub.s32 %s20, %s27
      %p29 = scmp.eq.s32.totalorder %s28, 0
      %s31 = sadd.s32 %s30, 1
      %s32 = scalar_select %p29, %s30, %s31
      %p35 = pneg %p29
      %p36 = scmp.eq.s32.totalorder %s20, 1
      %p37 = por %p35, %p36
      %p38 = scmp.ne.s32.totalorder %s30, %s33
      %p39 = scmp.eq.s32.totalorder %s20, 0
      %p40 = por %p38, %p39
      %p41 = scmp.ne.s32.totalorder %s30, %s33
      %p42 = scmp.eq.s32.totalorder %s25, 1
      %p43 = por %p41, %p42
      %p44 = scmp.ne.s32.totalorder %s33, %s34
      %p45 = scmp.eq.s32.totalorder %s25, 0
      %p46 = por %p44, %p45
      %p47 = scmp.ne.s32.totalorder %s33, %s34
      %p48 = scmp.eq.s32.totalorder %s26, 1
      %p49 = por %p47, %p48
      %p51 = scmp.ne.s32.totalorder %s34, %s50
      %p52 = scmp.eq.s32.totalorder %s26, 0
      %p53 = por %p51, %p52
      %s55 = sadd.s32 %s54, 1
      %p58 = scmp.eq.s32.totalorder %s20, 1
      %p59 = scmp.ne.s32.totalorder %s54, %s56
      %p60 = scmp.eq.s32.totalorder %s20, 0
      %p61 = por %p59, %p60
      %p62 = scmp.ne.s32.totalorder %s54, %s56
      %p63 = scmp.eq.s32.totalorder %s25, 1
      %p64 = por %p62, %p63
      %p65 = scmp.ne.s32.totalorder %s56, %s57
      %p66 = scmp.eq.s32.totalorder %s25, 0
      %p67 = por %p65, %p66
      %p68 = scmp.ne.s32.totalorder %s56, %s57
      %p69 = scmp.eq.s32.totalorder %s26, 1
      %p70 = por %p68, %p69
      %p72 = scmp.ne.s32.totalorder %s57, %s71
      %p73 = scmp.eq.s32.totalorder %s26, 0
      %p74 = por %p72, %p73
      %s76 = sadd.s32 %s75, 1
      %p79 = scmp.eq.s32.totalorder %s20, 1
      %p80 = scmp.ne.s32.totalorder %s75, %s77
      %p81 = scmp.eq.s32.totalorder %s20, 0
      %p82 = por %p80, %p81
      %p83 = scmp.ne.s32.totalorder %s75, %s77
      %p84 = scmp.eq.s32.totalorder %s25, 1
      %p85 = por %p83, %p84
      %p86 = scmp.ne.s32.totalorder %s77, %s78
      %p87 = scmp.eq.s32.totalorder %s25, 0
      %p88 = por %p86, %p87
      %p89 = scmp.ne.s32.totalorder %s77, %s78
      %p90 = scmp.eq.s32.totalorder %s26, 1
      %p91 = por %p89, %p90
      %p93 = scmp.ne.s32.totalorder %s78, %s92
      %p94 = scmp.eq.s32.totalorder %s26, 0
      %p95 = por %p93, %p94
      %s97 = sadd.s32 %s96, 1
      %p100 = scmp.eq.s32.totalorder %s20, 1
      %p101 = scmp.ne.s32.totalorder %s96, %s98
      %p102 = scmp.eq.s32.totalorder %s20, 0
      %p103 = por %p101, %p102
      %p104 = scmp.ne.s32.totalorder %s96, %s98
      %p105 = scmp.eq.s32.totalorder %s25, 1
      %p106 = por %p104, %p105
      %p107 = scmp.ne.s32.totalorder %s98, %s99
      %p108 = scmp.eq.s32.totalorder %s25, 0
      %p109 = por %p107, %p108
      %p110 = scmp.ne.s32.totalorder %s98, %s99
      %p111 = scmp.eq.s32.totalorder %s26, 1
      %p112 = por %p110, %p111
      %p114 = scmp.ne.s32.totalorder %s99, %s113
      %p115 = scmp.eq.s32.totalorder %s26, 0
      %p116 = por %p114, %p115
      %s118 = sadd.s32 %s117, 1
      %p121 = scmp.eq.s32.totalorder %s20, 1
      %p122 = scmp.ne.s32.totalorder %s117, %s119
      %p123 = scmp.eq.s32.totalorder %s20, 0
      %p124 = por %p122, %p123
      %p125 = scmp.ne.s32.totalorder %s117, %s119
      %p126 = scmp.eq.s32.totalorder %s25, 1
      %p127 = por %p125, %p126
      %p128 = scmp.ne.s32.totalorder %s119, %s120
      %p129 = scmp.eq.s32.totalorder %s25, 0
      %p130 = por %p128, %p129
      %p131 = scmp.ne.s32.totalorder %s119, %s120
      %p132 = scmp.eq.s32.totalorder %s26, 1
      %p133 = por %p131, %p132
      %p135 = scmp.ne.s32.totalorder %s120, %s134
      %p136 = scmp.eq.s32.totalorder %s26, 0
      %p137 = por %p135, %p136
      %s139 = sadd.s32 %s138, 1
      %p142 = scmp.eq.s32.totalorder %s20, 1
      %p143 = scmp.ne.s32.totalorder %s138, %s140
      %p144 = scmp.eq.s32.totalorder %s20, 0
      %p145 = por %p143, %p144
      %p146 = scmp.ne.s32.totalorder %s138, %s140
      %p147 = scmp.eq.s32.totalorder %s25, 1
      %p148 = por %p146, %p147
      %p149 = scmp.ne.s32.totalorder %s140, %s141
      %p150 = scmp.eq.s32.totalorder %s25, 0
      %p151 = por %p149, %p150
      %p152 = scmp.ne.s32.totalorder %s140, %s141
      %p153 = scmp.eq.s32.totalorder %s26, 1
      %p154 = por %p152, %p153
      %p156 = scmp.ne.s32.totalorder %s141, %s155
      %p157 = scmp.eq.s32.totalorder %s26, 0
      %p158 = por %p156, %p157
      %s160 = sadd.s32 %s159, 1
      %p163 = scmp.eq.s32.totalorder %s20, 1
      %p164 = scmp.ne.s32.totalorder %s159, %s161
      %p165 = scmp.eq.s32.totalorder %s20, 0
      %p166 = por %p164, %p165
      %p167 = scmp.ne.s32.totalorder %s159, %s161
      %p168 = scmp.eq.s32.totalorder %s25, 1
      %p169 = por %p167, %p168
      %p170 = scmp.ne.s32.totalorder %s161, %s162
      %p171 = scmp.eq.s32.totalorder %s25, 0
      %p172 = por %p170, %p171
      %p173 = scmp.ne.s32.totalorder %s161, %s162
      %p174 = scmp.eq.s32.totalorder %s26, 1
      %p175 = por %p173, %p174
      %p177 = scmp.ne.s32.totalorder %s162, %s176
      %p178 = scmp.eq.s32.totalorder %s26, 0
      %p179 = por %p177, %p178
      %s180 = ssub.s32 %s20, %s27
      %p181 = scmp.eq.s32.totalorder %s180, 0
      %s183 = sadd.s32 %s182, 1
      %s184 = scalar_select %p181, %s182, %s183
      %p187 = pneg %p181
      %p188 = scmp.eq.s32.totalorder %s20, 1
      %p189 = por %p187, %p188
      %p190 = scmp.ne.s32.totalorder %s182, %s185
      %p191 = scmp.eq.s32.totalorder %s20, 0
      %p192 = por %p190, %p191
      %p193 = scmp.ne.s32.totalorder %s182, %s185
      %p194 = scmp.eq.s32.totalorder %s25, 1
      %p195 = por %p193, %p194
      %p196 = scmp.ne.s32.totalorder %s185, %s186
      %p197 = scmp.eq.s32.totalorder %s25, 0
      %p198 = por %p196, %p197
      %p199 = scmp.ne.s32.totalorder %s185, %s186
      %p200 = scmp.eq.s32.totalorder %s26, 1
      %p201 = por %p199, %p200
      %p203 = scmp.ne.s32.totalorder %s186, %s202
      %p204 = scmp.eq.s32.totalorder %s26, 0
      %p205 = por %p203, %p204
      %p206 = scmp.le.s32.totalorder 1, %s20
      %p207 = scmp.lt.s32.totalorder %s20, 3
      %p208 = pnand %p206, %p207
      %p209 = pneg %p208
      // Predicated region
      $region9: #{tpu_custom_call.1} parent=5 // pred_check
        _
      $region10: #{tpu_custom_call.1} parent=5 // pred_check_branch
        %211 = sbr.rel (%p208) target = $region12
      $region11: #{tpu_custom_call.1} parent=5 // pred_region
        %s212 = ssub.s32 %s20, 1
        // Predicated region
        $region13: #{tpu_custom_call.1} parent=11 // pred_check
          %p213 = pneg %p67
        $region14: #{tpu_custom_call.1} parent=11 // pred_check_branch
          %215 = sbr.rel (%p213) target = $region16
        $region15: #{tpu_custom_call.1} parent=11 // pred_region
          _
        $region16: #{tpu_custom_call.1} parent=11 // pred_fallthru
          _
        // Predicated region
        $region17: #{tpu_custom_call.1} parent=11 // pred_check
          %p216 = pneg %p88
        $region18: #{tpu_custom_call.1} parent=11 // pred_check_branch
          %218 = sbr.rel (%p216) target = $region20
        $region19: #{tpu_custom_call.1} parent=11 // pred_region
          _
        $region20: #{tpu_custom_call.1} parent=11 // pred_fallthru
          _
        // Predicated region
        $region21: #{tpu_custom_call.1} parent=11 // pred_check
          %p219 = pneg %p109
        $region22: #{tpu_custom_call.1} parent=11 // pred_check_branch
          %221 = sbr.rel (%p219) target = $region24
        $region23: #{tpu_custom_call.1} parent=11 // pred_region
          %s223 = ssub.s32 3072, 3072
          %224 = vsyncadd [#allocation6], %s223
          %s225 = sshll.u32 [#allocation5], 4
          %s226 = int_to_ptr.vmem [resolvable:$true] %s225
          %231 = dma.hbm_to_vmem [thread:$0]  %s3, 3072, %s226, [#allocation6], 64, 64, 4
        $region24: #{tpu_custom_call.1} parent=11 // pred_fallthru
          _
        // Predicated region
        $region25: #{tpu_custom_call.1} parent=11 // pred_check
          %p232 = pneg %p130
        $region26: #{tpu_custom_call.1} parent=11 // pred_check_branch
          %234 = sbr.rel (%p232) target = $region28
        $region27: #{tpu_custom_call.1} parent=11 // pred_region
          _
        $region28: #{tpu_custom_call.1} parent=11 // pred_fallthru
          _
        // Predicated region
        $region29: #{tpu_custom_call.1} parent=11 // pred_check
          %p235 = pneg %p151
        $region30: #{tpu_custom_call.1} parent=11 // pred_check_branch
          %237 = sbr.rel (%p235) target = $region32
        $region31: #{tpu_custom_call.1} parent=11 // pred_region
          %s239 = ssub.s32 1024, 1024
          %240 = vsyncadd [#allocation6], %s239
          %s241 = sshll.u32 [#allocation7], 4
          %s242 = int_to_ptr.vmem [resolvable:$true] %s241
          %247 = dma.hbm_to_vmem [thread:$0]  %s5, 1024, %s242, [#allocation6], 64, 64, 4
        $region32: #{tpu_custom_call.1} parent=11 // pred_fallthru
          _
        // Predicated region
        $region33: #{tpu_custom_call.1} parent=11 // pred_check
          %p248 = pneg %p172
        $region34: #{tpu_custom_call.1} parent=11 // pred_check_branch
          %250 = sbr.rel (%p248) target = $region36
        $region35: #{tpu_custom_call.1} parent=11 // pred_region
          _
        $region36: #{tpu_custom_call.1} parent=11 // pred_fallthru
          _
      $region12: #{tpu_custom_call.1} parent=5 // pred_fallthru
        _
      %p251 = scmp.lt.s32.totalorder %s20, 2
      // Predicated region
      $region37: #{tpu_custom_call.1} parent=5 // pred_check
        %p252 = pneg %p251
      $region38: #{tpu_custom_call.1} parent=5 // pred_check_branch
        %254 = sbr.rel (%p252) target = $region40
      $region39: #{tpu_custom_call.1} parent=5 // pred_region
        // Predicated region
        $region41: #{tpu_custom_call.1} parent=39 // pred_check
          %p255 = pneg %p40
        $region42: #{tpu_custom_call.1} parent=39 // pred_check_branch
          %257 = sbr.rel (%p255) target = $region44
        $region43: #{tpu_custom_call.1} parent=39 // pred_region
          %s258 = sand.u32 %s30, 1
          %s259 = scalar_lea.sflag [#allocation3], %s258
          %s260 = sand.u32 %s30, 1
          %s261 = smul.addr %s260, 128
          %s262 = scalar_lea.vmem [#allocation2], %s261
          %s264 = ssub.s32 2048, 2048
          %265 = vsyncadd %s259, %s264
          %s266 = smul.addr %s20, 16
          %s267 = smul.addr %s266, 128
          %s268 = scalar_lea.hbm %s0, %s267
          %s269 = sshll.u32 %s262, 4
          %s270 = int_to_ptr.vmem [resolvable:$true] %s269
          %275 = dma.hbm_to_vmem [thread:$0]  %s268, 2048, %s270, %s259, 128, 128, 8
        $region44: #{tpu_custom_call.1} parent=39 // pred_fallthru
          _
      $region40: #{tpu_custom_call.1} parent=5 // pred_fallthru
        _
      %p276 = scmp.le.s32.totalorder 1, %s20
      %p277 = scmp.lt.s32.totalorder %s20, 3
      %p278 = pnand %p276, %p277
      %p279 = pneg %p278
      // Predicated region
      $region45: #{tpu_custom_call.1} parent=5 // pred_check
        _
      $region46: #{tpu_custom_call.1} parent=5 // pred_check_branch
        %281 = sbr.rel (%p278) target = $region48
      $region47: #{tpu_custom_call.1} parent=5 // pred_region
        %s282 = ssub.s32 %s20, 1
        %s283 = sand.u32 %s33, 1
        %s284 = scalar_lea.sflag [#allocation3], %s283
        %s285 = sand.u32 %s33, 1
        %s286 = smul.addr %s285, 128
        %s287 = scalar_lea.vmem [#allocation2], %s286
        // Predicated region
        $region49: #{tpu_custom_call.1} parent=47 // pred_check
          %p288 = pneg %p46
        $region50: #{tpu_custom_call.1} parent=47 // pred_check_branch
          %290 = sbr.rel (%p288) target = $region52
        $region51: #{tpu_custom_call.1} parent=47 // pred_region
          %291 = dma.done %s284, 2048
        $region52: #{tpu_custom_call.1} parent=47 // pred_fallthru
          _
        // Predicated region
        $region53: #{tpu_custom_call.1} parent=47 // pred_check
          %p292 = pneg %p109
        $region54: #{tpu_custom_call.1} parent=47 // pred_check_branch
          %294 = sbr.rel (%p292) target = $region56
        $region55: #{tpu_custom_call.1} parent=47 // pred_region
          %295 = dma.done [#allocation6], 3072
        $region56: #{tpu_custom_call.1} parent=47 // pred_fallthru
          _
        // Predicated region
        $region57: #{tpu_custom_call.1} parent=47 // pred_check
          %p296 = pneg %p151
        $region58: #{tpu_custom_call.1} parent=47 // pred_check_branch
          %298 = sbr.rel (%p296) target = $region60
        $region59: #{tpu_custom_call.1} parent=47 // pred_region
          %299 = dma.done [#allocation6], 1024
        $region60: #{tpu_custom_call.1} parent=47 // pred_fallthru
          _
        %s300 = sand.u32 %s33, 1
        %s301 = scalar_lea.sflag [#allocation3], %s300
        %s302 = sand.u32 %s33, 1
        %s303 = smul.addr %s302, 128
        %s304 = scalar_lea.vmem [#allocation2], %s303
        %p305 = pneg %p46
        %p306 = pneg %p43
        %p307 = pneg %p67
        %p308 = pneg %p64
        %p309 = pneg %p88
        %p310 = pneg %p85
        %p311 = pneg %p109
        %p312 = pneg %p106
        %p313 = pneg %p130
        %p314 = pneg %p127
        %p315 = pneg %p151
        %p316 = pneg %p148
        %p317 = pneg %p172
        %p318 = pneg %p169
        %p319 = pneg %p198
        %p320 = pneg %p195
        %s321 = sand.u32 %s185, 1
        %s322 = scalar_lea.sflag [#allocation4], %s321
        %s323 = sand.u32 %s185, 1
        %s324 = smul.addr %s323, 128
        %s325 = scalar_lea.vmem [#allocation8], %s324
        %v327 = vld [vmem:[%s287] sm:$0xff]
        %v328 = vld [vmem:[%s287 + $0x8] sm:$0xff]
        %v329 = vld [vmem:[%s287 + $0x10] sm:$0xff]
        %v330 = vld [vmem:[%s287 + $0x18] sm:$0xff]
        %v331 = vld [vmem:[%s287 + $0x20] sm:$0xff]
        %v332 = vld [vmem:[%s287 + $0x28] sm:$0xff]
        %v333 = vld [vmem:[%s287 + $0x30] sm:$0xff]
        %v334 = vld [vmem:[%s287 + $0x38] sm:$0xff]
        %v335 = vld [vmem:[%s287 + $0x40] sm:$0xff]
        %v336 = vld [vmem:[%s287 + $0x48] sm:$0xff]
        %v337 = vld [vmem:[%s287 + $0x50] sm:$0xff]
        %v338 = vld [vmem:[%s287 + $0x58] sm:$0xff]
        %v339 = vld [vmem:[%s287 + $0x60] sm:$0xff]
        %v340 = vld [vmem:[%s287 + $0x68] sm:$0xff]
        %v341 = vld [vmem:[%s287 + $0x70] sm:$0xff]
        %v342 = vld [vmem:[%s287 + $0x78] sm:$0xff]
        %343 = vadd.xlane.f32.xlu0 %v327
        %v344 = vpop.xlane.xlu0 %343
        %345 = vadd.xlane.f32.xlu0 %v328
        %v346 = vpop.xlane.xlu0 %345
        %347 = vadd.xlane.f32.xlu0 %v329
        %v348 = vpop.xlane.xlu0 %347
        %349 = vadd.xlane.f32.xlu0 %v330
        %v350 = vpop.xlane.xlu0 %349
        %351 = vadd.xlane.f32.xlu0 %v331
        %v352 = vpop.xlane.xlu0 %351
        %353 = vadd.xlane.f32.xlu0 %v332
        %v354 = vpop.xlane.xlu0 %353
        %355 = vadd.xlane.f32.xlu0 %v333
        %v356 = vpop.xlane.xlu0 %355
        %357 = vadd.xlane.f32.xlu0 %v334
        %v358 = vpop.xlane.xlu0 %357
        %359 = vadd.xlane.f32.xlu0 %v335
        %v360 = vpop.xlane.xlu0 %359
        %361 = vadd.xlane.f32.xlu0 %v336
        %v362 = vpop.xlane.xlu0 %361
        %363 = vadd.xlane.f32.xlu0 %v337
        %v364 = vpop.xlane.xlu0 %363
        %365 = vadd.xlane.f32.xlu0 %v338
        %v366 = vpop.xlane.xlu0 %365
        %367 = vadd.xlane.f32.xlu0 %v339
        %v368 = vpop.xlane.xlu0 %367
        %369 = vadd.xlane.f32.xlu0 %v340
        %v370 = vpop.xlane.xlu0 %369
        %371 = vadd.xlane.f32.xlu0 %v341
        %v372 = vpop.xlane.xlu0 %371
        %373 = vadd.xlane.f32.xlu0 %v342
        %v374 = vpop.xlane.xlu0 %373
        %v375 = vrcp.pop 128.0
        %v376 = vmul.f32 %v344, %v375
        %v377 = vmul.f32 %v346, %v375
        %v378 = vmul.f32 %v348, %v375
        %v379 = vmul.f32 %v350, %v375
        %v380 = vmul.f32 %v352, %v375
        %v381 = vmul.f32 %v354, %v375
        %v382 = vmul.f32 %v356, %v375
        %v383 = vmul.f32 %v358, %v375
        %v384 = vmul.f32 %v360, %v375
        %v385 = vmul.f32 %v362, %v375
        %v386 = vmul.f32 %v364, %v375
        %v387 = vmul.f32 %v366, %v375
        %v388 = vmul.f32 %v368, %v375
        %v389 = vmul.f32 %v370, %v375
        %v390 = vmul.f32 %v372, %v375
        %v391 = vmul.f32 %v374, %v375
        %v392 = vsub.f32 %v327, %v376
        %v393 = vsub.f32 %v328, %v377
        %v394 = vsub.f32 %v329, %v378
        %v395 = vsub.f32 %v330, %v379
        %v396 = vsub.f32 %v331, %v380
        %v397 = vsub.f32 %v332, %v381
        %v398 = vsub.f32 %v333, %v382
        %v399 = vsub.f32 %v334, %v383
        %v400 = vsub.f32 %v335, %v384
        %v401 = vsub.f32 %v336, %v385
        %v402 = vsub.f32 %v337, %v386
        %v403 = vsub.f32 %v338, %v387
        %v404 = vsub.f32 %v339, %v388
        %v405 = vsub.f32 %v340, %v389
        %v406 = vsub.f32 %v341, %v390
        %v407 = vsub.f32 %v342, %v391
        %v408 = vmul.f32 %v392, %v392
        %v409 = vmul.f32 %v393, %v393
        %v410 = vmul.f32 %v394, %v394
        %v411 = vmul.f32 %v395, %v395
        %v412 = vmul.f32 %v396, %v396
        %v413 = vmul.f32 %v397, %v397
        %v414 = vmul.f32 %v398, %v398
        %v415 = vmul.f32 %v399, %v399
        %v416 = vmul.f32 %v400, %v400
        %v417 = vmul.f32 %v401, %v401
        %v418 = vmul.f32 %v402, %v402
        %v419 = vmul.f32 %v403, %v403
        %v420 = vmul.f32 %v404, %v404
        %v421 = vmul.f32 %v405, %v405
        %v422 = vmul.f32 %v406, %v406
        %v423 = vmul.f32 %v407, %v407
        %424 = vadd.xlane.f32.xlu0 %v408
        %v425 = vpop.xlane.xlu0 %424
        %426 = vadd.xlane.f32.xlu0 %v409
        %v427 = vpop.xlane.xlu0 %426
        %428 = vadd.xlane.f32.xlu0 %v410
        %v429 = vpop.xlane.xlu0 %428
        %430 = vadd.xlane.f32.xlu0 %v411
        %v431 = vpop.xlane.xlu0 %430
        %432 = vadd.xlane.f32.xlu0 %v412
        %v433 = vpop.xlane.xlu0 %432
        %434 = vadd.xlane.f32.xlu0 %v413
        %v435 = vpop.xlane.xlu0 %434
        %436 = vadd.xlane.f32.xlu0 %v414
        %v437 = vpop.xlane.xlu0 %436
        %438 = vadd.xlane.f32.xlu0 %v415
        %v439 = vpop.xlane.xlu0 %438
        %440 = vadd.xlane.f32.xlu0 %v416
        %v441 = vpop.xlane.xlu0 %440
        %442 = vadd.xlane.f32.xlu0 %v417
        %v443 = vpop.xlane.xlu0 %442
        %444 = vadd.xlane.f32.xlu0 %v418
        %v445 = vpop.xlane.xlu0 %444
        %446 = vadd.xlane.f32.xlu0 %v419
        %v447 = vpop.xlane.xlu0 %446
        %448 = vadd.xlane.f32.xlu0 %v420
        %v449 = vpop.xlane.xlu0 %448
        %450 = vadd.xlane.f32.xlu0 %v421
        %v451 = vpop.xlane.xlu0 %450
        %452 = vadd.xlane.f32.xlu0 %v422
        %v453 = vpop.xlane.xlu0 %452
        %454 = vadd.xlane.f32.xlu0 %v423
        %v455 = vpop.xlane.xlu0 %454
        %v456 = vmul.f32 %v425, %v375
        %v457 = vmul.f32 %v427, %v375
        %v458 = vmul.f32 %v429, %v375
        %v459 = vmul.f32 %v431, %v375
        %v460 = vmul.f32 %v433, %v375
        %v461 = vmul.f32 %v435, %v375
        %v462 = vmul.f32 %v437, %v375
        %v463 = vmul.f32 %v439, %v375
        %v464 = vmul.f32 %v441, %v375
        %v465 = vmul.f32 %v443, %v375
        %v466 = vmul.f32 %v445, %v375
        %v467 = vmul.f32 %v447, %v375
        %v468 = vmul.f32 %v449, %v375
        %v469 = vmul.f32 %v451, %v375
        %v470 = vmul.f32 %v453, %v375
        %v471 = vmul.f32 %v455, %v375
        %v472 = vadd.f32 %v456, 1e-05
        %v473 = vadd.f32 %v457, 1e-05
        %v474 = vadd.f32 %v458, 1e-05
        %v475 = vadd.f32 %v459, 1e-05
        %v476 = vadd.f32 %v460, 1e-05
        %v477 = vadd.f32 %v461, 1e-05
        %v478 = vadd.f32 %v462, 1e-05
        %v479 = vadd.f32 %v463, 1e-05
        %v480 = vadd.f32 %v464, 1e-05
        %v481 = vadd.f32 %v465, 1e-05
        %v482 = vadd.f32 %v466, 1e-05
        %v483 = vadd.f32 %v467, 1e-05
        %v484 = vadd.f32 %v468, 1e-05
        %v485 = vadd.f32 %v469, 1e-05
        %v486 = vadd.f32 %v470, 1e-05
        %v487 = vadd.f32 %v471, 1e-05
        %v488 = vrsqrt.pop %v472
        %v489 = vrsqrt.pop %v473
        %v490 = vrsqrt.pop %v474
        %v491 = vrsqrt.pop %v475
        %v492 = vrsqrt.pop %v476
        %v493 = vrsqrt.pop %v477
        %v494 = vrsqrt.pop %v478
        %v495 = vrsqrt.pop %v479
        %v496 = vrsqrt.pop %v480
        %v497 = vrsqrt.pop %v481
        %v498 = vrsqrt.pop %v482
        %v499 = vrsqrt.pop %v483
        %v500 = vrsqrt.pop %v484
        %v501 = vrsqrt.pop %v485
        %v502 = vrsqrt.pop %v486
        %v503 = vrsqrt.pop %v487
        %v504 = vmul.f32 %v392, %v488
        %v505 = vmul.f32 %v393, %v489
        %v506 = vmul.f32 %v394, %v490
        %v507 = vmul.f32 %v395, %v491
        %v508 = vmul.f32 %v396, %v492
        %v509 = vmul.f32 %v397, %v493
        %v510 = vmul.f32 %v398, %v494
        %v511 = vmul.f32 %v399, %v495
        %v512 = vmul.f32 %v400, %v496
        %v513 = vmul.f32 %v401, %v497
        %v514 = vmul.f32 %v402, %v498
        %v515 = vmul.f32 %v403, %v499
        %v516 = vmul.f32 %v404, %v500
        %v517 = vmul.f32 %v405, %v501
        %v518 = vmul.f32 %v406, %v502
        %v519 = vmul.f32 %v407, %v503
        %v520 = vld [vmem:[%s1] sm:$0x1]
        %v522 = vlaneseq
        %v523 = vshrl.u32 %v522, 7
        %v524 = vsub.s32 0, %v523
        %v525 = vrot.slane %v520, %v524
        %v527 = vmul.f32 %v504, %v525
        %v528 = vmul.f32 %v505, %v525
        %v529 = vmul.f32 %v506, %v525
        %v530 = vmul.f32 %v507, %v525
        %v531 = vmul.f32 %v508, %v525
        %v532 = vmul.f32 %v509, %v525
        %v533 = vmul.f32 %v510, %v525
        %v534 = vmul.f32 %v511, %v525
        %v535 = vmul.f32 %v512, %v525
        %v536 = vmul.f32 %v513, %v525
        %v537 = vmul.f32 %v514, %v525
        %v538 = vmul.f32 %v515, %v525
        %v539 = vmul.f32 %v516, %v525
        %v540 = vmul.f32 %v517, %v525
        %v541 = vmul.f32 %v518, %v525
        %v542 = vmul.f32 %v519, %v525
        %v543 = vld [vmem:[%s2] sm:$0x1]
        %v545 = vlaneseq
        %v546 = vshrl.u32 %v545, 7
        %v547 = vsub.s32 0, %v546
        %v548 = vrot.slane %v543, %v547
        %v550 = vadd.f32 %v527, %v548
        %v551 = vadd.f32 %v528, %v548
        %v552 = vadd.f32 %v529, %v548
        %v553 = vadd.f32 %v530, %v548
        %v554 = vadd.f32 %v531, %v548
        %v555 = vadd.f32 %v532, %v548
        %v556 = vadd.f32 %v533, %v548
        %v557 = vadd.f32 %v534, %v548
        %v558 = vadd.f32 %v535, %v548
        %v559 = vadd.f32 %v536, %v548
        %v560 = vadd.f32 %v537, %v548
        %v561 = vadd.f32 %v538, %v548
        %v562 = vadd.f32 %v539, %v548
        %v563 = vadd.f32 %v540, %v548
        %v564 = vadd.f32 %v541, %v548
        %v565 = vadd.f32 %v542, %v548
        %v566 = vpack.c.bf16 %v551, %v550
        %v567 = vpack.c.bf16 %v553, %v552
        %v568 = vpack.c.bf16 %v555, %v554
        %v569 = vpack.c.bf16 %v557, %v556
        %v570 = vpack.c.bf16 %v559, %v558
        %v571 = vpack.c.bf16 %v561, %v560
        %v572 = vpack.c.bf16 %v563, %v562
        %v573 = vpack.c.bf16 %v565, %v564
        %v574 = vld [vmem:[#allocation5] sm:$0xf]
        %v575 = vld [vmem:[#allocation5 + $0x4] sm:$0xf]
        %v576 = vld [vmem:[#allocation5 + $0x8] sm:$0xf]
        %v577 = vld [vmem:[#allocation5 + $0xc] sm:$0xf]
        %v578 = vld [vmem:[#allocation5 + $0x10] sm:$0xf]
        %v579 = vld [vmem:[#allocation5 + $0x14] sm:$0xf]
        %v580 = vld [vmem:[#allocation5 + $0x18] sm:$0xf]
        %v581 = vld [vmem:[#allocation5 + $0x1c] sm:$0xf]
        %v582 = vld [vmem:[#allocation5 + $0x20] sm:$0xf]
        %v583 = vld [vmem:[#allocation5 + $0x24] sm:$0xf]
        %v584 = vld [vmem:[#allocation5 + $0x28] sm:$0xf]
        %v585 = vld [vmem:[#allocation5 + $0x2c] sm:$0xf]
        %v586 = vld [vmem:[#allocation5 + $0x30] sm:$0xf]
        %v587 = vld [vmem:[#allocation5 + $0x34] sm:$0xf]
        %v588 = vld [vmem:[#allocation5 + $0x38] sm:$0xf]
        %v589 = vld [vmem:[#allocation5 + $0x3c] sm:$0xf]
        %v590 = vld [vmem:[#allocation5 + $0x40] sm:$0xf]
        %v591 = vld [vmem:[#allocation5 + $0x44] sm:$0xf]
        %v592 = vld [vmem:[#allocation5 + $0x48] sm:$0xf]
        %v593 = vld [vmem:[#allocation5 + $0x4c] sm:$0xf]
        %v594 = vld [vmem:[#allocation5 + $0x50] sm:$0xf]
        %v595 = vld [vmem:[#allocation5 + $0x54] sm:$0xf]
        %v596 = vld [vmem:[#allocation5 + $0x58] sm:$0xf]
        %v597 = vld [vmem:[#allocation5 + $0x5c] sm:$0xf]
        %v598 = vld [vmem:[#allocation5 + $0x60] sm:$0xf]
        %v599 = vld [vmem:[#allocation5 + $0x64] sm:$0xf]
        %v600 = vld [vmem:[#allocation5 + $0x68] sm:$0xf]
        %v601 = vld [vmem:[#allocation5 + $0x6c] sm:$0xf]
        %v602 = vld [vmem:[#allocation5 + $0x70] sm:$0xf]
        %v603 = vld [vmem:[#allocation5 + $0x74] sm:$0xf]
        %v604 = vld [vmem:[#allocation5 + $0x78] sm:$0xf]
        %v605 = vld [vmem:[#allocation5 + $0x7c] sm:$0xf]
        %v606 = vld [vmem:[#allocation5 + $0x80] sm:$0xf]
        %v607 = vld [vmem:[#allocation5 + $0x84] sm:$0xf]
        %v608 = vld [vmem:[#allocation5 + $0x88] sm:$0xf]
        %v609 = vld [vmem:[#allocation5 + $0x8c] sm:$0xf]
        %v610 = vld [vmem:[#allocation5 + $0x90] sm:$0xf]
        %v611 = vld [vmem:[#allocation5 + $0x94] sm:$0xf]
        %v612 = vld [vmem:[#allocation5 + $0x98] sm:$0xf]
        %v613 = vld [vmem:[#allocation5 + $0x9c] sm:$0xf]
        %v614 = vld [vmem:[#allocation5 + $0xa0] sm:$0xf]
        %v615 = vld [vmem:[#allocation5 + $0xa4] sm:$0xf]
        %v616 = vld [vmem:[#allocation5 + $0xa8] sm:$0xf]
        %v617 = vld [vmem:[#allocation5 + $0xac] sm:$0xf]
        %v618 = vld [vmem:[#allocation5 + $0xb0] sm:$0xf]
        %v619 = vld [vmem:[#allocation5 + $0xb4] sm:$0xf]
        %v620 = vld [vmem:[#allocation5 + $0xb8] sm:$0xf]
        %v621 = vld [vmem:[#allocation5 + $0xbc] sm:$0xf]
        %v622 = vld [vmem:[%s4] sm:$0x7]
        %v624 = vlaneseq
        %v625 = vshrl.u32 %v624, 7
        %v626 = vsub.s32 0, %v625
        %v627 = vrot.slane %v622, %v626
        %v628 = vlaneseq
        %v629 = vshrl.u32 %v628, 7
        %v630 = vsub.s32 1, %v629
        %v631 = vrot.slane %v622, %v630
        %v632 = vlaneseq
        %v633 = vshrl.u32 %v632, 7
        %v634 = vsub.s32 2, %v633
        %v635 = vrot.slane %v622, %v634
        %v687 = vunpack.c.l.b16 %v574
        %v688 = vunpack.c.l.b16 %v575
        %v689 = vunpack.c.l.b16 %v576
        %v690 = vunpack.c.l.b16 %v577
        %v691 = vunpack.c.l.b16 %v578
        %v692 = vunpack.c.l.b16 %v579
        %v693 = vunpack.c.l.b16 %v580
        %v694 = vunpack.c.l.b16 %v581
        %v695 = vunpack.c.l.b16 %v582
        %v696 = vunpack.c.l.b16 %v583
        %v697 = vunpack.c.l.b16 %v584
        %v698 = vunpack.c.l.b16 %v585
        %v699 = vunpack.c.l.b16 %v586
        %v700 = vunpack.c.l.b16 %v587
        %v701 = vunpack.c.l.b16 %v588
        %v702 = vunpack.c.l.b16 %v589
        %v703 = vunpack.c.l.b16 %v590
        %v704 = vunpack.c.l.b16 %v591
        %v705 = vunpack.c.l.b16 %v592
        %v706 = vunpack.c.l.b16 %v593
        %v707 = vunpack.c.l.b16 %v594
        %v708 = vunpack.c.l.b16 %v595
        %v709 = vunpack.c.l.b16 %v596
        %v710 = vunpack.c.l.b16 %v597
        %v711 = vunpack.c.l.b16 %v598
        %v712 = vunpack.c.l.b16 %v599
        %v713 = vunpack.c.l.b16 %v600
        %v714 = vunpack.c.l.b16 %v601
        %v715 = vunpack.c.l.b16 %v602
        %v716 = vunpack.c.l.b16 %v603
        %v717 = vunpack.c.l.b16 %v604
        %v718 = vunpack.c.l.b16 %v605
        %v719 = vunpack.c.l.b16 %v606
        %v720 = vunpack.c.l.b16 %v607
        %v721 = vunpack.c.l.b16 %v608
        %v722 = vunpack.c.l.b16 %v609
        %v723 = vunpack.c.l.b16 %v610
        %v724 = vunpack.c.l.b16 %v611
        %v725 = vunpack.c.l.b16 %v612
        %v726 = vunpack.c.l.b16 %v613
        %v727 = vunpack.c.l.b16 %v614
        %v728 = vunpack.c.l.b16 %v615
        %v729 = vunpack.c.l.b16 %v616
        %v730 = vunpack.c.l.b16 %v617
        %v731 = vunpack.c.l.b16 %v618
        %v732 = vunpack.c.l.b16 %v619
        %v733 = vunpack.c.l.b16 %v620
        %v734 = vunpack.c.l.b16 %v621
        %v735 = vpack.c.b16 %v688, %v687
        %v736 = vpack.c.b16 %v690, %v689
        %v737 = vpack.c.b16 %v692, %v691
        %v738 = vpack.c.b16 %v694, %v693
        %v739 = vpack.c.b16 %v696, %v695
        %v740 = vpack.c.b16 %v698, %v697
        %v741 = vpack.c.b16 %v700, %v699
        %v742 = vpack.c.b16 %v702, %v701
        %v743 = vpack.c.b16 %v704, %v703
        %v744 = vpack.c.b16 %v706, %v705
        %v745 = vpack.c.b16 %v708, %v707
        %v746 = vpack.c.b16 %v710, %v709
        %v747 = vpack.c.b16 %v712, %v711
        %v748 = vpack.c.b16 %v714, %v713
        %v749 = vpack.c.b16 %v716, %v715
        %v750 = vpack.c.b16 %v718, %v717
        %v751 = vpack.c.b16 %v720, %v719
        %v752 = vpack.c.b16 %v722, %v721
        %v753 = vpack.c.b16 %v724, %v723
        %v754 = vpack.c.b16 %v726, %v725
        %v755 = vpack.c.b16 %v728, %v727
        %v756 = vpack.c.b16 %v730, %v729
        %v757 = vpack.c.b16 %v732, %v731
        %v758 = vpack.c.b16 %v734, %v733
        %783 = vmatprep.subr.bf16.mxu0 0
        %784 = vmatpush1.bf16.xpose.msra.mxu0 %v735
        %785 = vmatprep.subr.bf16.mxu0 0
        %786 = vmatpush1.bf16.xpose.msra.mxu0 %v736
        %787 = vmatprep.subr.bf16.mxu0 0
        %788 = vmatpush1.bf16.xpose.msra.mxu0 %v737
        %789 = vmatprep.subr.bf16.mxu0 0
        %790 = vmatpush1.bf16.xpose.msra.mxu0 %v738
        %791 = vmatprep.subr.bf16.mxu0 0
        %792 = vmatpush1.bf16.xpose.msra.mxu0 %v739
        %793 = vmatprep.subr.bf16.mxu0 0
        %794 = vmatpush1.bf16.xpose.msra.mxu0 %v740
        %795 = vmatprep.subr.bf16.mxu0 0
        %796 = vmatpush1.bf16.xpose.msra.mxu0 %v741
        %797 = vmatprep.subr.bf16.mxu0 0
        %798 = vmatpush1.bf16.xpose.msra.mxu0 %v742
        %799 = vmatprep.subr.bf16.mxu0 0
        %800 = vmatpush1.bf16.xpose.msra.mxu0 %v743
        %801 = vmatprep.subr.bf16.mxu0 0
        %802 = vmatpush1.bf16.xpose.msra.mxu0 %v744
        %803 = vmatprep.subr.bf16.mxu0 0
        %804 = vmatpush1.bf16.xpose.msra.mxu0 %v745
        %805 = vmatprep.subr.bf16.mxu0 0
        %806 = vmatpush1.bf16.xpose.msra.mxu0 %v746
        %807 = vmatprep.subr.bf16.mxu0 0
        %808 = vmatpush1.bf16.xpose.msra.mxu0 %v747
        %809 = vmatprep.subr.bf16.mxu0 0
        %810 = vmatpush1.bf16.xpose.msra.mxu0 %v748
        %811 = vmatprep.subr.bf16.mxu0 0
        %812 = vmatpush1.bf16.xpose.msra.mxu0 %v749
        %813 = vmatprep.subr.bf16.mxu0 0
        %814 = vmatpush1.bf16.xpose.msra.mxu0 %v750
        %815 = vmatprep.mubr.bf16.mxu0 0
        %816 = vmatmul.mubr.bf16.gmra.mrb[0].mxu0 %v566
        %v817 = vpop.f32.mrb[0].mxu0
        %v818 = vadd.f32 %v627, %v817
        %v819 = vpop.f32.mrb[0].mxu0
        %v820 = vadd.f32 %v631, %v819
        %v821 = vpop.f32.mrb[0].mxu0
        %v822 = vadd.f32 %v627, %v821
        %v823 = vpop.f32.mrb[0].mxu0
        %v824 = vadd.f32 %v631, %v823
        %825 = vmatprep.mubr.bf16.mxu0 0
        %826 = vmatmul.mubr.bf16.gmra.mrb[0].mxu0 %v567
        %v827 = vpop.f32.mrb[0].mxu0
        %v828 = vadd.f32 %v627, %v827
        %v829 = vpop.f32.mrb[0].mxu0
        %v830 = vadd.f32 %v631, %v829
        %v831 = vpop.f32.mrb[0].mxu0
        %v832 = vadd.f32 %v627, %v831
        %v833 = vpop.f32.mrb[0].mxu0
        %v834 = vadd.f32 %v631, %v833
        %835 = vmatprep.mubr.bf16.mxu0 0
        %836 = vmatmul.mubr.bf16.gmra.mrb[0].mxu0 %v568
        %v837 = vpop.f32.mrb[0].mxu0
        %v838 = vadd.f32 %v627, %v837
        %v839 = vpop.f32.mrb[0].mxu0
        %v840 = vadd.f32 %v631, %v839
        %v841 = vpop.f32.mrb[0].mxu0
        %v842 = vadd.f32 %v627, %v841
        %v843 = vpop.f32.mrb[0].mxu0
        %v844 = vadd.f32 %v631, %v843
        %845 = vmatprep.mubr.bf16.mxu0 0
        %846 = vmatmul.mubr.bf16.gmra.mrb[0].mxu0 %v569
        %v847 = vpop.f32.mrb[0].mxu0
        %v848 = vadd.f32 %v627, %v847
        %v849 = vpop.f32.mrb[0].mxu0
        %v850 = vadd.f32 %v631, %v849
        %v851 = vpop.f32.mrb[0].mxu0
        %v852 = vadd.f32 %v627, %v851
        %v853 = vpop.f32.mrb[0].mxu0
        %v854 = vadd.f32 %v631, %v853
        %855 = vmatprep.mubr.bf16.mxu0 0
        %856 = vmatmul.mubr.bf16.gmra.mrb[0].mxu0 %v570
        %v857 = vpop.f32.mrb[0].mxu0
        %v858 = vadd.f32 %v627, %v857
        %v859 = vpop.f32.mrb[0].mxu0
        %v860 = vadd.f32 %v631, %v859
        %v861 = vpop.f32.mrb[0].mxu0
        %v862 = vadd.f32 %v627, %v861
        %v863 = vpop.f32.mrb[0].mxu0
        %v864 = vadd.f32 %v631, %v863
        %865 = vmatprep.mubr.bf16.mxu0 0
        %866 = vmatmul.mubr.bf16.gmra.mrb[0].mxu0 %v571
        %v867 = vpop.f32.mrb[0].mxu0
        %v868 = vadd.f32 %v627, %v867
        %v869 = vpop.f32.mrb[0].mxu0
        %v870 = vadd.f32 %v631, %v869
        %v871 = vpop.f32.mrb[0].mxu0
        %v872 = vadd.f32 %v627, %v871
        %v873 = vpop.f32.mrb[0].mxu0
        %v874 = vadd.f32 %v631, %v873
        %875 = vmatprep.mubr.bf16.mxu0 0
        %876 = vmatmul.mubr.bf16.gmra.mrb[0].mxu0 %v572
        %v877 = vpop.f32.mrb[0].mxu0
        %v878 = vadd.f32 %v627, %v877
        %v879 = vpop.f32.mrb[0].mxu0
        %v880 = vadd.f32 %v631, %v879
        %v881 = vpop.f32.mrb[0].mxu0
        %v882 = vadd.f32 %v627, %v881
        %v883 = vpop.f32.mrb[0].mxu0
        %v884 = vadd.f32 %v631, %v883
        %885 = vmatprep.mubr.bf16.mxu0 0
        %886 = vmatmul.mubr.bf16.gmra.mrb[0].mxu0 %v573
        %v887 = vpop.f32.mrb[0].mxu0
        %v888 = vadd.f32 %v627, %v887
        %v889 = vpop.f32.mrb[0].mxu0
        %v890 = vadd.f32 %v631, %v889
        %v891 = vpop.f32.mrb[0].mxu0
        %v892 = vadd.f32 %v627, %v891
        %v893 = vpop.f32.mrb[0].mxu0
        %v894 = vadd.f32 %v631, %v893
        %895 = vdwg.mxu0
        %896 = vmatprep.subr.bf16.mxu0 0
        %897 = vmatpush1.bf16.xpose.msra.mxu0 %v751
        %898 = vmatprep.subr.bf16.mxu0 0
        %899 = vmatpush1.bf16.xpose.msra.mxu0 %v752
        %900 = vmatprep.subr.bf16.mxu0 0
        %901 = vmatpush1.bf16.xpose.msra.mxu0 %v753
        %902 = vmatprep.subr.bf16.mxu0 0
        %903 = vmatpush1.bf16.xpose.msra.mxu0 %v754
        %904 = vmatprep.subr.bf16.mxu0 0
        %905 = vmatpush1.bf16.xpose.msra.mxu0 %v755
        %906 = vmatprep.subr.bf16.mxu0 0
        %907 = vmatpush1.bf16.xpose.msra.mxu0 %v756
        %908 = vmatprep.subr.bf16.mxu0 0
        %909 = vmatpush1.bf16.xpose.msra.mxu0 %v757
        %910 = vmatprep.subr.bf16.mxu0 0
        %911 = vmatpush1.bf16.xpose.msra.mxu0 %v758
        %912 = vmatprep.subr.bf16.mxu0 0
        %913 = vmatpush1.bf16.xpose.msra.mxu0 0
        %914 = vmatprep.subr.bf16.mxu0 0
        %915 = vmatpush1.bf16.xpose.msra.mxu0 0
        %916 = vmatprep.subr.bf16.mxu0 0
        %917 = vmatpush1.bf16.xpose.msra.mxu0 0
        %918 = vmatprep.subr.bf16.mxu0 0
        %919 = vmatpush1.bf16.xpose.msra.mxu0 0
        %920 = vmatprep.subr.bf16.mxu0 0
        %921 = vmatpush1.bf16.xpose.msra.mxu0 0
        %922 = vmatprep.subr.bf16.mxu0 0
        %923 = vmatpush1.bf16.xpose.msra.mxu0 0
        %924 = vmatprep.subr.bf16.mxu0 0
        %925 = vmatpush1.bf16.xpose.msra.mxu0 0
        %926 = vmatprep.subr.bf16.mxu0 0
        %927 = vmatpush1.bf16.xpose.msra.mxu0 0
        %928 = vmatprep.mubr.bf16.mxu0 0
        %929 = vmatmul.mubr.bf16.gmra.mrb[0].mxu0 %v566
        %v930 = vpop.f32.mrb[0].mxu0
        %v931 = vadd.f32 %v635, %v930
        %v932 = vpop.f32.mrb[0].mxu0
        %v933 = vpop.f32.mrb[0].mxu0
        %v934 = vadd.f32 %v635, %v933
        %v935 = vpop.f32.mrb[0].mxu0
        %936 = vmatprep.mubr.bf16.mxu0 0
        %937 = vmatmul.mubr.bf16.gmra.mrb[0].mxu0 %v567
        %v938 = vpop.f32.mrb[0].mxu0
        %v939 = vadd.f32 %v635, %v938
        %v940 = vpop.f32.mrb[0].mxu0
        %v941 = vpop.f32.mrb[0].mxu0
        %v942 = vadd.f32 %v635, %v941
        %v943 = vpop.f32.mrb[0].mxu0
        %944 = vmatprep.mubr.bf16.mxu0 0
        %945 = vmatmul.mubr.bf16.gmra.mrb[0].mxu0 %v568
        %v946 = vpop.f32.mrb[0].mxu0
        %v947 = vadd.f32 %v635, %v946
        %v948 = vpop.f32.mrb[0].mxu0
        %v949 = vpop.f32.mrb[0].mxu0
        %v950 = vadd.f32 %v635, %v949
        %v951 = vpop.f32.mrb[0].mxu0
        %952 = vmatprep.mubr.bf16.mxu0 0
        %953 = vmatmul.mubr.bf16.gmra.mrb[0].mxu0 %v569
        %v954 = vpop.f32.mrb[0].mxu0
        %v955 = vadd.f32 %v635, %v954
        %v956 = vpop.f32.mrb[0].mxu0
        %v957 = vpop.f32.mrb[0].mxu0
        %v958 = vadd.f32 %v635, %v957
        %v959 = vpop.f32.mrb[0].mxu0
        %960 = vmatprep.mubr.bf16.mxu0 0
        %961 = vmatmul.mubr.bf16.gmra.mrb[0].mxu0 %v570
        %v962 = vpop.f32.mrb[0].mxu0
        %v963 = vadd.f32 %v635, %v962
        %v964 = vpop.f32.mrb[0].mxu0
        %v965 = vpop.f32.mrb[0].mxu0
        %v966 = vadd.f32 %v635, %v965
        %v967 = vpop.f32.mrb[0].mxu0
        %968 = vmatprep.mubr.bf16.mxu0 0
        %969 = vmatmul.mubr.bf16.gmra.mrb[0].mxu0 %v571
        %v970 = vpop.f32.mrb[0].mxu0
        %v971 = vadd.f32 %v635, %v970
        %v972 = vpop.f32.mrb[0].mxu0
        %v973 = vpop.f32.mrb[0].mxu0
        %v974 = vadd.f32 %v635, %v973
        %v975 = vpop.f32.mrb[0].mxu0
        %976 = vmatprep.mubr.bf16.mxu0 0
        %977 = vmatmul.mubr.bf16.gmra.mrb[0].mxu0 %v572
        %v978 = vpop.f32.mrb[0].mxu0
        %v979 = vadd.f32 %v635, %v978
        %v980 = vpop.f32.mrb[0].mxu0
        %v981 = vpop.f32.mrb[0].mxu0
        %v982 = vadd.f32 %v635, %v981
        %v983 = vpop.f32.mrb[0].mxu0
        %984 = vmatprep.mubr.bf16.mxu0 0
        %985 = vmatmul.mubr.bf16.gmra.mrb[0].mxu0 %v573
        %v986 = vpop.f32.mrb[0].mxu0
        %v987 = vadd.f32 %v635, %v986
        %v988 = vpop.f32.mrb[0].mxu0
        %v989 = vpop.f32.mrb[0].mxu0
        %v990 = vadd.f32 %v635, %v989
        %v991 = vpop.f32.mrb[0].mxu0
        %992 = vdwg.mxu0
        %v993 = vmul.f32 %v818, 0.088388346
        %v994 = vmul.f32 %v822, 0.088388346
        %v995 = vmul.f32 %v828, 0.088388346
        %v996 = vmul.f32 %v832, 0.088388346
        %v997 = vmul.f32 %v838, 0.088388346
        %v998 = vmul.f32 %v842, 0.088388346
        %v999 = vmul.f32 %v848, 0.088388346
        %v1000 = vmul.f32 %v852, 0.088388346
        %v1001 = vmul.f32 %v858, 0.088388346
        %v1002 = vmul.f32 %v862, 0.088388346
        %v1003 = vmul.f32 %v868, 0.088388346
        %v1004 = vmul.f32 %v872, 0.088388346
        %v1005 = vmul.f32 %v878, 0.088388346
        %v1006 = vmul.f32 %v882, 0.088388346
        %v1007 = vmul.f32 %v888, 0.088388346
        %v1008 = vmul.f32 %v892, 0.088388346
        %v1009 = vpack.c.bf16 %v994, %v993
        %v1010 = vpack.c.bf16 %v996, %v995
        %v1011 = vpack.c.bf16 %v998, %v997
        %v1012 = vpack.c.bf16 %v1000, %v999
        %v1013 = vpack.c.bf16 %v1002, %v1001
        %v1014 = vpack.c.bf16 %v1004, %v1003
        %v1015 = vpack.c.bf16 %v1006, %v1005
        %v1016 = vpack.c.bf16 %v1008, %v1007
        %v1017 = vpack.c.bf16 %v824, %v820
        %v1018 = vpack.c.bf16 %v834, %v830
        %v1019 = vpack.c.bf16 %v844, %v840
        %v1020 = vpack.c.bf16 %v854, %v850
        %v1021 = vpack.c.bf16 %v864, %v860
        %v1022 = vpack.c.bf16 %v874, %v870
        %v1023 = vpack.c.bf16 %v884, %v880
        %v1024 = vpack.c.bf16 %v894, %v890
        %v1025 = vpack.c.bf16 %v934, %v931
        %v1026 = vpack.c.bf16 %v942, %v939
        %v1027 = vpack.c.bf16 %v950, %v947
        %v1028 = vpack.c.bf16 %v958, %v955
        %v1029 = vpack.c.bf16 %v966, %v963
        %v1030 = vpack.c.bf16 %v974, %v971
        %v1031 = vpack.c.bf16 %v982, %v979
        %v1032 = vpack.c.bf16 %v990, %v987
        %vm1033 = vcmask 261120
        %v1035 = vsel %vm1033, %v1009, 0
        %v1038 = vsel %vm1033, %v1010, 0
        %v1041 = vsel %vm1033, %v1011, 0
        %v1044 = vsel %vm1033, %v1012, 0
        %v1047 = vsel %vm1033, %v1013, 0
        %v1050 = vsel %vm1033, %v1014, 0
        %v1053 = vsel %vm1033, %v1015, 0
        %v1056 = vsel %vm1033, %v1016, 0
        %v1059 = vsel %vm1033, %v1017, 0
        %v1062 = vsel %vm1033, %v1018, 0
        %v1065 = vsel %vm1033, %v1019, 0
        %v1068 = vsel %vm1033, %v1020, 0
        %v1071 = vsel %vm1033, %v1021, 0
        %v1074 = vsel %vm1033, %v1022, 0
        %v1077 = vsel %vm1033, %v1023, 0
        %v1080 = vsel %vm1033, %v1024, 0
        %1082 = vmatprep.subr.bf16.mxu0 0
        %1083 = vmatpush1.bf16.xpose.msra.mxu0 %v1059
        %1084 = vmatprep.subr.bf16.mxu0 0
        %1085 = vmatpush1.bf16.xpose.msra.mxu0 %v1062
        %1086 = vmatprep.subr.bf16.mxu0 0
        %1087 = vmatpush1.bf16.xpose.msra.mxu0 %v1065
        %1088 = vmatprep.subr.bf16.mxu0 0
        %1089 = vmatpush1.bf16.xpose.msra.mxu0 %v1068
        %1090 = vmatprep.subr.bf16.mxu0 0
        %1091 = vmatpush1.bf16.xpose.msra.mxu0 %v1071
        %1092 = vmatprep.subr.bf16.mxu0 0
        %1093 = vmatpush1.bf16.xpose.msra.mxu0 %v1074
        %1094 = vmatprep.subr.bf16.mxu0 0
        %1095 = vmatpush1.bf16.xpose.msra.mxu0 %v1077
        %1096 = vmatprep.subr.bf16.mxu0 0
        %1097 = vmatpush1.bf16.xpose.msra.mxu0 %v1080
        %1098 = vmatprep.subr.bf16.mxu0 0
        %1099 = vmatpush1.bf16.xpose.msra.mxu0 0
        %1100 = vmatprep.subr.bf16.mxu0 0
        %1101 = vmatpush1.bf16.xpose.msra.mxu0 0
        %1102 = vmatprep.subr.bf16.mxu0 0
        %1103 = vmatpush1.bf16.xpose.msra.mxu0 0
        %1104 = vmatprep.subr.bf16.mxu0 0
        %1105 = vmatpush1.bf16.xpose.msra.mxu0 0
        %1106 = vmatprep.subr.bf16.mxu0 0
        %1107 = vmatpush1.bf16.xpose.msra.mxu0 0
        %1108 = vmatprep.subr.bf16.mxu0 0
        %1109 = vmatpush1.bf16.xpose.msra.mxu0 0
        %1110 = vmatprep.subr.bf16.mxu0 0
        %1111 = vmatpush1.bf16.xpose.msra.mxu0 0
        %1112 = vmatprep.subr.bf16.mxu0 0
        %1113 = vmatpush1.bf16.xpose.msra.mxu0 0
        %1114 = vmatprep.mubr.bf16.mxu0 0
        %1115 = vmatmul.mubr.bf16.gmra.mrb[0].mxu0 %v1035
        %v1116 = vpop.f32.mrb[0].mxu0
        %v1117 = vadd.f32 0.0, %v1116
        %v1118 = vpop.f32.mrb[0].mxu0
        %v1119 = vpop.f32.mrb[0].mxu0
        %v1120 = vadd.f32 0.0, %v1119
        %v1121 = vpop.f32.mrb[0].mxu0
        %1122 = vmatprep.mubr.bf16.mxu0 0
        %1123 = vmatmul.mubr.bf16.gmra.mrb[0].mxu0 %v1038
        %v1124 = vpop.f32.mrb[0].mxu0
        %v1125 = vadd.f32 0.0, %v1124
        %v1126 = vpop.f32.mrb[0].mxu0
        %v1127 = vpop.f32.mrb[0].mxu0
        %v1128 = vadd.f32 0.0, %v1127
        %v1129 = vpop.f32.mrb[0].mxu0
        %1130 = vmatprep.mubr.bf16.mxu0 0
        %1131 = vmatmul.mubr.bf16.gmra.mrb[0].mxu0 %v1041
        %v1132 = vpop.f32.mrb[0].mxu0
        %v1133 = vadd.f32 0.0, %v1132
        %v1134 = vpop.f32.mrb[0].mxu0
        %v1135 = vpop.f32.mrb[0].mxu0
        %v1136 = vadd.f32 0.0, %v1135
        %v1137 = vpop.f32.mrb[0].mxu0
        %1138 = vmatprep.mubr.bf16.mxu0 0
        %1139 = vmatmul.mubr.bf16.gmra.mrb[0].mxu0 %v1044
        %v1140 = vpop.f32.mrb[0].mxu0
        %v1141 = vadd.f32 0.0, %v1140
        %v1142 = vpop.f32.mrb[0].mxu0
        %v1143 = vpop.f32.mrb[0].mxu0
        %v1144 = vadd.f32 0.0, %v1143
        %v1145 = vpop.f32.mrb[0].mxu0
        %1146 = vmatprep.mubr.bf16.mxu0 0
        %1147 = vmatmul.mubr.bf16.gmra.mrb[0].mxu0 %v1047
        %v1148 = vpop.f32.mrb[0].mxu0
        %v1149 = vadd.f32 0.0, %v1148
        %v1150 = vpop.f32.mrb[0].mxu0
        %v1151 = vpop.f32.mrb[0].mxu0
        %v1152 = vadd.f32 0.0, %v1151
        %v1153 = vpop.f32.mrb[0].mxu0
        %1154 = vmatprep.mubr.bf16.mxu0 0
        %1155 = vmatmul.mubr.bf16.gmra.mrb[0].mxu0 %v1050
        %v1156 = vpop.f32.mrb[0].mxu0
        %v1157 = vadd.f32 0.0, %v1156
        %v1158 = vpop.f32.mrb[0].mxu0
        %v1159 = vpop.f32.mrb[0].mxu0
        %v1160 = vadd.f32 0.0, %v1159
        %v1161 = vpop.f32.mrb[0].mxu0
        %1162 = vmatprep.mubr.bf16.mxu0 0
        %1163 = vmatmul.mubr.bf16.gmra.mrb[0].mxu0 %v1053
        %v1164 = vpop.f32.mrb[0].mxu0
        %v1165 = vadd.f32 0.0, %v1164
        %v1166 = vpop.f32.mrb[0].mxu0
        %v1167 = vpop.f32.mrb[0].mxu0
        %v1168 = vadd.f32 0.0, %v1167
        %v1169 = vpop.f32.mrb[0].mxu0
        %1170 = vmatprep.mubr.bf16.mxu0 0
        %1171 = vmatmul.mubr.bf16.gmra.mrb[0].mxu0 %v1056
        %v1172 = vpop.f32.mrb[0].mxu0
        %v1173 = vadd.f32 0.0, %v1172
        %v1174 = vpop.f32.mrb[0].mxu0
        %v1175 = vpop.f32.mrb[0].mxu0
        %v1176 = vadd.f32 0.0, %v1175
        %v1177 = vpop.f32.mrb[0].mxu0
        %1178 = vdwg.mxu0
        %1179 = vmax.xlane.f32.xlu0 %v1117
        %v1180 = vpop.xlane.xlu0 %1179
        %1181 = vmax.xlane.f32.xlu0 %v1120
        %v1182 = vpop.xlane.xlu0 %1181
        %1183 = vmax.xlane.f32.xlu0 %v1125
        %v1184 = vpop.xlane.xlu0 %1183
        %1185 = vmax.xlane.f32.xlu0 %v1128
        %v1186 = vpop.xlane.xlu0 %1185
        %1187 = vmax.xlane.f32.xlu0 %v1133
        %v1188 = vpop.xlane.xlu0 %1187
        %1189 = vmax.xlane.f32.xlu0 %v1136
        %v1190 = vpop.xlane.xlu0 %1189
        %1191 = vmax.xlane.f32.xlu0 %v1141
        %v1192 = vpop.xlane.xlu0 %1191
        %1193 = vmax.xlane.f32.xlu0 %v1144
        %v1194 = vpop.xlane.xlu0 %1193
        %1195 = vmax.xlane.f32.xlu0 %v1149
        %v1196 = vpop.xlane.xlu0 %1195
        %1197 = vmax.xlane.f32.xlu0 %v1152
        %v1198 = vpop.xlane.xlu0 %1197
        %1199 = vmax.xlane.f32.xlu0 %v1157
        %v1200 = vpop.xlane.xlu0 %1199
        %1201 = vmax.xlane.f32.xlu0 %v1160
        %v1202 = vpop.xlane.xlu0 %1201
        %1203 = vmax.xlane.f32.xlu0 %v1165
        %v1204 = vpop.xlane.xlu0 %1203
        %1205 = vmax.xlane.f32.xlu0 %v1168
        %v1206 = vpop.xlane.xlu0 %1205
        %1207 = vmax.xlane.f32.xlu0 %v1173
        %v1208 = vpop.xlane.xlu0 %1207
        %1209 = vmax.xlane.f32.xlu0 %v1176
        %v1210 = vpop.xlane.xlu0 %1209
        %v1211 = vsub.f32 %v1117, %v1180
        %v1212 = vsub.f32 %v1120, %v1182
        %v1213 = vsub.f32 %v1125, %v1184
        %v1214 = vsub.f32 %v1128, %v1186
        %v1215 = vsub.f32 %v1133, %v1188
        %v1216 = vsub.f32 %v1136, %v1190
        %v1217 = vsub.f32 %v1141, %v1192
        %v1218 = vsub.f32 %v1144, %v1194
        %v1219 = vsub.f32 %v1149, %v1196
        %v1220 = vsub.f32 %v1152, %v1198
        %v1221 = vsub.f32 %v1157, %v1200
        %v1222 = vsub.f32 %v1160, %v1202
        %v1223 = vsub.f32 %v1165, %v1204
        %v1224 = vsub.f32 %v1168, %v1206
        %v1225 = vsub.f32 %v1173, %v1208
        %v1226 = vsub.f32 %v1176, %v1210
        %v1227 = vmul.f32 %v1211, 1.442695
        %v1228 = vpow.pop %v1227
        %v1229 = vmul.f32 %v1212, 1.442695
        %v1230 = vpow.pop %v1229
        %v1231 = vmul.f32 %v1213, 1.442695
        %v1232 = vpow.pop %v1231
        %v1233 = vmul.f32 %v1214, 1.442695
        %v1234 = vpow.pop %v1233
        %v1235 = vmul.f32 %v1215, 1.442695
        %v1236 = vpow.pop %v1235
        %v1237 = vmul.f32 %v1216, 1.442695
        %v1238 = vpow.pop %v1237
        %v1239 = vmul.f32 %v1217, 1.442695
        %v1240 = vpow.pop %v1239
        %v1241 = vmul.f32 %v1218, 1.442695
        %v1242 = vpow.pop %v1241
        %v1243 = vmul.f32 %v1219, 1.442695
        %v1244 = vpow.pop %v1243
        %v1245 = vmul.f32 %v1220, 1.442695
        %v1246 = vpow.pop %v1245
        %v1247 = vmul.f32 %v1221, 1.442695
        %v1248 = vpow.pop %v1247
        %v1249 = vmul.f32 %v1222, 1.442695
        %v1250 = vpow.pop %v1249
        %v1251 = vmul.f32 %v1223, 1.442695
        %v1252 = vpow.pop %v1251
        %v1253 = vmul.f32 %v1224, 1.442695
        %v1254 = vpow.pop %v1253
        %v1255 = vmul.f32 %v1225, 1.442695
        %v1256 = vpow.pop %v1255
        %v1257 = vmul.f32 %v1226, 1.442695
        %v1258 = vpow.pop %v1257
        %1259 = vadd.xlane.f32.xlu0 %v1228
        %v1260 = vpop.xlane.xlu0 %1259
        %1261 = vadd.xlane.f32.xlu0 %v1230
        %v1262 = vpop.xlane.xlu0 %1261
        %1263 = vadd.xlane.f32.xlu0 %v1232
        %v1264 = vpop.xlane.xlu0 %1263
        %1265 = vadd.xlane.f32.xlu0 %v1234
        %v1266 = vpop.xlane.xlu0 %1265
        %1267 = vadd.xlane.f32.xlu0 %v1236
        %v1268 = vpop.xlane.xlu0 %1267
        %1269 = vadd.xlane.f32.xlu0 %v1238
        %v1270 = vpop.xlane.xlu0 %1269
        %1271 = vadd.xlane.f32.xlu0 %v1240
        %v1272 = vpop.xlane.xlu0 %1271
        %1273 = vadd.xlane.f32.xlu0 %v1242
        %v1274 = vpop.xlane.xlu0 %1273
        %1275 = vadd.xlane.f32.xlu0 %v1244
        %v1276 = vpop.xlane.xlu0 %1275
        %1277 = vadd.xlane.f32.xlu0 %v1246
        %v1278 = vpop.xlane.xlu0 %1277
        %1279 = vadd.xlane.f32.xlu0 %v1248
        %v1280 = vpop.xlane.xlu0 %1279
        %1281 = vadd.xlane.f32.xlu0 %v1250
        %v1282 = vpop.xlane.xlu0 %1281
        %1283 = vadd.xlane.f32.xlu0 %v1252
        %v1284 = vpop.xlane.xlu0 %1283
        %1285 = vadd.xlane.f32.xlu0 %v1254
        %v1286 = vpop.xlane.xlu0 %1285
        %1287 = vadd.xlane.f32.xlu0 %v1256
        %v1288 = vpop.xlane.xlu0 %1287
        %1289 = vadd.xlane.f32.xlu0 %v1258
        %v1290 = vpop.xlane.xlu0 %1289
        %v1291 = vrcp.pop %v1260
        %v1292 = vrcp.pop %v1262
        %v1293 = vrcp.pop %v1264
        %v1294 = vrcp.pop %v1266
        %v1295 = vrcp.pop %v1268
        %v1296 = vrcp.pop %v1270
        %v1297 = vrcp.pop %v1272
        %v1298 = vrcp.pop %v1274
        %v1299 = vrcp.pop %v1276
        %v1300 = vrcp.pop %v1278
        %v1301 = vrcp.pop %v1280
        %v1302 = vrcp.pop %v1282
        %v1303 = vrcp.pop %v1284
        %v1304 = vrcp.pop %v1286
        %v1305 = vrcp.pop %v1288
        %v1306 = vrcp.pop %v1290
        %v1307 = vmul.f32 %v1228, %v1291
        %v1308 = vmul.f32 %v1230, %v1292
        %v1309 = vmul.f32 %v1232, %v1293
        %v1310 = vmul.f32 %v1234, %v1294
        %v1311 = vmul.f32 %v1236, %v1295
        %v1312 = vmul.f32 %v1238, %v1296
        %v1313 = vmul.f32 %v1240, %v1297
        %v1314 = vmul.f32 %v1242, %v1298
        %v1315 = vmul.f32 %v1244, %v1299
        %v1316 = vmul.f32 %v1246, %v1300
        %v1317 = vmul.f32 %v1248, %v1301
        %v1318 = vmul.f32 %v1250, %v1302
        %v1319 = vmul.f32 %v1252, %v1303
        %v1320 = vmul.f32 %v1254, %v1304
        %v1321 = vmul.f32 %v1256, %v1305
        %v1322 = vmul.f32 %v1258, %v1306
        %v1323 = vpack.c.bf16 %v1308, %v1307
        %v1324 = vpack.c.bf16 %v1310, %v1309
        %v1325 = vpack.c.bf16 %v1312, %v1311
        %v1326 = vpack.c.bf16 %v1314, %v1313
        %v1327 = vpack.c.bf16 %v1316, %v1315
        %v1328 = vpack.c.bf16 %v1318, %v1317
        %v1329 = vpack.c.bf16 %v1320, %v1319
        %v1330 = vpack.c.bf16 %v1322, %v1321
        %1331 = vmatprep.subr.bf16.mxu0 0
        %1332 = vmatpush1.bf16.msra.mxu0 %v1025
        %1333 = vmatprep.subr.bf16.mxu0 0
        %1334 = vmatpush1.bf16.msra.mxu0 %v1026
        %1335 = vmatprep.subr.bf16.mxu0 0
        %1336 = vmatpush1.bf16.msra.mxu0 %v1027
        %1337 = vmatprep.subr.bf16.mxu0 0
        %1338 = vmatpush1.bf16.msra.mxu0 %v1028
        %1339 = vmatprep.subr.bf16.mxu0 0
        %1340 = vmatpush1.bf16.msra.mxu0 %v1029
        %1341 = vmatprep.subr.bf16.mxu0 0
        %1342 = vmatpush1.bf16.msra.mxu0 %v1030
        %1343 = vmatprep.subr.bf16.mxu0 0
        %1344 = vmatpush1.bf16.msra.mxu0 %v1031
        %1345 = vmatprep.subr.bf16.mxu0 0
        %1346 = vmatpush1.bf16.msra.mxu0 %v1032
        %1347 = vmatprep.subr.bf16.mxu0 0
        %1348 = vmatpush1.bf16.msra.mxu0 0
        %1349 = vmatprep.subr.bf16.mxu0 0
        %1350 = vmatpush1.bf16.msra.mxu0 0
        %1351 = vmatprep.subr.bf16.mxu0 0
        %1352 = vmatpush1.bf16.msra.mxu0 0
        %1353 = vmatprep.subr.bf16.mxu0 0
        %1354 = vmatpush1.bf16.msra.mxu0 0
        %1355 = vmatprep.subr.bf16.mxu0 0
        %1356 = vmatpush1.bf16.msra.mxu0 0
        %1357 = vmatprep.subr.bf16.mxu0 0
        %1358 = vmatpush1.bf16.msra.mxu0 0
        %1359 = vmatprep.subr.bf16.mxu0 0
        %1360 = vmatpush1.bf16.msra.mxu0 0
        %1361 = vmatprep.subr.bf16.mxu0 0
        %1362 = vmatpush1.bf16.msra.mxu0 0
        %1363 = vmatprep.mubr.bf16.mxu0 0
        %1364 = vmatmul.mubr.bf16.gmra.mrb[0].mxu0 %v1323
        %v1365 = vpop.f32.mrb[0].mxu0
        %v1366 = vadd.f32 0.0, %v1365
        %v1367 = vpop.f32.mrb[0].mxu0
        %v1368 = vpop.f32.mrb[0].mxu0
        %v1369 = vadd.f32 0.0, %v1368
        %v1370 = vpop.f32.mrb[0].mxu0
        %1371 = vmatprep.mubr.bf16.mxu0 0
        %1372 = vmatmul.mubr.bf16.gmra.mrb[0].mxu0 %v1324
        %v1373 = vpop.f32.mrb[0].mxu0
        %v1374 = vadd.f32 0.0, %v1373
        %v1375 = vpop.f32.mrb[0].mxu0
        %v1376 = vpop.f32.mrb[0].mxu0
        %v1377 = vadd.f32 0.0, %v1376
        %v1378 = vpop.f32.mrb[0].mxu0
        %1379 = vmatprep.mubr.bf16.mxu0 0
        %1380 = vmatmul.mubr.bf16.gmra.mrb[0].mxu0 %v1325
        %v1381 = vpop.f32.mrb[0].mxu0
        %v1382 = vadd.f32 0.0, %v1381
        %v1383 = vpop.f32.mrb[0].mxu0
        %v1384 = vpop.f32.mrb[0].mxu0
        %v1385 = vadd.f32 0.0, %v1384
        %v1386 = vpop.f32.mrb[0].mxu0
        %1387 = vmatprep.mubr.bf16.mxu0 0
        %1388 = vmatmul.mubr.bf16.gmra.mrb[0].mxu0 %v1326
        %v1389 = vpop.f32.mrb[0].mxu0
        %v1390 = vadd.f32 0.0, %v1389
        %v1391 = vpop.f32.mrb[0].mxu0
        %v1392 = vpop.f32.mrb[0].mxu0
        %v1393 = vadd.f32 0.0, %v1392
        %v1394 = vpop.f32.mrb[0].mxu0
        %1395 = vmatprep.mubr.bf16.mxu0 0
        %1396 = vmatmul.mubr.bf16.gmra.mrb[0].mxu0 %v1327
        %v1397 = vpop.f32.mrb[0].mxu0
        %v1398 = vadd.f32 0.0, %v1397
        %v1399 = vpop.f32.mrb[0].mxu0
        %v1400 = vpop.f32.mrb[0].mxu0
        %v1401 = vadd.f32 0.0, %v1400
        %v1402 = vpop.f32.mrb[0].mxu0
        %1403 = vmatprep.mubr.bf16.mxu0 0
        %1404 = vmatmul.mubr.bf16.gmra.mrb[0].mxu0 %v1328
        %v1405 = vpop.f32.mrb[0].mxu0
        %v1406 = vadd.f32 0.0, %v1405
        %v1407 = vpop.f32.mrb[0].mxu0
        %v1408 = vpop.f32.mrb[0].mxu0
        %v1409 = vadd.f32 0.0, %v1408
        %v1410 = vpop.f32.mrb[0].mxu0
        %1411 = vmatprep.mubr.bf16.mxu0 0
        %1412 = vmatmul.mubr.bf16.gmra.mrb[0].mxu0 %v1329
        %v1413 = vpop.f32.mrb[0].mxu0
        %v1414 = vadd.f32 0.0, %v1413
        %v1415 = vpop.f32.mrb[0].mxu0
        %v1416 = vpop.f32.mrb[0].mxu0
        %v1417 = vadd.f32 0.0, %v1416
        %v1418 = vpop.f32.mrb[0].mxu0
        %1419 = vmatprep.mubr.bf16.mxu0 0
        %1420 = vmatmul.mubr.bf16.gmra.mrb[0].mxu0 %v1330
        %v1421 = vpop.f32.mrb[0].mxu0
        %v1422 = vadd.f32 0.0, %v1421
        %v1423 = vpop.f32.mrb[0].mxu0
        %v1424 = vpop.f32.mrb[0].mxu0
        %v1425 = vadd.f32 0.0, %v1424
        %v1426 = vpop.f32.mrb[0].mxu0
        %1427 = vdwg.mxu0
        %1436 = vrot.lane.b32.xlu0 %v1009, 96
        %v1437 = vpop.permute.xlu0 %1436
        %1438 = vrot.lane.b32.xlu0 %v1010, 96
        %v1439 = vpop.permute.xlu0 %1438
        %1440 = vrot.lane.b32.xlu0 %v1011, 96
        %v1441 = vpop.permute.xlu0 %1440
        %1442 = vrot.lane.b32.xlu0 %v1012, 96
        %v1443 = vpop.permute.xlu0 %1442
        %1444 = vrot.lane.b32.xlu0 %v1013, 96
        %v1445 = vpop.permute.xlu0 %1444
        %1446 = vrot.lane.b32.xlu0 %v1014, 96
        %v1447 = vpop.permute.xlu0 %1446
        %1448 = vrot.lane.b32.xlu0 %v1015, 96
        %v1449 = vpop.permute.xlu0 %1448
        %1450 = vrot.lane.b32.xlu0 %v1016, 96
        %v1451 = vpop.permute.xlu0 %1450
        %1460 = vrot.lane.b32.xlu0 %v1017, 96
        %v1461 = vpop.permute.xlu0 %1460
        %1462 = vrot.lane.b32.xlu0 %v1018, 96
        %v1463 = vpop.permute.xlu0 %1462
        %1464 = vrot.lane.b32.xlu0 %v1019, 96
        %v1465 = vpop.permute.xlu0 %1464
        %1466 = vrot.lane.b32.xlu0 %v1020, 96
        %v1467 = vpop.permute.xlu0 %1466
        %1468 = vrot.lane.b32.xlu0 %v1021, 96
        %v1469 = vpop.permute.xlu0 %1468
        %1470 = vrot.lane.b32.xlu0 %v1022, 96
        %v1471 = vpop.permute.xlu0 %1470
        %1472 = vrot.lane.b32.xlu0 %v1023, 96
        %v1473 = vpop.permute.xlu0 %1472
        %1474 = vrot.lane.b32.xlu0 %v1024, 96
        %v1475 = vpop.permute.xlu0 %1474
        %v1477 = vsel %vm1033, %v1437, 0
        %v1480 = vsel %vm1033, %v1439, 0
        %v1483 = vsel %vm1033, %v1441, 0
        %v1486 = vsel %vm1033, %v1443, 0
        %v1489 = vsel %vm1033, %v1445, 0
        %v1492 = vsel %vm1033, %v1447, 0
        %v1495 = vsel %vm1033, %v1449, 0
        %v1498 = vsel %vm1033, %v1451, 0
        %v1501 = vsel %vm1033, %v1461, 0
        %v1504 = vsel %vm1033, %v1463, 0
        %v1507 = vsel %vm1033, %v1465, 0
        %v1510 = vsel %vm1033, %v1467, 0
        %v1513 = vsel %vm1033, %v1469, 0
        %v1516 = vsel %vm1033, %v1471, 0
        %v1519 = vsel %vm1033, %v1473, 0
        %v1522 = vsel %vm1033, %v1475, 0
        %1524 = vmatprep.subr.bf16.mxu0 0
        %1525 = vmatpush1.bf16.xpose.msra.mxu0 %v1501
        %1526 = vmatprep.subr.bf16.mxu0 0
        %1527 = vmatpush1.bf16.xpose.msra.mxu0 %v1504
        %1528 = vmatprep.subr.bf16.mxu0 0
        %1529 = vmatpush1.bf16.xpose.msra.mxu0 %v1507
        %1530 = vmatprep.subr.bf16.mxu0 0
        %1531 = vmatpush1.bf16.xpose.msra.mxu0 %v1510
        %1532 = vmatprep.subr.bf16.mxu0 0
        %1533 = vmatpush1.bf16.xpose.msra.mxu0 %v1513
        %1534 = vmatprep.subr.bf16.mxu0 0
        %1535 = vmatpush1.bf16.xpose.msra.mxu0 %v1516
        %1536 = vmatprep.subr.bf16.mxu0 0
        %1537 = vmatpush1.bf16.xpose.msra.mxu0 %v1519
        %1538 = vmatprep.subr.bf16.mxu0 0
        %1539 = vmatpush1.bf16.xpose.msra.mxu0 %v1522
        %1540 = vmatprep.subr.bf16.mxu0 0
        %1541 = vmatpush1.bf16.xpose.msra.mxu0 0
        %1542 = vmatprep.subr.bf16.mxu0 0
        %1543 = vmatpush1.bf16.xpose.msra.mxu0 0
        %1544 = vmatprep.subr.bf16.mxu0 0
        %1545 = vmatpush1.bf16.xpose.msra.mxu0 0
        %1546 = vmatprep.subr.bf16.mxu0 0
        %1547 = vmatpush1.bf16.xpose.msra.mxu0 0
        %1548 = vmatprep.subr.bf16.mxu0 0
        %1549 = vmatpush1.bf16.xpose.msra.mxu0 0
        %1550 = vmatprep.subr.bf16.mxu0 0
        %1551 = vmatpush1.bf16.xpose.msra.mxu0 0
        %1552 = vmatprep.subr.bf16.mxu0 0
        %1553 = vmatpush1.bf16.xpose.msra.mxu0 0
        %1554 = vmatprep.subr.bf16.mxu0 0
        %1555 = vmatpush1.bf16.xpose.msra.mxu0 0
        %1556 = vmatprep.mubr.bf16.mxu0 0
        %1557 = vmatmul.mubr.bf16.gmra.mrb[0].mxu0 %v1477
        %v1558 = vpop.f32.mrb[0].mxu0
        %v1559 = vadd.f32 0.0, %v1558
        %v1560 = vpop.f32.mrb[0].mxu0
        %v1561 = vpop.f32.mrb[0].mxu0
        %v1562 = vadd.f32 0.0, %v1561
        %v1563 = vpop.f32.mrb[0].mxu0
        %1564 = vmatprep.mubr.bf16.mxu0 0
        %1565 = vmatmul.mubr.bf16.gmra.mrb[0].mxu0 %v1480
        %v1566 = vpop.f32.mrb[0].mxu0
        %v1567 = vadd.f32 0.0, %v1566
        %v1568 = vpop.f32.mrb[0].mxu0
        %v1569 = vpop.f32.mrb[0].mxu0
        %v1570 = vadd.f32 0.0, %v1569
        %v1571 = vpop.f32.mrb[0].mxu0
        %1572 = vmatprep.mubr.bf16.mxu0 0
        %1573 = vmatmul.mubr.bf16.gmra.mrb[0].mxu0 %v1483
        %v1574 = vpop.f32.mrb[0].mxu0
        %v1575 = vadd.f32 0.0, %v1574
        %v1576 = vpop.f32.mrb[0].mxu0
        %v1577 = vpop.f32.mrb[0].mxu0
        %v1578 = vadd.f32 0.0, %v1577
        %v1579 = vpop.f32.mrb[0].mxu0
        %1580 = vmatprep.mubr.bf16.mxu0 0
        %1581 = vmatmul.mubr.bf16.gmra.mrb[0].mxu0 %v1486
        %v1582 = vpop.f32.mrb[0].mxu0
        %v1583 = vadd.f32 0.0, %v1582
        %v1584 = vpop.f32.mrb[0].mxu0
        %v1585 = vpop.f32.mrb[0].mxu0
        %v1586 = vadd.f32 0.0, %v1585
        %v1587 = vpop.f32.mrb[0].mxu0
        %1588 = vmatprep.mubr.bf16.mxu0 0
        %1589 = vmatmul.mubr.bf16.gmra.mrb[0].mxu0 %v1489
        %v1590 = vpop.f32.mrb[0].mxu0
        %v1591 = vadd.f32 0.0, %v1590
        %v1592 = vpop.f32.mrb[0].mxu0
        %v1593 = vpop.f32.mrb[0].mxu0
        %v1594 = vadd.f32 0.0, %v1593
        %v1595 = vpop.f32.mrb[0].mxu0
        %1596 = vmatprep.mubr.bf16.mxu0 0
        %1597 = vmatmul.mubr.bf16.gmra.mrb[0].mxu0 %v1492
        %v1598 = vpop.f32.mrb[0].mxu0
        %v1599 = vadd.f32 0.0, %v1598
        %v1600 = vpop.f32.mrb[0].mxu0
        %v1601 = vpop.f32.mrb[0].mxu0
        %v1602 = vadd.f32 0.0, %v1601
        %v1603 = vpop.f32.mrb[0].mxu0
        %1604 = vmatprep.mubr.bf16.mxu0 0
        %1605 = vmatmul.mubr.bf16.gmra.mrb[0].mxu0 %v1495
        %v1606 = vpop.f32.mrb[0].mxu0
        %v1607 = vadd.f32 0.0, %v1606
        %v1608 = vpop.f32.mrb[0].mxu0
        %v1609 = vpop.f32.mrb[0].mxu0
        %v1610 = vadd.f32 0.0, %v1609
        %v1611 = vpop.f32.mrb[0].mxu0
        %1612 = vmatprep.mubr.bf16.mxu0 0
        %1613 = vmatmul.mubr.bf16.gmra.mrb[0].mxu0 %v1498
        %v1614 = vpop.f32.mrb[0].mxu0
        %v1615 = vadd.f32 0.0, %v1614
        %v1616 = vpop.f32.mrb[0].mxu0
        %v1617 = vpop.f32.mrb[0].mxu0
        %v1618 = vadd.f32 0.0, %v1617
        %v1619 = vpop.f32.mrb[0].mxu0
        %1620 = vdwg.mxu0
        %1621 = vmax.xlane.f32.xlu0 %v1559
        %v1622 = vpop.xlane.xlu0 %1621
        %1623 = vmax.xlane.f32.xlu0 %v1562
        %v1624 = vpop.xlane.xlu0 %1623
        %1625 = vmax.xlane.f32.xlu0 %v1567
        %v1626 = vpop.xlane.xlu0 %1625
        %1627 = vmax.xlane.f32.xlu0 %v1570
        %v1628 = vpop.xlane.xlu0 %1627
        %1629 = vmax.xlane.f32.xlu0 %v1575
        %v1630 = vpop.xlane.xlu0 %1629
        %1631 = vmax.xlane.f32.xlu0 %v1578
        %v1632 = vpop.xlane.xlu0 %1631
        %1633 = vmax.xlane.f32.xlu0 %v1583
        %v1634 = vpop.xlane.xlu0 %1633
        %1635 = vmax.xlane.f32.xlu0 %v1586
        %v1636 = vpop.xlane.xlu0 %1635
        %1637 = vmax.xlane.f32.xlu0 %v1591
        %v1638 = vpop.xlane.xlu0 %1637
        %1639 = vmax.xlane.f32.xlu0 %v1594
        %v1640 = vpop.xlane.xlu0 %1639
        %1641 = vmax.xlane.f32.xlu0 %v1599
        %v1642 = vpop.xlane.xlu0 %1641
        %1643 = vmax.xlane.f32.xlu0 %v1602
        %v1644 = vpop.xlane.xlu0 %1643
        %1645 = vmax.xlane.f32.xlu0 %v1607
        %v1646 = vpop.xlane.xlu0 %1645
        %1647 = vmax.xlane.f32.xlu0 %v1610
        %v1648 = vpop.xlane.xlu0 %1647
        %1649 = vmax.xlane.f32.xlu0 %v1615
        %v1650 = vpop.xlane.xlu0 %1649
        %1651 = vmax.xlane.f32.xlu0 %v1618
        %v1652 = vpop.xlane.xlu0 %1651
        %v1653 = vsub.f32 %v1559, %v1622
        %v1654 = vsub.f32 %v1562, %v1624
        %v1655 = vsub.f32 %v1567, %v1626
        %v1656 = vsub.f32 %v1570, %v1628
        %v1657 = vsub.f32 %v1575, %v1630
        %v1658 = vsub.f32 %v1578, %v1632
        %v1659 = vsub.f32 %v1583, %v1634
        %v1660 = vsub.f32 %v1586, %v1636
        %v1661 = vsub.f32 %v1591, %v1638
        %v1662 = vsub.f32 %v1594, %v1640
        %v1663 = vsub.f32 %v1599, %v1642
        %v1664 = vsub.f32 %v1602, %v1644
        %v1665 = vsub.f32 %v1607, %v1646
        %v1666 = vsub.f32 %v1610, %v1648
        %v1667 = vsub.f32 %v1615, %v1650
        %v1668 = vsub.f32 %v1618, %v1652
        %v1669 = vmul.f32 %v1653, 1.442695
        %v1670 = vpow.pop %v1669
        %v1671 = vmul.f32 %v1654, 1.442695
        %v1672 = vpow.pop %v1671
        %v1673 = vmul.f32 %v1655, 1.442695
        %v1674 = vpow.pop %v1673
        %v1675 = vmul.f32 %v1656, 1.442695
        %v1676 = vpow.pop %v1675
        %v1677 = vmul.f32 %v1657, 1.442695
        %v1678 = vpow.pop %v1677
        %v1679 = vmul.f32 %v1658, 1.442695
        %v1680 = vpow.pop %v1679
        %v1681 = vmul.f32 %v1659, 1.442695
        %v1682 = vpow.pop %v1681
        %v1683 = vmul.f32 %v1660, 1.442695
        %v1684 = vpow.pop %v1683
        %v1685 = vmul.f32 %v1661, 1.442695
        %v1686 = vpow.pop %v1685
        %v1687 = vmul.f32 %v1662, 1.442695
        %v1688 = vpow.pop %v1687
        %v1689 = vmul.f32 %v1663, 1.442695
        %v1690 = vpow.pop %v1689
        %v1691 = vmul.f32 %v1664, 1.442695
        %v1692 = vpow.pop %v1691
        %v1693 = vmul.f32 %v1665, 1.442695
        %v1694 = vpow.pop %v1693
        %v1695 = vmul.f32 %v1666, 1.442695
        %v1696 = vpow.pop %v1695
        %v1697 = vmul.f32 %v1667, 1.442695
        %v1698 = vpow.pop %v1697
        %v1699 = vmul.f32 %v1668, 1.442695
        %v1700 = vpow.pop %v1699
        %1701 = vadd.xlane.f32.xlu0 %v1670
        %v1702 = vpop.xlane.xlu0 %1701
        %1703 = vadd.xlane.f32.xlu0 %v1672
        %v1704 = vpop.xlane.xlu0 %1703
        %1705 = vadd.xlane.f32.xlu0 %v1674
        %v1706 = vpop.xlane.xlu0 %1705
        %1707 = vadd.xlane.f32.xlu0 %v1676
        %v1708 = vpop.xlane.xlu0 %1707
        %1709 = vadd.xlane.f32.xlu0 %v1678
        %v1710 = vpop.xlane.xlu0 %1709
        %1711 = vadd.xlane.f32.xlu0 %v1680
        %v1712 = vpop.xlane.xlu0 %1711
        %1713 = vadd.xlane.f32.xlu0 %v1682
        %v1714 = vpop.xlane.xlu0 %1713
        %1715 = vadd.xlane.f32.xlu0 %v1684
        %v1716 = vpop.xlane.xlu0 %1715
        %1717 = vadd.xlane.f32.xlu0 %v1686
        %v1718 = vpop.xlane.xlu0 %1717
        %1719 = vadd.xlane.f32.xlu0 %v1688
        %v1720 = vpop.xlane.xlu0 %1719
        %1721 = vadd.xlane.f32.xlu0 %v1690
        %v1722 = vpop.xlane.xlu0 %1721
        %1723 = vadd.xlane.f32.xlu0 %v1692
        %v1724 = vpop.xlane.xlu0 %1723
        %1725 = vadd.xlane.f32.xlu0 %v1694
        %v1726 = vpop.xlane.xlu0 %1725
        %1727 = vadd.xlane.f32.xlu0 %v1696
        %v1728 = vpop.xlane.xlu0 %1727
        %1729 = vadd.xlane.f32.xlu0 %v1698
        %v1730 = vpop.xlane.xlu0 %1729
        %1731 = vadd.xlane.f32.xlu0 %v1700
        %v1732 = vpop.xlane.xlu0 %1731
        %v1733 = vrcp.pop %v1702
        %v1734 = vrcp.pop %v1704
        %v1735 = vrcp.pop %v1706
        %v1736 = vrcp.pop %v1708
        %v1737 = vrcp.pop %v1710
        %v1738 = vrcp.pop %v1712
        %v1739 = vrcp.pop %v1714
        %v1740 = vrcp.pop %v1716
        %v1741 = vrcp.pop %v1718
        %v1742 = vrcp.pop %v1720
        %v1743 = vrcp.pop %v1722
        %v1744 = vrcp.pop %v1724
        %v1745 = vrcp.pop %v1726
        %v1746 = vrcp.pop %v1728
        %v1747 = vrcp.pop %v1730
        %v1748 = vrcp.pop %v1732
        %v1749 = vmul.f32 %v1670, %v1733
        %v1750 = vmul.f32 %v1672, %v1734
        %v1751 = vmul.f32 %v1674, %v1735
        %v1752 = vmul.f32 %v1676, %v1736
        %v1753 = vmul.f32 %v1678, %v1737
        %v1754 = vmul.f32 %v1680, %v1738
        %v1755 = vmul.f32 %v1682, %v1739
        %v1756 = vmul.f32 %v1684, %v1740
        %v1757 = vmul.f32 %v1686, %v1741
        %v1758 = vmul.f32 %v1688, %v1742
        %v1759 = vmul.f32 %v1690, %v1743
        %v1760 = vmul.f32 %v1692, %v1744
        %v1761 = vmul.f32 %v1694, %v1745
        %v1762 = vmul.f32 %v1696, %v1746
        %v1763 = vmul.f32 %v1698, %v1747
        %v1764 = vmul.f32 %v1700, %v1748
        %v1765 = vpack.c.bf16 %v1750, %v1749
        %v1766 = vpack.c.bf16 %v1752, %v1751
        %v1767 = vpack.c.bf16 %v1754, %v1753
        %v1768 = vpack.c.bf16 %v1756, %v1755
        %v1769 = vpack.c.bf16 %v1758, %v1757
        %v1770 = vpack.c.bf16 %v1760, %v1759
        %v1771 = vpack.c.bf16 %v1762, %v1761
        %v1772 = vpack.c.bf16 %v1764, %v1763
        %1781 = vrot.lane.b32.xlu0 %v1025, 96
        %v1782 = vpop.permute.xlu0 %1781
        %1783 = vrot.lane.b32.xlu0 %v1026, 96
        %v1784 = vpop.permute.xlu0 %1783
        %1785 = vrot.lane.b32.xlu0 %v1027, 96
        %v1786 = vpop.permute.xlu0 %1785
        %1787 = vrot.lane.b32.xlu0 %v1028, 96
        %v1788 = vpop.permute.xlu0 %1787
        %1789 = vrot.lane.b32.xlu0 %v1029, 96
        %v1790 = vpop.permute.xlu0 %1789
        %1791 = vrot.lane.b32.xlu0 %v1030, 96
        %v1792 = vpop.permute.xlu0 %1791
        %1793 = vrot.lane.b32.xlu0 %v1031, 96
        %v1794 = vpop.permute.xlu0 %1793
        %1795 = vrot.lane.b32.xlu0 %v1032, 96
        %v1796 = vpop.permute.xlu0 %1795
        %1805 = vmatprep.subr.bf16.mxu0 0
        %1806 = vmatpush1.bf16.msra.mxu0 %v1782
        %1807 = vmatprep.subr.bf16.mxu0 0
        %1808 = vmatpush1.bf16.msra.mxu0 %v1784
        %1809 = vmatprep.subr.bf16.mxu0 0
        %1810 = vmatpush1.bf16.msra.mxu0 %v1786
        %1811 = vmatprep.subr.bf16.mxu0 0
        %1812 = vmatpush1.bf16.msra.mxu0 %v1788
        %1813 = vmatprep.subr.bf16.mxu0 0
        %1814 = vmatpush1.bf16.msra.mxu0 %v1790
        %1815 = vmatprep.subr.bf16.mxu0 0
        %1816 = vmatpush1.bf16.msra.mxu0 %v1792
        %1817 = vmatprep.subr.bf16.mxu0 0
        %1818 = vmatpush1.bf16.msra.mxu0 %v1794
        %1819 = vmatprep.subr.bf16.mxu0 0
        %1820 = vmatpush1.bf16.msra.mxu0 %v1796
        %1821 = vmatprep.subr.bf16.mxu0 0
        %1822 = vmatpush1.bf16.msra.mxu0 0
        %1823 = vmatprep.subr.bf16.mxu0 0
        %1824 = vmatpush1.bf16.msra.mxu0 0
        %1825 = vmatprep.subr.bf16.mxu0 0
        %1826 = vmatpush1.bf16.msra.mxu0 0
        %1827 = vmatprep.subr.bf16.mxu0 0
        %1828 = vmatpush1.bf16.msra.mxu0 0
        %1829 = vmatprep.subr.bf16.mxu0 0
        %1830 = vmatpush1.bf16.msra.mxu0 0
        %1831 = vmatprep.subr.bf16.mxu0 0
        %1832 = vmatpush1.bf16.msra.mxu0 0
        %1833 = vmatprep.subr.bf16.mxu0 0
        %1834 = vmatpush1.bf16.msra.mxu0 0
        %1835 = vmatprep.subr.bf16.mxu0 0
        %1836 = vmatpush1.bf16.msra.mxu0 0
        %1837 = vmatprep.mubr.bf16.mxu0 0
        %1838 = vmatmul.mubr.bf16.gmra.mrb[0].mxu0 %v1765
        %v1839 = vpop.f32.mrb[0].mxu0
        %v1840 = vadd.f32 0.0, %v1839
        %v1841 = vpop.f32.mrb[0].mxu0
        %v1842 = vpop.f32.mrb[0].mxu0
        %v1843 = vadd.f32 0.0, %v1842
        %v1844 = vpop.f32.mrb[0].mxu0
        %1845 = vmatprep.mubr.bf16.mxu0 0
        %1846 = vmatmul.mubr.bf16.gmra.mrb[0].mxu0 %v1766
        %v1847 = vpop.f32.mrb[0].mxu0
        %v1848 = vadd.f32 0.0, %v1847
        %v1849 = vpop.f32.mrb[0].mxu0
        %v1850 = vpop.f32.mrb[0].mxu0
        %v1851 = vadd.f32 0.0, %v1850
        %v1852 = vpop.f32.mrb[0].mxu0
        %1853 = vmatprep.mubr.bf16.mxu0 0
        %1854 = vmatmul.mubr.bf16.gmra.mrb[0].mxu0 %v1767
        %v1855 = vpop.f32.mrb[0].mxu0
        %v1856 = vadd.f32 0.0, %v1855
        %v1857 = vpop.f32.mrb[0].mxu0
        %v1858 = vpop.f32.mrb[0].mxu0
        %v1859 = vadd.f32 0.0, %v1858
        %v1860 = vpop.f32.mrb[0].mxu0
        %1861 = vmatprep.mubr.bf16.mxu0 0
        %1862 = vmatmul.mubr.bf16.gmra.mrb[0].mxu0 %v1768
        %v1863 = vpop.f32.mrb[0].mxu0
        %v1864 = vadd.f32 0.0, %v1863
        %v1865 = vpop.f32.mrb[0].mxu0
        %v1866 = vpop.f32.mrb[0].mxu0
        %v1867 = vadd.f32 0.0, %v1866
        %v1868 = vpop.f32.mrb[0].mxu0
        %1869 = vmatprep.mubr.bf16.mxu0 0
        %1870 = vmatmul.mubr.bf16.gmra.mrb[0].mxu0 %v1769
        %v1871 = vpop.f32.mrb[0].mxu0
        %v1872 = vadd.f32 0.0, %v1871
        %v1873 = vpop.f32.mrb[0].mxu0
        %v1874 = vpop.f32.mrb[0].mxu0
        %v1875 = vadd.f32 0.0, %v1874
        %v1876 = vpop.f32.mrb[0].mxu0
        %1877 = vmatprep.mubr.bf16.mxu0 0
        %1878 = vmatmul.mubr.bf16.gmra.mrb[0].mxu0 %v1770
        %v1879 = vpop.f32.mrb[0].mxu0
        %v1880 = vadd.f32 0.0, %v1879
        %v1881 = vpop.f32.mrb[0].mxu0
        %v1882 = vpop.f32.mrb[0].mxu0
        %v1883 = vadd.f32 0.0, %v1882
        %v1884 = vpop.f32.mrb[0].mxu0
        %1885 = vmatprep.mubr.bf16.mxu0 0
        %1886 = vmatmul.mubr.bf16.gmra.mrb[0].mxu0 %v1771
        %v1887 = vpop.f32.mrb[0].mxu0
        %v1888 = vadd.f32 0.0, %v1887
        %v1889 = vpop.f32.mrb[0].mxu0
        %v1890 = vpop.f32.mrb[0].mxu0
        %v1891 = vadd.f32 0.0, %v1890
        %v1892 = vpop.f32.mrb[0].mxu0
        %1893 = vmatprep.mubr.bf16.mxu0 0
        %1894 = vmatmul.mubr.bf16.gmra.mrb[0].mxu0 %v1772
        %v1895 = vpop.f32.mrb[0].mxu0
        %v1896 = vadd.f32 0.0, %v1895
        %v1897 = vpop.f32.mrb[0].mxu0
        %v1898 = vpop.f32.mrb[0].mxu0
        %v1899 = vadd.f32 0.0, %v1898
        %v1900 = vpop.f32.mrb[0].mxu0
        %1901 = vdwg.mxu0
        %1902 = vrot.lane.b32.xlu0 %v1009, 64
        %v1903 = vpop.permute.xlu0 %1902
        %1904 = vrot.lane.b32.xlu0 %v1010, 64
        %v1905 = vpop.permute.xlu0 %1904
        %1906 = vrot.lane.b32.xlu0 %v1011, 64
        %v1907 = vpop.permute.xlu0 %1906
        %1908 = vrot.lane.b32.xlu0 %v1012, 64
        %v1909 = vpop.permute.xlu0 %1908
        %1910 = vrot.lane.b32.xlu0 %v1013, 64
        %v1911 = vpop.permute.xlu0 %1910
        %1912 = vrot.lane.b32.xlu0 %v1014, 64
        %v1913 = vpop.permute.xlu0 %1912
        %1914 = vrot.lane.b32.xlu0 %v1015, 64
        %v1915 = vpop.permute.xlu0 %1914
        %1916 = vrot.lane.b32.xlu0 %v1016, 64
        %v1917 = vpop.permute.xlu0 %1916
        %1918 = vrot.lane.b32.xlu0 %v1017, 64
        %v1919 = vpop.permute.xlu0 %1918
        %1920 = vrot.lane.b32.xlu0 %v1018, 64
        %v1921 = vpop.permute.xlu0 %1920
        %1922 = vrot.lane.b32.xlu0 %v1019, 64
        %v1923 = vpop.permute.xlu0 %1922
        %1924 = vrot.lane.b32.xlu0 %v1020, 64
        %v1925 = vpop.permute.xlu0 %1924
        %1926 = vrot.lane.b32.xlu0 %v1021, 64
        %v1927 = vpop.permute.xlu0 %1926
        %1928 = vrot.lane.b32.xlu0 %v1022, 64
        %v1929 = vpop.permute.xlu0 %1928
        %1930 = vrot.lane.b32.xlu0 %v1023, 64
        %v1931 = vpop.permute.xlu0 %1930
        %1932 = vrot.lane.b32.xlu0 %v1024, 64
        %v1933 = vpop.permute.xlu0 %1932
        %v1935 = vsel %vm1033, %v1903, 0
        %v1938 = vsel %vm1033, %v1905, 0
        %v1941 = vsel %vm1033, %v1907, 0
        %v1944 = vsel %vm1033, %v1909, 0
        %v1947 = vsel %vm1033, %v1911, 0
        %v1950 = vsel %vm1033, %v1913, 0
        %v1953 = vsel %vm1033, %v1915, 0
        %v1956 = vsel %vm1033, %v1917, 0
        %v1959 = vsel %vm1033, %v1919, 0
        %v1962 = vsel %vm1033, %v1921, 0
        %v1965 = vsel %vm1033, %v1923, 0
        %v1968 = vsel %vm1033, %v1925, 0
        %v1971 = vsel %vm1033, %v1927, 0
        %v1974 = vsel %vm1033, %v1929, 0
        %v1977 = vsel %vm1033, %v1931, 0
        %v1980 = vsel %vm1033, %v1933, 0
        %1982 = vmatprep.subr.bf16.mxu0 0
        %1983 = vmatpush1.bf16.xpose.msra.mxu0 %v1959
        %1984 = vmatprep.subr.bf16.mxu0 0
        %1985 = vmatpush1.bf16.xpose.msra.mxu0 %v1962
        %1986 = vmatprep.subr.bf16.mxu0 0
        %1987 = vmatpush1.bf16.xpose.msra.mxu0 %v1965
        %1988 = vmatprep.subr.bf16.mxu0 0
        %1989 = vmatpush1.bf16.xpose.msra.mxu0 %v1968
        %1990 = vmatprep.subr.bf16.mxu0 0
        %1991 = vmatpush1.bf16.xpose.msra.mxu0 %v1971
        %1992 = vmatprep.subr.bf16.mxu0 0
        %1993 = vmatpush1.bf16.xpose.msra.mxu0 %v1974
        %1994 = vmatprep.subr.bf16.mxu0 0
        %1995 = vmatpush1.bf16.xpose.msra.mxu0 %v1977
        %1996 = vmatprep.subr.bf16.mxu0 0
        %1997 = vmatpush1.bf16.xpose.msra.mxu0 %v1980
        %1998 = vmatprep.subr.bf16.mxu0 0
        %1999 = vmatpush1.bf16.xpose.msra.mxu0 0
        %2000 = vmatprep.subr.bf16.mxu0 0
        %2001 = vmatpush1.bf16.xpose.msra.mxu0 0
        %2002 = vmatprep.subr.bf16.mxu0 0
        %2003 = vmatpush1.bf16.xpose.msra.mxu0 0
        %2004 = vmatprep.subr.bf16.mxu0 0
        %2005 = vmatpush1.bf16.xpose.msra.mxu0 0
        %2006 = vmatprep.subr.bf16.mxu0 0
        %2007 = vmatpush1.bf16.xpose.msra.mxu0 0
        %2008 = vmatprep.subr.bf16.mxu0 0
        %2009 = vmatpush1.bf16.xpose.msra.mxu0 0
        %2010 = vmatprep.subr.bf16.mxu0 0
        %2011 = vmatpush1.bf16.xpose.msra.mxu0 0
        %2012 = vmatprep.subr.bf16.mxu0 0
        %2013 = vmatpush1.bf16.xpose.msra.mxu0 0
        %2014 = vmatprep.mubr.bf16.mxu0 0
        %2015 = vmatmul.mubr.bf16.gmra.mrb[0].mxu0 %v1935
        %v2016 = vpop.f32.mrb[0].mxu0
        %v2017 = vadd.f32 0.0, %v2016
        %v2018 = vpop.f32.mrb[0].mxu0
        %v2019 = vpop.f32.mrb[0].mxu0
        %v2020 = vadd.f32 0.0, %v2019
        %v2021 = vpop.f32.mrb[0].mxu0
        %2022 = vmatprep.mubr.bf16.mxu0 0
        %2023 = vmatmul.mubr.bf16.gmra.mrb[0].mxu0 %v1938
        %v2024 = vpop.f32.mrb[0].mxu0
        %v2025 = vadd.f32 0.0, %v2024
        %v2026 = vpop.f32.mrb[0].mxu0
        %v2027 = vpop.f32.mrb[0].mxu0
        %v2028 = vadd.f32 0.0, %v2027
        %v2029 = vpop.f32.mrb[0].mxu0
        %2030 = vmatprep.mubr.bf16.mxu0 0
        %2031 = vmatmul.mubr.bf16.gmra.mrb[0].mxu0 %v1941
        %v2032 = vpop.f32.mrb[0].mxu0
        %v2033 = vadd.f32 0.0, %v2032
        %v2034 = vpop.f32.mrb[0].mxu0
        %v2035 = vpop.f32.mrb[0].mxu0
        %v2036 = vadd.f32 0.0, %v2035
        %v2037 = vpop.f32.mrb[0].mxu0
        %2038 = vmatprep.mubr.bf16.mxu0 0
        %2039 = vmatmul.mubr.bf16.gmra.mrb[0].mxu0 %v1944
        %v2040 = vpop.f32.mrb[0].mxu0
        %v2041 = vadd.f32 0.0, %v2040
        %v2042 = vpop.f32.mrb[0].mxu0
        %v2043 = vpop.f32.mrb[0].mxu0
        %v2044 = vadd.f32 0.0, %v2043
        %v2045 = vpop.f32.mrb[0].mxu0
        %2046 = vmatprep.mubr.bf16.mxu0 0
        %2047 = vmatmul.mubr.bf16.gmra.mrb[0].mxu0 %v1947
        %v2048 = vpop.f32.mrb[0].mxu0
        %v2049 = vadd.f32 0.0, %v2048
        %v2050 = vpop.f32.mrb[0].mxu0
        %v2051 = vpop.f32.mrb[0].mxu0
        %v2052 = vadd.f32 0.0, %v2051
        %v2053 = vpop.f32.mrb[0].mxu0
        %2054 = vmatprep.mubr.bf16.mxu0 0
        %2055 = vmatmul.mubr.bf16.gmra.mrb[0].mxu0 %v1950
        %v2056 = vpop.f32.mrb[0].mxu0
        %v2057 = vadd.f32 0.0, %v2056
        %v2058 = vpop.f32.mrb[0].mxu0
        %v2059 = vpop.f32.mrb[0].mxu0
        %v2060 = vadd.f32 0.0, %v2059
        %v2061 = vpop.f32.mrb[0].mxu0
        %2062 = vmatprep.mubr.bf16.mxu0 0
        %2063 = vmatmul.mubr.bf16.gmra.mrb[0].mxu0 %v1953
        %v2064 = vpop.f32.mrb[0].mxu0
        %v2065 = vadd.f32 0.0, %v2064
        %v2066 = vpop.f32.mrb[0].mxu0
        %v2067 = vpop.f32.mrb[0].mxu0
        %v2068 = vadd.f32 0.0, %v2067
        %v2069 = vpop.f32.mrb[0].mxu0
        %2070 = vmatprep.mubr.bf16.mxu0 0
        %2071 = vmatmul.mubr.bf16.gmra.mrb[0].mxu0 %v1956
        %v2072 = vpop.f32.mrb[0].mxu0
        %v2073 = vadd.f32 0.0, %v2072
        %v2074 = vpop.f32.mrb[0].mxu0
        %v2075 = vpop.f32.mrb[0].mxu0
        %v2076 = vadd.f32 0.0, %v2075
        %v2077 = vpop.f32.mrb[0].mxu0
        %2078 = vdwg.mxu0
        %2079 = vmax.xlane.f32.xlu0 %v2017
        %v2080 = vpop.xlane.xlu0 %2079
        %2081 = vmax.xlane.f32.xlu0 %v2020
        %v2082 = vpop.xlane.xlu0 %2081
        %2083 = vmax.xlane.f32.xlu0 %v2025
        %v2084 = vpop.xlane.xlu0 %2083
        %2085 = vmax.xlane.f32.xlu0 %v2028
        %v2086 = vpop.xlane.xlu0 %2085
        %2087 = vmax.xlane.f32.xlu0 %v2033
        %v2088 = vpop.xlane.xlu0 %2087
        %2089 = vmax.xlane.f32.xlu0 %v2036
        %v2090 = vpop.xlane.xlu0 %2089
        %2091 = vmax.xlane.f32.xlu0 %v2041
        %v2092 = vpop.xlane.xlu0 %2091
        %2093 = vmax.xlane.f32.xlu0 %v2044
        %v2094 = vpop.xlane.xlu0 %2093
        %2095 = vmax.xlane.f32.xlu0 %v2049
        %v2096 = vpop.xlane.xlu0 %2095
        %2097 = vmax.xlane.f32.xlu0 %v2052
        %v2098 = vpop.xlane.xlu0 %2097
        %2099 = vmax.xlane.f32.xlu0 %v2057
        %v2100 = vpop.xlane.xlu0 %2099
        %2101 = vmax.xlane.f32.xlu0 %v2060
        %v2102 = vpop.xlane.xlu0 %2101
        %2103 = vmax.xlane.f32.xlu0 %v2065
        %v2104 = vpop.xlane.xlu0 %2103
        %2105 = vmax.xlane.f32.xlu0 %v2068
        %v2106 = vpop.xlane.xlu0 %2105
        %2107 = vmax.xlane.f32.xlu0 %v2073
        %v2108 = vpop.xlane.xlu0 %2107
        %2109 = vmax.xlane.f32.xlu0 %v2076
        %v2110 = vpop.xlane.xlu0 %2109
        %v2111 = vsub.f32 %v2017, %v2080
        %v2112 = vsub.f32 %v2020, %v2082
        %v2113 = vsub.f32 %v2025, %v2084
        %v2114 = vsub.f32 %v2028, %v2086
        %v2115 = vsub.f32 %v2033, %v2088
        %v2116 = vsub.f32 %v2036, %v2090
        %v2117 = vsub.f32 %v2041, %v2092
        %v2118 = vsub.f32 %v2044, %v2094
        %v2119 = vsub.f32 %v2049, %v2096
        %v2120 = vsub.f32 %v2052, %v2098
        %v2121 = vsub.f32 %v2057, %v2100
        %v2122 = vsub.f32 %v2060, %v2102
        %v2123 = vsub.f32 %v2065, %v2104
        %v2124 = vsub.f32 %v2068, %v2106
        %v2125 = vsub.f32 %v2073, %v2108
        %v2126 = vsub.f32 %v2076, %v2110
        %v2127 = vmul.f32 %v2111, 1.442695
        %v2128 = vpow.pop %v2127
        %v2129 = vmul.f32 %v2112, 1.442695
        %v2130 = vpow.pop %v2129
        %v2131 = vmul.f32 %v2113, 1.442695
        %v2132 = vpow.pop %v2131
        %v2133 = vmul.f32 %v2114, 1.442695
        %v2134 = vpow.pop %v2133
        %v2135 = vmul.f32 %v2115, 1.442695
        %v2136 = vpow.pop %v2135
        %v2137 = vmul.f32 %v2116, 1.442695
        %v2138 = vpow.pop %v2137
        %v2139 = vmul.f32 %v2117, 1.442695
        %v2140 = vpow.pop %v2139
        %v2141 = vmul.f32 %v2118, 1.442695
        %v2142 = vpow.pop %v2141
        %v2143 = vmul.f32 %v2119, 1.442695
        %v2144 = vpow.pop %v2143
        %v2145 = vmul.f32 %v2120, 1.442695
        %v2146 = vpow.pop %v2145
        %v2147 = vmul.f32 %v2121, 1.442695
        %v2148 = vpow.pop %v2147
        %v2149 = vmul.f32 %v2122, 1.442695
        %v2150 = vpow.pop %v2149
        %v2151 = vmul.f32 %v2123, 1.442695
        %v2152 = vpow.pop %v2151
        %v2153 = vmul.f32 %v2124, 1.442695
        %v2154 = vpow.pop %v2153
        %v2155 = vmul.f32 %v2125, 1.442695
        %v2156 = vpow.pop %v2155
        %v2157 = vmul.f32 %v2126, 1.442695
        %v2158 = vpow.pop %v2157
        %2159 = vadd.xlane.f32.xlu0 %v2128
        %v2160 = vpop.xlane.xlu0 %2159
        %2161 = vadd.xlane.f32.xlu0 %v2130
        %v2162 = vpop.xlane.xlu0 %2161
        %2163 = vadd.xlane.f32.xlu0 %v2132
        %v2164 = vpop.xlane.xlu0 %2163
        %2165 = vadd.xlane.f32.xlu0 %v2134
        %v2166 = vpop.xlane.xlu0 %2165
        %2167 = vadd.xlane.f32.xlu0 %v2136
        %v2168 = vpop.xlane.xlu0 %2167
        %2169 = vadd.xlane.f32.xlu0 %v2138
        %v2170 = vpop.xlane.xlu0 %2169
        %2171 = vadd.xlane.f32.xlu0 %v2140
        %v2172 = vpop.xlane.xlu0 %2171
        %2173 = vadd.xlane.f32.xlu0 %v2142
        %v2174 = vpop.xlane.xlu0 %2173
        %2175 = vadd.xlane.f32.xlu0 %v2144
        %v2176 = vpop.xlane.xlu0 %2175
        %2177 = vadd.xlane.f32.xlu0 %v2146
        %v2178 = vpop.xlane.xlu0 %2177
        %2179 = vadd.xlane.f32.xlu0 %v2148
        %v2180 = vpop.xlane.xlu0 %2179
        %2181 = vadd.xlane.f32.xlu0 %v2150
        %v2182 = vpop.xlane.xlu0 %2181
        %2183 = vadd.xlane.f32.xlu0 %v2152
        %v2184 = vpop.xlane.xlu0 %2183
        %2185 = vadd.xlane.f32.xlu0 %v2154
        %v2186 = vpop.xlane.xlu0 %2185
        %2187 = vadd.xlane.f32.xlu0 %v2156
        %v2188 = vpop.xlane.xlu0 %2187
        %2189 = vadd.xlane.f32.xlu0 %v2158
        %v2190 = vpop.xlane.xlu0 %2189
        %v2191 = vrcp.pop %v2160
        %v2192 = vrcp.pop %v2162
        %v2193 = vrcp.pop %v2164
        %v2194 = vrcp.pop %v2166
        %v2195 = vrcp.pop %v2168
        %v2196 = vrcp.pop %v2170
        %v2197 = vrcp.pop %v2172
        %v2198 = vrcp.pop %v2174
        %v2199 = vrcp.pop %v2176
        %v2200 = vrcp.pop %v2178
        %v2201 = vrcp.pop %v2180
        %v2202 = vrcp.pop %v2182
        %v2203 = vrcp.pop %v2184
        %v2204 = vrcp.pop %v2186
        %v2205 = vrcp.pop %v2188
        %v2206 = vrcp.pop %v2190
        %v2207 = vmul.f32 %v2128, %v2191
        %v2208 = vmul.f32 %v2130, %v2192
        %v2209 = vmul.f32 %v2132, %v2193
        %v2210 = vmul.f32 %v2134, %v2194
        %v2211 = vmul.f32 %v2136, %v2195
        %v2212 = vmul.f32 %v2138, %v2196
        %v2213 = vmul.f32 %v2140, %v2197
        %v2214 = vmul.f32 %v2142, %v2198
        %v2215 = vmul.f32 %v2144, %v2199
        %v2216 = vmul.f32 %v2146, %v2200
        %v2217 = vmul.f32 %v2148, %v2201
        %v2218 = vmul.f32 %v2150, %v2202
        %v2219 = vmul.f32 %v2152, %v2203
        %v2220 = vmul.f32 %v2154, %v2204
        %v2221 = vmul.f32 %v2156, %v2205
        %v2222 = vmul.f32 %v2158, %v2206
        %v2223 = vpack.c.bf16 %v2208, %v2207
        %v2224 = vpack.c.bf16 %v2210, %v2209
        %v2225 = vpack.c.bf16 %v2212, %v2211
        %v2226 = vpack.c.bf16 %v2214, %v2213
        %v2227 = vpack.c.bf16 %v2216, %v2215
        %v2228 = vpack.c.bf16 %v2218, %v2217
        %v2229 = vpack.c.bf16 %v2220, %v2219
        %v2230 = vpack.c.bf16 %v2222, %v2221
        %2231 = vrot.lane.b32.xlu0 %v1025, 64
        %v2232 = vpop.permute.xlu0 %2231
        %2233 = vrot.lane.b32.xlu0 %v1026, 64
        %v2234 = vpop.permute.xlu0 %2233
        %2235 = vrot.lane.b32.xlu0 %v1027, 64
        %v2236 = vpop.permute.xlu0 %2235
        %2237 = vrot.lane.b32.xlu0 %v1028, 64
        %v2238 = vpop.permute.xlu0 %2237
        %2239 = vrot.lane.b32.xlu0 %v1029, 64
        %v2240 = vpop.permute.xlu0 %2239
        %2241 = vrot.lane.b32.xlu0 %v1030, 64
        %v2242 = vpop.permute.xlu0 %2241
        %2243 = vrot.lane.b32.xlu0 %v1031, 64
        %v2244 = vpop.permute.xlu0 %2243
        %2245 = vrot.lane.b32.xlu0 %v1032, 64
        %v2246 = vpop.permute.xlu0 %2245
        %2255 = vmatprep.subr.bf16.mxu0 0
        %2256 = vmatpush1.bf16.msra.mxu0 %v2232
        %2257 = vmatprep.subr.bf16.mxu0 0
        %2258 = vmatpush1.bf16.msra.mxu0 %v2234
        %2259 = vmatprep.subr.bf16.mxu0 0
        %2260 = vmatpush1.bf16.msra.mxu0 %v2236
        %2261 = vmatprep.subr.bf16.mxu0 0
        %2262 = vmatpush1.bf16.msra.mxu0 %v2238
        %2263 = vmatprep.subr.bf16.mxu0 0
        %2264 = vmatpush1.bf16.msra.mxu0 %v2240
        %2265 = vmatprep.subr.bf16.mxu0 0
        %2266 = vmatpush1.bf16.msra.mxu0 %v2242
        %2267 = vmatprep.subr.bf16.mxu0 0
        %2268 = vmatpush1.bf16.msra.mxu0 %v2244
        %2269 = vmatprep.subr.bf16.mxu0 0
        %2270 = vmatpush1.bf16.msra.mxu0 %v2246
        %2271 = vmatprep.subr.bf16.mxu0 0
        %2272 = vmatpush1.bf16.msra.mxu0 0
        %2273 = vmatprep.subr.bf16.mxu0 0
        %2274 = vmatpush1.bf16.msra.mxu0 0
        %2275 = vmatprep.subr.bf16.mxu0 0
        %2276 = vmatpush1.bf16.msra.mxu0 0
        %2277 = vmatprep.subr.bf16.mxu0 0
        %2278 = vmatpush1.bf16.msra.mxu0 0
        %2279 = vmatprep.subr.bf16.mxu0 0
        %2280 = vmatpush1.bf16.msra.mxu0 0
        %2281 = vmatprep.subr.bf16.mxu0 0
        %2282 = vmatpush1.bf16.msra.mxu0 0
        %2283 = vmatprep.subr.bf16.mxu0 0
        %2284 = vmatpush1.bf16.msra.mxu0 0
        %2285 = vmatprep.subr.bf16.mxu0 0
        %2286 = vmatpush1.bf16.msra.mxu0 0
        %2287 = vmatprep.mubr.bf16.mxu0 0
        %2288 = vmatmul.mubr.bf16.gmra.mrb[0].mxu0 %v2223
        %v2289 = vpop.f32.mrb[0].mxu0
        %v2290 = vadd.f32 0.0, %v2289
        %v2291 = vpop.f32.mrb[0].mxu0
        %v2292 = vpop.f32.mrb[0].mxu0
        %v2293 = vadd.f32 0.0, %v2292
        %v2294 = vpop.f32.mrb[0].mxu0
        %2295 = vmatprep.mubr.bf16.mxu0 0
        %2296 = vmatmul.mubr.bf16.gmra.mrb[0].mxu0 %v2224
        %v2297 = vpop.f32.mrb[0].mxu0
        %v2298 = vadd.f32 0.0, %v2297
        %v2299 = vpop.f32.mrb[0].mxu0
        %v2300 = vpop.f32.mrb[0].mxu0
        %v2301 = vadd.f32 0.0, %v2300
        %v2302 = vpop.f32.mrb[0].mxu0
        %2303 = vmatprep.mubr.bf16.mxu0 0
        %2304 = vmatmul.mubr.bf16.gmra.mrb[0].mxu0 %v2225
        %v2305 = vpop.f32.mrb[0].mxu0
        %v2306 = vadd.f32 0.0, %v2305
        %v2307 = vpop.f32.mrb[0].mxu0
        %v2308 = vpop.f32.mrb[0].mxu0
        %v2309 = vadd.f32 0.0, %v2308
        %v2310 = vpop.f32.mrb[0].mxu0
        %2311 = vmatprep.mubr.bf16.mxu0 0
        %2312 = vmatmul.mubr.bf16.gmra.mrb[0].mxu0 %v2226
        %v2313 = vpop.f32.mrb[0].mxu0
        %v2314 = vadd.f32 0.0, %v2313
        %v2315 = vpop.f32.mrb[0].mxu0
        %v2316 = vpop.f32.mrb[0].mxu0
        %v2317 = vadd.f32 0.0, %v2316
        %v2318 = vpop.f32.mrb[0].mxu0
        %2319 = vmatprep.mubr.bf16.mxu0 0
        %2320 = vmatmul.mubr.bf16.gmra.mrb[0].mxu0 %v2227
        %v2321 = vpop.f32.mrb[0].mxu0
        %v2322 = vadd.f32 0.0, %v2321
        %v2323 = vpop.f32.mrb[0].mxu0
        %v2324 = vpop.f32.mrb[0].mxu0
        %v2325 = vadd.f32 0.0, %v2324
        %v2326 = vpop.f32.mrb[0].mxu0
        %2327 = vmatprep.mubr.bf16.mxu0 0
        %2328 = vmatmul.mubr.bf16.gmra.mrb[0].mxu0 %v2228
        %v2329 = vpop.f32.mrb[0].mxu0
        %v2330 = vadd.f32 0.0, %v2329
        %v2331 = vpop.f32.mrb[0].mxu0
        %v2332 = vpop.f32.mrb[0].mxu0
        %v2333 = vadd.f32 0.0, %v2332
        %v2334 = vpop.f32.mrb[0].mxu0
        %2335 = vmatprep.mubr.bf16.mxu0 0
        %2336 = vmatmul.mubr.bf16.gmra.mrb[0].mxu0 %v2229
        %v2337 = vpop.f32.mrb[0].mxu0
        %v2338 = vadd.f32 0.0, %v2337
        %v2339 = vpop.f32.mrb[0].mxu0
        %v2340 = vpop.f32.mrb[0].mxu0
        %v2341 = vadd.f32 0.0, %v2340
        %v2342 = vpop.f32.mrb[0].mxu0
        %2343 = vmatprep.mubr.bf16.mxu0 0
        %2344 = vmatmul.mubr.bf16.gmra.mrb[0].mxu0 %v2230
        %v2345 = vpop.f32.mrb[0].mxu0
        %v2346 = vadd.f32 0.0, %v2345
        %v2347 = vpop.f32.mrb[0].mxu0
        %v2348 = vpop.f32.mrb[0].mxu0
        %v2349 = vadd.f32 0.0, %v2348
        %v2350 = vpop.f32.mrb[0].mxu0
        %2351 = vdwg.mxu0
        %2352 = vrot.lane.b32.xlu0 %v1009, 32
        %v2353 = vpop.permute.xlu0 %2352
        %2354 = vrot.lane.b32.xlu0 %v1010, 32
        %v2355 = vpop.permute.xlu0 %2354
        %2356 = vrot.lane.b32.xlu0 %v1011, 32
        %v2357 = vpop.permute.xlu0 %2356
        %2358 = vrot.lane.b32.xlu0 %v1012, 32
        %v2359 = vpop.permute.xlu0 %2358
        %2360 = vrot.lane.b32.xlu0 %v1013, 32
        %v2361 = vpop.permute.xlu0 %2360
        %2362 = vrot.lane.b32.xlu0 %v1014, 32
        %v2363 = vpop.permute.xlu0 %2362
        %2364 = vrot.lane.b32.xlu0 %v1015, 32
        %v2365 = vpop.permute.xlu0 %2364
        %2366 = vrot.lane.b32.xlu0 %v1016, 32
        %v2367 = vpop.permute.xlu0 %2366
        %2368 = vrot.lane.b32.xlu0 %v1017, 32
        %v2369 = vpop.permute.xlu0 %2368
        %2370 = vrot.lane.b32.xlu0 %v1018, 32
        %v2371 = vpop.permute.xlu0 %2370
        %2372 = vrot.lane.b32.xlu0 %v1019, 32
        %v2373 = vpop.permute.xlu0 %2372
        %2374 = vrot.lane.b32.xlu0 %v1020, 32
        %v2375 = vpop.permute.xlu0 %2374
        %2376 = vrot.lane.b32.xlu0 %v1021, 32
        %v2377 = vpop.permute.xlu0 %2376
        %2378 = vrot.lane.b32.xlu0 %v1022, 32
        %v2379 = vpop.permute.xlu0 %2378
        %2380 = vrot.lane.b32.xlu0 %v1023, 32
        %v2381 = vpop.permute.xlu0 %2380
        %2382 = vrot.lane.b32.xlu0 %v1024, 32
        %v2383 = vpop.permute.xlu0 %2382
        %v2385 = vsel %vm1033, %v2353, 0
        %v2388 = vsel %vm1033, %v2355, 0
        %v2391 = vsel %vm1033, %v2357, 0
        %v2394 = vsel %vm1033, %v2359, 0
        %v2397 = vsel %vm1033, %v2361, 0
        %v2400 = vsel %vm1033, %v2363, 0
        %v2403 = vsel %vm1033, %v2365, 0
        %v2406 = vsel %vm1033, %v2367, 0
        %v2409 = vsel %vm1033, %v2369, 0
        %v2412 = vsel %vm1033, %v2371, 0
        %v2415 = vsel %vm1033, %v2373, 0
        %v2418 = vsel %vm1033, %v2375, 0
        %v2421 = vsel %vm1033, %v2377, 0
        %v2424 = vsel %vm1033, %v2379, 0
        %v2427 = vsel %vm1033, %v2381, 0
        %v2430 = vsel %vm1033, %v2383, 0
        %2432 = vmatprep.subr.bf16.mxu0 0
        %2433 = vmatpush1.bf16.xpose.msra.mxu0 %v2409
        %2434 = vmatprep.subr.bf16.mxu0 0
        %2435 = vmatpush1.bf16.xpose.msra.mxu0 %v2412
        %2436 = vmatprep.subr.bf16.mxu0 0
        %2437 = vmatpush1.bf16.xpose.msra.mxu0 %v2415
        %2438 = vmatprep.subr.bf16.mxu0 0
        %2439 = vmatpush1.bf16.xpose.msra.mxu0 %v2418
        %2440 = vmatprep.subr.bf16.mxu0 0
        %2441 = vmatpush1.bf16.xpose.msra.mxu0 %v2421
        %2442 = vmatprep.subr.bf16.mxu0 0
        %2443 = vmatpush1.bf16.xpose.msra.mxu0 %v2424
        %2444 = vmatprep.subr.bf16.mxu0 0
        %2445 = vmatpush1.bf16.xpose.msra.mxu0 %v2427
        %2446 = vmatprep.subr.bf16.mxu0 0
        %2447 = vmatpush1.bf16.xpose.msra.mxu0 %v2430
        %2448 = vmatprep.subr.bf16.mxu0 0
        %2449 = vmatpush1.bf16.xpose.msra.mxu0 0
        %2450 = vmatprep.subr.bf16.mxu0 0
        %2451 = vmatpush1.bf16.xpose.msra.mxu0 0
        %2452 = vmatprep.subr.bf16.mxu0 0
        %2453 = vmatpush1.bf16.xpose.msra.mxu0 0
        %2454 = vmatprep.subr.bf16.mxu0 0
        %2455 = vmatpush1.bf16.xpose.msra.mxu0 0
        %2456 = vmatprep.subr.bf16.mxu0 0
        %2457 = vmatpush1.bf16.xpose.msra.mxu0 0
        %2458 = vmatprep.subr.bf16.mxu0 0
        %2459 = vmatpush1.bf16.xpose.msra.mxu0 0
        %2460 = vmatprep.subr.bf16.mxu0 0
        %2461 = vmatpush1.bf16.xpose.msra.mxu0 0
        %2462 = vmatprep.subr.bf16.mxu0 0
        %2463 = vmatpush1.bf16.xpose.msra.mxu0 0
        %2464 = vmatprep.mubr.bf16.mxu0 0
        %2465 = vmatmul.mubr.bf16.gmra.mrb[0].mxu0 %v2385
        %v2466 = vpop.f32.mrb[0].mxu0
        %v2467 = vadd.f32 0.0, %v2466
        %v2468 = vpop.f32.mrb[0].mxu0
        %v2469 = vpop.f32.mrb[0].mxu0
        %v2470 = vadd.f32 0.0, %v2469
        %v2471 = vpop.f32.mrb[0].mxu0
        %2472 = vmatprep.mubr.bf16.mxu0 0
        %2473 = vmatmul.mubr.bf16.gmra.mrb[0].mxu0 %v2388
        %v2474 = vpop.f32.mrb[0].mxu0
        %v2475 = vadd.f32 0.0, %v2474
        %v2476 = vpop.f32.mrb[0].mxu0
        %v2477 = vpop.f32.mrb[0].mxu0
        %v2478 = vadd.f32 0.0, %v2477
        %v2479 = vpop.f32.mrb[0].mxu0
        %2480 = vmatprep.mubr.bf16.mxu0 0
        %2481 = vmatmul.mubr.bf16.gmra.mrb[0].mxu0 %v2391
        %v2482 = vpop.f32.mrb[0].mxu0
        %v2483 = vadd.f32 0.0, %v2482
        %v2484 = vpop.f32.mrb[0].mxu0
        %v2485 = vpop.f32.mrb[0].mxu0
        %v2486 = vadd.f32 0.0, %v2485
        %v2487 = vpop.f32.mrb[0].mxu0
        %2488 = vmatprep.mubr.bf16.mxu0 0
        %2489 = vmatmul.mubr.bf16.gmra.mrb[0].mxu0 %v2394
        %v2490 = vpop.f32.mrb[0].mxu0
        %v2491 = vadd.f32 0.0, %v2490
        %v2492 = vpop.f32.mrb[0].mxu0
        %v2493 = vpop.f32.mrb[0].mxu0
        %v2494 = vadd.f32 0.0, %v2493
        %v2495 = vpop.f32.mrb[0].mxu0
        %2496 = vmatprep.mubr.bf16.mxu0 0
        %2497 = vmatmul.mubr.bf16.gmra.mrb[0].mxu0 %v2397
        %v2498 = vpop.f32.mrb[0].mxu0
        %v2499 = vadd.f32 0.0, %v2498
        %v2500 = vpop.f32.mrb[0].mxu0
        %v2501 = vpop.f32.mrb[0].mxu0
        %v2502 = vadd.f32 0.0, %v2501
        %v2503 = vpop.f32.mrb[0].mxu0
        %2504 = vmatprep.mubr.bf16.mxu0 0
        %2505 = vmatmul.mubr.bf16.gmra.mrb[0].mxu0 %v2400
        %v2506 = vpop.f32.mrb[0].mxu0
        %v2507 = vadd.f32 0.0, %v2506
        %v2508 = vpop.f32.mrb[0].mxu0
        %v2509 = vpop.f32.mrb[0].mxu0
        %v2510 = vadd.f32 0.0, %v2509
        %v2511 = vpop.f32.mrb[0].mxu0
        %2512 = vmatprep.mubr.bf16.mxu0 0
        %2513 = vmatmul.mubr.bf16.gmra.mrb[0].mxu0 %v2403
        %v2514 = vpop.f32.mrb[0].mxu0
        %v2515 = vadd.f32 0.0, %v2514
        %v2516 = vpop.f32.mrb[0].mxu0
        %v2517 = vpop.f32.mrb[0].mxu0
        %v2518 = vadd.f32 0.0, %v2517
        %v2519 = vpop.f32.mrb[0].mxu0
        %2520 = vmatprep.mubr.bf16.mxu0 0
        %2521 = vmatmul.mubr.bf16.gmra.mrb[0].mxu0 %v2406
        %v2522 = vpop.f32.mrb[0].mxu0
        %v2523 = vadd.f32 0.0, %v2522
        %v2524 = vpop.f32.mrb[0].mxu0
        %v2525 = vpop.f32.mrb[0].mxu0
        %v2526 = vadd.f32 0.0, %v2525
        %v2527 = vpop.f32.mrb[0].mxu0
        %2528 = vdwg.mxu0
        %2529 = vmax.xlane.f32.xlu0 %v2467
        %v2530 = vpop.xlane.xlu0 %2529
        %2531 = vmax.xlane.f32.xlu0 %v2470
        %v2532 = vpop.xlane.xlu0 %2531
        %2533 = vmax.xlane.f32.xlu0 %v2475
        %v2534 = vpop.xlane.xlu0 %2533
        %2535 = vmax.xlane.f32.xlu0 %v2478
        %v2536 = vpop.xlane.xlu0 %2535
        %2537 = vmax.xlane.f32.xlu0 %v2483
        %v2538 = vpop.xlane.xlu0 %2537
        %2539 = vmax.xlane.f32.xlu0 %v2486
        %v2540 = vpop.xlane.xlu0 %2539
        %2541 = vmax.xlane.f32.xlu0 %v2491
        %v2542 = vpop.xlane.xlu0 %2541
        %2543 = vmax.xlane.f32.xlu0 %v2494
        %v2544 = vpop.xlane.xlu0 %2543
        %2545 = vmax.xlane.f32.xlu0 %v2499
        %v2546 = vpop.xlane.xlu0 %2545
        %2547 = vmax.xlane.f32.xlu0 %v2502
        %v2548 = vpop.xlane.xlu0 %2547
        %2549 = vmax.xlane.f32.xlu0 %v2507
        %v2550 = vpop.xlane.xlu0 %2549
        %2551 = vmax.xlane.f32.xlu0 %v2510
        %v2552 = vpop.xlane.xlu0 %2551
        %2553 = vmax.xlane.f32.xlu0 %v2515
        %v2554 = vpop.xlane.xlu0 %2553
        %2555 = vmax.xlane.f32.xlu0 %v2518
        %v2556 = vpop.xlane.xlu0 %2555
        %2557 = vmax.xlane.f32.xlu0 %v2523
        %v2558 = vpop.xlane.xlu0 %2557
        %2559 = vmax.xlane.f32.xlu0 %v2526
        %v2560 = vpop.xlane.xlu0 %2559
        %v2561 = vsub.f32 %v2467, %v2530
        %v2562 = vsub.f32 %v2470, %v2532
        %v2563 = vsub.f32 %v2475, %v2534
        %v2564 = vsub.f32 %v2478, %v2536
        %v2565 = vsub.f32 %v2483, %v2538
        %v2566 = vsub.f32 %v2486, %v2540
        %v2567 = vsub.f32 %v2491, %v2542
        %v2568 = vsub.f32 %v2494, %v2544
        %v2569 = vsub.f32 %v2499, %v2546
        %v2570 = vsub.f32 %v2502, %v2548
        %v2571 = vsub.f32 %v2507, %v2550
        %v2572 = vsub.f32 %v2510, %v2552
        %v2573 = vsub.f32 %v2515, %v2554
        %v2574 = vsub.f32 %v2518, %v2556
        %v2575 = vsub.f32 %v2523, %v2558
        %v2576 = vsub.f32 %v2526, %v2560
        %v2577 = vmul.f32 %v2561, 1.442695
        %v2578 = vpow.pop %v2577
        %v2579 = vmul.f32 %v2562, 1.442695
        %v2580 = vpow.pop %v2579
        %v2581 = vmul.f32 %v2563, 1.442695
        %v2582 = vpow.pop %v2581
        %v2583 = vmul.f32 %v2564, 1.442695
        %v2584 = vpow.pop %v2583
        %v2585 = vmul.f32 %v2565, 1.442695
        %v2586 = vpow.pop %v2585
        %v2587 = vmul.f32 %v2566, 1.442695
        %v2588 = vpow.pop %v2587
        %v2589 = vmul.f32 %v2567, 1.442695
        %v2590 = vpow.pop %v2589
        %v2591 = vmul.f32 %v2568, 1.442695
        %v2592 = vpow.pop %v2591
        %v2593 = vmul.f32 %v2569, 1.442695
        %v2594 = vpow.pop %v2593
        %v2595 = vmul.f32 %v2570, 1.442695
        %v2596 = vpow.pop %v2595
        %v2597 = vmul.f32 %v2571, 1.442695
        %v2598 = vpow.pop %v2597
        %v2599 = vmul.f32 %v2572, 1.442695
        %v2600 = vpow.pop %v2599
        %v2601 = vmul.f32 %v2573, 1.442695
        %v2602 = vpow.pop %v2601
        %v2603 = vmul.f32 %v2574, 1.442695
        %v2604 = vpow.pop %v2603
        %v2605 = vmul.f32 %v2575, 1.442695
        %v2606 = vpow.pop %v2605
        %v2607 = vmul.f32 %v2576, 1.442695
        %v2608 = vpow.pop %v2607
        %2609 = vadd.xlane.f32.xlu0 %v2578
        %v2610 = vpop.xlane.xlu0 %2609
        %2611 = vadd.xlane.f32.xlu0 %v2580
        %v2612 = vpop.xlane.xlu0 %2611
        %2613 = vadd.xlane.f32.xlu0 %v2582
        %v2614 = vpop.xlane.xlu0 %2613
        %2615 = vadd.xlane.f32.xlu0 %v2584
        %v2616 = vpop.xlane.xlu0 %2615
        %2617 = vadd.xlane.f32.xlu0 %v2586
        %v2618 = vpop.xlane.xlu0 %2617
        %2619 = vadd.xlane.f32.xlu0 %v2588
        %v2620 = vpop.xlane.xlu0 %2619
        %2621 = vadd.xlane.f32.xlu0 %v2590
        %v2622 = vpop.xlane.xlu0 %2621
        %2623 = vadd.xlane.f32.xlu0 %v2592
        %v2624 = vpop.xlane.xlu0 %2623
        %2625 = vadd.xlane.f32.xlu0 %v2594
        %v2626 = vpop.xlane.xlu0 %2625
        %2627 = vadd.xlane.f32.xlu0 %v2596
        %v2628 = vpop.xlane.xlu0 %2627
        %2629 = vadd.xlane.f32.xlu0 %v2598
        %v2630 = vpop.xlane.xlu0 %2629
        %2631 = vadd.xlane.f32.xlu0 %v2600
        %v2632 = vpop.xlane.xlu0 %2631
        %2633 = vadd.xlane.f32.xlu0 %v2602
        %v2634 = vpop.xlane.xlu0 %2633
        %2635 = vadd.xlane.f32.xlu0 %v2604
        %v2636 = vpop.xlane.xlu0 %2635
        %2637 = vadd.xlane.f32.xlu0 %v2606
        %v2638 = vpop.xlane.xlu0 %2637
        %2639 = vadd.xlane.f32.xlu0 %v2608
        %v2640 = vpop.xlane.xlu0 %2639
        %v2641 = vrcp.pop %v2610
        %v2642 = vrcp.pop %v2612
        %v2643 = vrcp.pop %v2614
        %v2644 = vrcp.pop %v2616
        %v2645 = vrcp.pop %v2618
        %v2646 = vrcp.pop %v2620
        %v2647 = vrcp.pop %v2622
        %v2648 = vrcp.pop %v2624
        %v2649 = vrcp.pop %v2626
        %v2650 = vrcp.pop %v2628
        %v2651 = vrcp.pop %v2630
        %v2652 = vrcp.pop %v2632
        %v2653 = vrcp.pop %v2634
        %v2654 = vrcp.pop %v2636
        %v2655 = vrcp.pop %v2638
        %v2656 = vrcp.pop %v2640
        %v2657 = vmul.f32 %v2578, %v2641
        %v2658 = vmul.f32 %v2580, %v2642
        %v2659 = vmul.f32 %v2582, %v2643
        %v2660 = vmul.f32 %v2584, %v2644
        %v2661 = vmul.f32 %v2586, %v2645
        %v2662 = vmul.f32 %v2588, %v2646
        %v2663 = vmul.f32 %v2590, %v2647
        %v2664 = vmul.f32 %v2592, %v2648
        %v2665 = vmul.f32 %v2594, %v2649
        %v2666 = vmul.f32 %v2596, %v2650
        %v2667 = vmul.f32 %v2598, %v2651
        %v2668 = vmul.f32 %v2600, %v2652
        %v2669 = vmul.f32 %v2602, %v2653
        %v2670 = vmul.f32 %v2604, %v2654
        %v2671 = vmul.f32 %v2606, %v2655
        %v2672 = vmul.f32 %v2608, %v2656
        %v2673 = vpack.c.bf16 %v2658, %v2657
        %v2674 = vpack.c.bf16 %v2660, %v2659
        %v2675 = vpack.c.bf16 %v2662, %v2661
        %v2676 = vpack.c.bf16 %v2664, %v2663
        %v2677 = vpack.c.bf16 %v2666, %v2665
        %v2678 = vpack.c.bf16 %v2668, %v2667
        %v2679 = vpack.c.bf16 %v2670, %v2669
        %v2680 = vpack.c.bf16 %v2672, %v2671
        %2681 = vrot.lane.b32.xlu0 %v1025, 32
        %v2682 = vpop.permute.xlu0 %2681
        %2683 = vrot.lane.b32.xlu0 %v1026, 32
        %v2684 = vpop.permute.xlu0 %2683
        %2685 = vrot.lane.b32.xlu0 %v1027, 32
        %v2686 = vpop.permute.xlu0 %2685
        %2687 = vrot.lane.b32.xlu0 %v1028, 32
        %v2688 = vpop.permute.xlu0 %2687
        %2689 = vrot.lane.b32.xlu0 %v1029, 32
        %v2690 = vpop.permute.xlu0 %2689
        %2691 = vrot.lane.b32.xlu0 %v1030, 32
        %v2692 = vpop.permute.xlu0 %2691
        %2693 = vrot.lane.b32.xlu0 %v1031, 32
        %v2694 = vpop.permute.xlu0 %2693
        %2695 = vrot.lane.b32.xlu0 %v1032, 32
        %v2696 = vpop.permute.xlu0 %2695
        %2705 = vmatprep.subr.bf16.mxu0 0
        %2706 = vmatpush1.bf16.msra.mxu0 %v2682
        %2707 = vmatprep.subr.bf16.mxu0 0
        %2708 = vmatpush1.bf16.msra.mxu0 %v2684
        %2709 = vmatprep.subr.bf16.mxu0 0
        %2710 = vmatpush1.bf16.msra.mxu0 %v2686
        %2711 = vmatprep.subr.bf16.mxu0 0
        %2712 = vmatpush1.bf16.msra.mxu0 %v2688
        %2713 = vmatprep.subr.bf16.mxu0 0
        %2714 = vmatpush1.bf16.msra.mxu0 %v2690
        %2715 = vmatprep.subr.bf16.mxu0 0
        %2716 = vmatpush1.bf16.msra.mxu0 %v2692
        %2717 = vmatprep.subr.bf16.mxu0 0
        %2718 = vmatpush1.bf16.msra.mxu0 %v2694
        %2719 = vmatprep.subr.bf16.mxu0 0
        %2720 = vmatpush1.bf16.msra.mxu0 %v2696
        %2721 = vmatprep.subr.bf16.mxu0 0
        %2722 = vmatpush1.bf16.msra.mxu0 0
        %2723 = vmatprep.subr.bf16.mxu0 0
        %2724 = vmatpush1.bf16.msra.mxu0 0
        %2725 = vmatprep.subr.bf16.mxu0 0
        %2726 = vmatpush1.bf16.msra.mxu0 0
        %2727 = vmatprep.subr.bf16.mxu0 0
        %2728 = vmatpush1.bf16.msra.mxu0 0
        %2729 = vmatprep.subr.bf16.mxu0 0
        %2730 = vmatpush1.bf16.msra.mxu0 0
        %2731 = vmatprep.subr.bf16.mxu0 0
        %2732 = vmatpush1.bf16.msra.mxu0 0
        %2733 = vmatprep.subr.bf16.mxu0 0
        %2734 = vmatpush1.bf16.msra.mxu0 0
        %2735 = vmatprep.subr.bf16.mxu0 0
        %2736 = vmatpush1.bf16.msra.mxu0 0
        %2737 = vmatprep.mubr.bf16.mxu0 0
        %2738 = vmatmul.mubr.bf16.gmra.mrb[0].mxu0 %v2673
        %v2739 = vpop.f32.mrb[0].mxu0
        %v2740 = vadd.f32 0.0, %v2739
        %v2741 = vpop.f32.mrb[0].mxu0
        %v2742 = vpop.f32.mrb[0].mxu0
        %v2743 = vadd.f32 0.0, %v2742
        %v2744 = vpop.f32.mrb[0].mxu0
        %2745 = vmatprep.mubr.bf16.mxu0 0
        %2746 = vmatmul.mubr.bf16.gmra.mrb[0].mxu0 %v2674
        %v2747 = vpop.f32.mrb[0].mxu0
        %v2748 = vadd.f32 0.0, %v2747
        %v2749 = vpop.f32.mrb[0].mxu0
        %v2750 = vpop.f32.mrb[0].mxu0
        %v2751 = vadd.f32 0.0, %v2750
        %v2752 = vpop.f32.mrb[0].mxu0
        %2753 = vmatprep.mubr.bf16.mxu0 0
        %2754 = vmatmul.mubr.bf16.gmra.mrb[0].mxu0 %v2675
        %v2755 = vpop.f32.mrb[0].mxu0
        %v2756 = vadd.f32 0.0, %v2755
        %v2757 = vpop.f32.mrb[0].mxu0
        %v2758 = vpop.f32.mrb[0].mxu0
        %v2759 = vadd.f32 0.0, %v2758
        %v2760 = vpop.f32.mrb[0].mxu0
        %2761 = vmatprep.mubr.bf16.mxu0 0
        %2762 = vmatmul.mubr.bf16.gmra.mrb[0].mxu0 %v2676
        %v2763 = vpop.f32.mrb[0].mxu0
        %v2764 = vadd.f32 0.0, %v2763
        %v2765 = vpop.f32.mrb[0].mxu0
        %v2766 = vpop.f32.mrb[0].mxu0
        %v2767 = vadd.f32 0.0, %v2766
        %v2768 = vpop.f32.mrb[0].mxu0
        %2769 = vmatprep.mubr.bf16.mxu0 0
        %2770 = vmatmul.mubr.bf16.gmra.mrb[0].mxu0 %v2677
        %v2771 = vpop.f32.mrb[0].mxu0
        %v2772 = vadd.f32 0.0, %v2771
        %v2773 = vpop.f32.mrb[0].mxu0
        %v2774 = vpop.f32.mrb[0].mxu0
        %v2775 = vadd.f32 0.0, %v2774
        %v2776 = vpop.f32.mrb[0].mxu0
        %2777 = vmatprep.mubr.bf16.mxu0 0
        %2778 = vmatmul.mubr.bf16.gmra.mrb[0].mxu0 %v2678
        %v2779 = vpop.f32.mrb[0].mxu0
        %v2780 = vadd.f32 0.0, %v2779
        %v2781 = vpop.f32.mrb[0].mxu0
        %v2782 = vpop.f32.mrb[0].mxu0
        %v2783 = vadd.f32 0.0, %v2782
        %v2784 = vpop.f32.mrb[0].mxu0
        %2785 = vmatprep.mubr.bf16.mxu0 0
        %2786 = vmatmul.mubr.bf16.gmra.mrb[0].mxu0 %v2679
        %v2787 = vpop.f32.mrb[0].mxu0
        %v2788 = vadd.f32 0.0, %v2787
        %v2789 = vpop.f32.mrb[0].mxu0
        %v2790 = vpop.f32.mrb[0].mxu0
        %v2791 = vadd.f32 0.0, %v2790
        %v2792 = vpop.f32.mrb[0].mxu0
        %2793 = vmatprep.mubr.bf16.mxu0 0
        %2794 = vmatmul.mubr.bf16.gmra.mrb[0].mxu0 %v2680
        %v2795 = vpop.f32.mrb[0].mxu0
        %v2796 = vadd.f32 0.0, %v2795
        %v2797 = vpop.f32.mrb[0].mxu0
        %v2798 = vpop.f32.mrb[0].mxu0
        %v2799 = vadd.f32 0.0, %v2798
        %v2800 = vpop.f32.mrb[0].mxu0
        %2801 = vdwg.mxu0
        %2818 = vrot.lane.b32.xlu0 %v1840, 32
        %v2819 = vpop.permute.xlu0 %2818
        %2820 = vrot.lane.b32.xlu0 %v1843, 32
        %v2821 = vpop.permute.xlu0 %2820
        %2822 = vrot.lane.b32.xlu0 %v1848, 32
        %v2823 = vpop.permute.xlu0 %2822
        %2824 = vrot.lane.b32.xlu0 %v1851, 32
        %v2825 = vpop.permute.xlu0 %2824
        %2826 = vrot.lane.b32.xlu0 %v1856, 32
        %v2827 = vpop.permute.xlu0 %2826
        %2828 = vrot.lane.b32.xlu0 %v1859, 32
        %v2829 = vpop.permute.xlu0 %2828
        %2830 = vrot.lane.b32.xlu0 %v1864, 32
        %v2831 = vpop.permute.xlu0 %2830
        %2832 = vrot.lane.b32.xlu0 %v1867, 32
        %v2833 = vpop.permute.xlu0 %2832
        %2834 = vrot.lane.b32.xlu0 %v1872, 32
        %v2835 = vpop.permute.xlu0 %2834
        %2836 = vrot.lane.b32.xlu0 %v1875, 32
        %v2837 = vpop.permute.xlu0 %2836
        %2838 = vrot.lane.b32.xlu0 %v1880, 32
        %v2839 = vpop.permute.xlu0 %2838
        %2840 = vrot.lane.b32.xlu0 %v1883, 32
        %v2841 = vpop.permute.xlu0 %2840
        %2842 = vrot.lane.b32.xlu0 %v1888, 32
        %v2843 = vpop.permute.xlu0 %2842
        %2844 = vrot.lane.b32.xlu0 %v1891, 32
        %v2845 = vpop.permute.xlu0 %2844
        %2846 = vrot.lane.b32.xlu0 %v1896, 32
        %v2847 = vpop.permute.xlu0 %2846
        %2848 = vrot.lane.b32.xlu0 %v1899, 32
        %v2849 = vpop.permute.xlu0 %2848
        %2882 = vrot.lane.b32.xlu0 %v2290, 64
        %v2883 = vpop.permute.xlu0 %2882
        %2884 = vrot.lane.b32.xlu0 %v2293, 64
        %v2885 = vpop.permute.xlu0 %2884
        %2886 = vrot.lane.b32.xlu0 %v2298, 64
        %v2887 = vpop.permute.xlu0 %2886
        %2888 = vrot.lane.b32.xlu0 %v2301, 64
        %v2889 = vpop.permute.xlu0 %2888
        %2890 = vrot.lane.b32.xlu0 %v2306, 64
        %v2891 = vpop.permute.xlu0 %2890
        %2892 = vrot.lane.b32.xlu0 %v2309, 64
        %v2893 = vpop.permute.xlu0 %2892
        %2894 = vrot.lane.b32.xlu0 %v2314, 64
        %v2895 = vpop.permute.xlu0 %2894
        %2896 = vrot.lane.b32.xlu0 %v2317, 64
        %v2897 = vpop.permute.xlu0 %2896
        %2898 = vrot.lane.b32.xlu0 %v2322, 64
        %v2899 = vpop.permute.xlu0 %2898
        %2900 = vrot.lane.b32.xlu0 %v2325, 64
        %v2901 = vpop.permute.xlu0 %2900
        %2902 = vrot.lane.b32.xlu0 %v2330, 64
        %v2903 = vpop.permute.xlu0 %2902
        %2904 = vrot.lane.b32.xlu0 %v2333, 64
        %v2905 = vpop.permute.xlu0 %2904
        %2906 = vrot.lane.b32.xlu0 %v2338, 64
        %v2907 = vpop.permute.xlu0 %2906
        %2908 = vrot.lane.b32.xlu0 %v2341, 64
        %v2909 = vpop.permute.xlu0 %2908
        %2910 = vrot.lane.b32.xlu0 %v2346, 64
        %v2911 = vpop.permute.xlu0 %2910
        %2912 = vrot.lane.b32.xlu0 %v2349, 64
        %v2913 = vpop.permute.xlu0 %2912
        %2946 = vrot.lane.b32.xlu0 %v2740, 96
        %v2947 = vpop.permute.xlu0 %2946
        %2948 = vrot.lane.b32.xlu0 %v2743, 96
        %v2949 = vpop.permute.xlu0 %2948
        %2950 = vrot.lane.b32.xlu0 %v2748, 96
        %v2951 = vpop.permute.xlu0 %2950
        %2952 = vrot.lane.b32.xlu0 %v2751, 96
        %v2953 = vpop.permute.xlu0 %2952
        %2954 = vrot.lane.b32.xlu0 %v2756, 96
        %v2955 = vpop.permute.xlu0 %2954
        %2956 = vrot.lane.b32.xlu0 %v2759, 96
        %v2957 = vpop.permute.xlu0 %2956
        %2958 = vrot.lane.b32.xlu0 %v2764, 96
        %v2959 = vpop.permute.xlu0 %2958
        %2960 = vrot.lane.b32.xlu0 %v2767, 96
        %v2961 = vpop.permute.xlu0 %2960
        %2962 = vrot.lane.b32.xlu0 %v2772, 96
        %v2963 = vpop.permute.xlu0 %2962
        %2964 = vrot.lane.b32.xlu0 %v2775, 96
        %v2965 = vpop.permute.xlu0 %2964
        %2966 = vrot.lane.b32.xlu0 %v2780, 96
        %v2967 = vpop.permute.xlu0 %2966
        %2968 = vrot.lane.b32.xlu0 %v2783, 96
        %v2969 = vpop.permute.xlu0 %2968
        %2970 = vrot.lane.b32.xlu0 %v2788, 96
        %v2971 = vpop.permute.xlu0 %2970
        %2972 = vrot.lane.b32.xlu0 %v2791, 96
        %v2973 = vpop.permute.xlu0 %2972
        %2974 = vrot.lane.b32.xlu0 %v2796, 96
        %v2975 = vpop.permute.xlu0 %2974
        %2976 = vrot.lane.b32.xlu0 %v2799, 96
        %v2977 = vpop.permute.xlu0 %2976
        %v2994 = vsel %vm1033, %v1366, %v2819
        %v2995 = vsel %vm1033, %v1369, %v2821
        %v2996 = vsel %vm1033, %v1374, %v2823
        %v2997 = vsel %vm1033, %v1377, %v2825
        %v2998 = vsel %vm1033, %v1382, %v2827
        %v2999 = vsel %vm1033, %v1385, %v2829
        %v3000 = vsel %vm1033, %v1390, %v2831
        %v3001 = vsel %vm1033, %v1393, %v2833
        %v3002 = vsel %vm1033, %v1398, %v2835
        %v3003 = vsel %vm1033, %v1401, %v2837
        %v3004 = vsel %vm1033, %v1406, %v2839
        %v3005 = vsel %vm1033, %v1409, %v2841
        %v3006 = vsel %vm1033, %v1414, %v2843
        %v3007 = vsel %vm1033, %v1417, %v2845
        %v3008 = vsel %vm1033, %v1422, %v2847
        %v3009 = vsel %vm1033, %v1425, %v2849
        %vm3010 = vcmask 523264
        %v3011 = vsel %vm3010, %v2994, %v2883
        %v3012 = vsel %vm3010, %v2995, %v2885
        %v3013 = vsel %vm3010, %v2996, %v2887
        %v3014 = vsel %vm3010, %v2997, %v2889
        %v3015 = vsel %vm3010, %v2998, %v2891
        %v3016 = vsel %vm3010, %v2999, %v2893
        %v3017 = vsel %vm3010, %v3000, %v2895
        %v3018 = vsel %vm3010, %v3001, %v2897
        %v3019 = vsel %vm3010, %v3002, %v2899
        %v3020 = vsel %vm3010, %v3003, %v2901
        %v3021 = vsel %vm3010, %v3004, %v2903
        %v3022 = vsel %vm3010, %v3005, %v2905
        %v3023 = vsel %vm3010, %v3006, %v2907
        %v3024 = vsel %vm3010, %v3007, %v2909
        %v3025 = vsel %vm3010, %v3008, %v2911
        %v3026 = vsel %vm3010, %v3009, %v2913
        %vm3027 = vcmask 785408
        %v3028 = vsel %vm3027, %v3011, %v2947
        %v3029 = vsel %vm3027, %v3012, %v2949
        %v3030 = vsel %vm3027, %v3013, %v2951
        %v3031 = vsel %vm3027, %v3014, %v2953
        %v3032 = vsel %vm3027, %v3015, %v2955
        %v3033 = vsel %vm3027, %v3016, %v2957
        %v3034 = vsel %vm3027, %v3017, %v2959
        %v3035 = vsel %vm3027, %v3018, %v2961
        %v3036 = vsel %vm3027, %v3019, %v2963
        %v3037 = vsel %vm3027, %v3020, %v2965
        %v3038 = vsel %vm3027, %v3021, %v2967
        %v3039 = vsel %vm3027, %v3022, %v2969
        %v3040 = vsel %vm3027, %v3023, %v2971
        %v3041 = vsel %vm3027, %v3024, %v2973
        %v3042 = vsel %vm3027, %v3025, %v2975
        %v3043 = vsel %vm3027, %v3026, %v2977
        %v3044 = vpack.c.bf16 %v3029, %v3028
        %v3045 = vpack.c.bf16 %v3031, %v3030
        %v3046 = vpack.c.bf16 %v3033, %v3032
        %v3047 = vpack.c.bf16 %v3035, %v3034
        %v3048 = vpack.c.bf16 %v3037, %v3036
        %v3049 = vpack.c.bf16 %v3039, %v3038
        %v3050 = vpack.c.bf16 %v3041, %v3040
        %v3051 = vpack.c.bf16 %v3043, %v3042
        %v3052 = vld [vmem:[#allocation7] sm:$0xf]
        %v3053 = vld [vmem:[#allocation7 + $0x4] sm:$0xf]
        %v3054 = vld [vmem:[#allocation7 + $0x8] sm:$0xf]
        %v3055 = vld [vmem:[#allocation7 + $0xc] sm:$0xf]
        %v3056 = vld [vmem:[#allocation7 + $0x10] sm:$0xf]
        %v3057 = vld [vmem:[#allocation7 + $0x14] sm:$0xf]
        %v3058 = vld [vmem:[#allocation7 + $0x18] sm:$0xf]
        %v3059 = vld [vmem:[#allocation7 + $0x1c] sm:$0xf]
        %v3060 = vld [vmem:[#allocation7 + $0x20] sm:$0xf]
        %v3061 = vld [vmem:[#allocation7 + $0x24] sm:$0xf]
        %v3062 = vld [vmem:[#allocation7 + $0x28] sm:$0xf]
        %v3063 = vld [vmem:[#allocation7 + $0x2c] sm:$0xf]
        %v3064 = vld [vmem:[#allocation7 + $0x30] sm:$0xf]
        %v3065 = vld [vmem:[#allocation7 + $0x34] sm:$0xf]
        %v3066 = vld [vmem:[#allocation7 + $0x38] sm:$0xf]
        %v3067 = vld [vmem:[#allocation7 + $0x3c] sm:$0xf]
        %v3068 = vld [vmem:[%s6] sm:$0x1]
        %v3070 = vlaneseq
        %v3071 = vshrl.u32 %v3070, 7
        %v3072 = vsub.s32 0, %v3071
        %v3073 = vrot.slane %v3068, %v3072
        %v3091 = vunpack.c.l.b16 %v3052
        %v3092 = vunpack.c.l.b16 %v3053
        %v3093 = vunpack.c.l.b16 %v3054
        %v3094 = vunpack.c.l.b16 %v3055
        %v3095 = vunpack.c.l.b16 %v3056
        %v3096 = vunpack.c.l.b16 %v3057
        %v3097 = vunpack.c.l.b16 %v3058
        %v3098 = vunpack.c.l.b16 %v3059
        %v3099 = vunpack.c.l.b16 %v3060
        %v3100 = vunpack.c.l.b16 %v3061
        %v3101 = vunpack.c.l.b16 %v3062
        %v3102 = vunpack.c.l.b16 %v3063
        %v3103 = vunpack.c.l.b16 %v3064
        %v3104 = vunpack.c.l.b16 %v3065
        %v3105 = vunpack.c.l.b16 %v3066
        %v3106 = vunpack.c.l.b16 %v3067
        %v3107 = vpack.c.b16 %v3092, %v3091
        %v3108 = vpack.c.b16 %v3094, %v3093
        %v3109 = vpack.c.b16 %v3096, %v3095
        %v3110 = vpack.c.b16 %v3098, %v3097
        %v3111 = vpack.c.b16 %v3100, %v3099
        %v3112 = vpack.c.b16 %v3102, %v3101
        %v3113 = vpack.c.b16 %v3104, %v3103
        %v3114 = vpack.c.b16 %v3106, %v3105
        %3123 = vmatprep.subr.bf16.mxu0 0
        %3124 = vmatpush1.bf16.xpose.msra.mxu0 %v3107
        %3125 = vmatprep.subr.bf16.mxu0 0
        %3126 = vmatpush1.bf16.xpose.msra.mxu0 %v3108
        %3127 = vmatprep.subr.bf16.mxu0 0
        %3128 = vmatpush1.bf16.xpose.msra.mxu0 %v3109
        %3129 = vmatprep.subr.bf16.mxu0 0
        %3130 = vmatpush1.bf16.xpose.msra.mxu0 %v3110
        %3131 = vmatprep.subr.bf16.mxu0 0
        %3132 = vmatpush1.bf16.xpose.msra.mxu0 %v3111
        %3133 = vmatprep.subr.bf16.mxu0 0
        %3134 = vmatpush1.bf16.xpose.msra.mxu0 %v3112
        %3135 = vmatprep.subr.bf16.mxu0 0
        %3136 = vmatpush1.bf16.xpose.msra.mxu0 %v3113
        %3137 = vmatprep.subr.bf16.mxu0 0
        %3138 = vmatpush1.bf16.xpose.msra.mxu0 %v3114
        %3139 = vmatprep.subr.bf16.mxu0 0
        %3140 = vmatpush1.bf16.xpose.msra.mxu0 0
        %3141 = vmatprep.subr.bf16.mxu0 0
        %3142 = vmatpush1.bf16.xpose.msra.mxu0 0
        %3143 = vmatprep.subr.bf16.mxu0 0
        %3144 = vmatpush1.bf16.xpose.msra.mxu0 0
        %3145 = vmatprep.subr.bf16.mxu0 0
        %3146 = vmatpush1.bf16.xpose.msra.mxu0 0
        %3147 = vmatprep.subr.bf16.mxu0 0
        %3148 = vmatpush1.bf16.xpose.msra.mxu0 0
        %3149 = vmatprep.subr.bf16.mxu0 0
        %3150 = vmatpush1.bf16.xpose.msra.mxu0 0
        %3151 = vmatprep.subr.bf16.mxu0 0
        %3152 = vmatpush1.bf16.xpose.msra.mxu0 0
        %3153 = vmatprep.subr.bf16.mxu0 0
        %3154 = vmatpush1.bf16.xpose.msra.mxu0 0
        %3155 = vmatprep.mubr.bf16.mxu0 0
        %3156 = vmatmul.mubr.bf16.gmra.mrb[0].mxu0 %v3044
        %v3157 = vpop.f32.mrb[0].mxu0
        %v3158 = vadd.f32 %v3073, %v3157
        %v3159 = vpop.f32.mrb[0].mxu0
        %v3160 = vpop.f32.mrb[0].mxu0
        %v3161 = vadd.f32 %v3073, %v3160
        %v3162 = vpop.f32.mrb[0].mxu0
        %3163 = vmatprep.mubr.bf16.mxu0 0
        %3164 = vmatmul.mubr.bf16.gmra.mrb[0].mxu0 %v3045
        %v3165 = vpop.f32.mrb[0].mxu0
        %v3166 = vadd.f32 %v3073, %v3165
        %v3167 = vpop.f32.mrb[0].mxu0
        %v3168 = vpop.f32.mrb[0].mxu0
        %v3169 = vadd.f32 %v3073, %v3168
        %v3170 = vpop.f32.mrb[0].mxu0
        %3171 = vmatprep.mubr.bf16.mxu0 0
        %3172 = vmatmul.mubr.bf16.gmra.mrb[0].mxu0 %v3046
        %v3173 = vpop.f32.mrb[0].mxu0
        %v3174 = vadd.f32 %v3073, %v3173
        %v3175 = vpop.f32.mrb[0].mxu0
        %v3176 = vpop.f32.mrb[0].mxu0
        %v3177 = vadd.f32 %v3073, %v3176
        %v3178 = vpop.f32.mrb[0].mxu0
        %3179 = vmatprep.mubr.bf16.mxu0 0
        %3180 = vmatmul.mubr.bf16.gmra.mrb[0].mxu0 %v3047
        %v3181 = vpop.f32.mrb[0].mxu0
        %v3182 = vadd.f32 %v3073, %v3181
        %v3183 = vpop.f32.mrb[0].mxu0
        %v3184 = vpop.f32.mrb[0].mxu0
        %v3185 = vadd.f32 %v3073, %v3184
        %v3186 = vpop.f32.mrb[0].mxu0
        %3187 = vmatprep.mubr.bf16.mxu0 0
        %3188 = vmatmul.mubr.bf16.gmra.mrb[0].mxu0 %v3048
        %v3189 = vpop.f32.mrb[0].mxu0
        %v3190 = vadd.f32 %v3073, %v3189
        %v3191 = vpop.f32.mrb[0].mxu0
        %v3192 = vpop.f32.mrb[0].mxu0
        %v3193 = vadd.f32 %v3073, %v3192
        %v3194 = vpop.f32.mrb[0].mxu0
        %3195 = vmatprep.mubr.bf16.mxu0 0
        %3196 = vmatmul.mubr.bf16.gmra.mrb[0].mxu0 %v3049
        %v3197 = vpop.f32.mrb[0].mxu0
        %v3198 = vadd.f32 %v3073, %v3197
        %v3199 = vpop.f32.mrb[0].mxu0
        %v3200 = vpop.f32.mrb[0].mxu0
        %v3201 = vadd.f32 %v3073, %v3200
        %v3202 = vpop.f32.mrb[0].mxu0
        %3203 = vmatprep.mubr.bf16.mxu0 0
        %3204 = vmatmul.mubr.bf16.gmra.mrb[0].mxu0 %v3050
        %v3205 = vpop.f32.mrb[0].mxu0
        %v3206 = vadd.f32 %v3073, %v3205
        %v3207 = vpop.f32.mrb[0].mxu0
        %v3208 = vpop.f32.mrb[0].mxu0
        %v3209 = vadd.f32 %v3073, %v3208
        %v3210 = vpop.f32.mrb[0].mxu0
        %3211 = vmatprep.mubr.bf16.mxu0 0
        %3212 = vmatmul.mubr.bf16.gmra.mrb[0].mxu0 %v3051
        %v3213 = vpop.f32.mrb[0].mxu0
        %v3214 = vadd.f32 %v3073, %v3213
        %v3215 = vpop.f32.mrb[0].mxu0
        %v3216 = vpop.f32.mrb[0].mxu0
        %v3217 = vadd.f32 %v3073, %v3216
        %v3218 = vpop.f32.mrb[0].mxu0
        %3219 = vdwg.mxu0
        %3220 = vst [vmem:[%s325] sm:$0xff] %v3158
        %3221 = vst [vmem:[%s325 + $0x8] sm:$0xff] %v3161
        %3222 = vst [vmem:[%s325 + $0x10] sm:$0xff] %v3166
        %3223 = vst [vmem:[%s325 + $0x18] sm:$0xff] %v3169
        %3224 = vst [vmem:[%s325 + $0x20] sm:$0xff] %v3174
        %3225 = vst [vmem:[%s325 + $0x28] sm:$0xff] %v3177
        %3226 = vst [vmem:[%s325 + $0x30] sm:$0xff] %v3182
        %3227 = vst [vmem:[%s325 + $0x38] sm:$0xff] %v3185
        %3228 = vst [vmem:[%s325 + $0x40] sm:$0xff] %v3190
        %3229 = vst [vmem:[%s325 + $0x48] sm:$0xff] %v3193
        %3230 = vst [vmem:[%s325 + $0x50] sm:$0xff] %v3198
        %3231 = vst [vmem:[%s325 + $0x58] sm:$0xff] %v3201
        %3232 = vst [vmem:[%s325 + $0x60] sm:$0xff] %v3206
        %3233 = vst [vmem:[%s325 + $0x68] sm:$0xff] %v3209
        %3234 = vst [vmem:[%s325 + $0x70] sm:$0xff] %v3214
        %3235 = vst [vmem:[%s325 + $0x78] sm:$0xff] %v3217
        %s3236 = sand.u32 %s185, 1
        %s3237 = scalar_lea.sflag [#allocation4], %s3236
        %s3238 = sand.u32 %s185, 1
        %s3239 = smul.addr %s3238, 128
        %s3240 = scalar_lea.vmem [#allocation8], %s3239
        // Predicated region
        $region61: #{tpu_custom_call.1} parent=47 // pred_check
          %p3241 = pneg %p195
        $region62: #{tpu_custom_call.1} parent=47 // pred_check_branch
          %3243 = sbr.rel (%p3241) target = $region64
        $region63: #{tpu_custom_call.1} parent=47 // pred_region
          %s3245 = ssub.s32 2048, 2048
          %3246 = vsyncadd %s3237, %s3245
          %s3247 = smul.addr %s25, 16
          %s3248 = smul.addr %s3247, 128
          %s3249 = scalar_lea.hbm %s7, %s3248
          %s3250 = sshll.u32 %s3240, 4
          %s3251 = int_to_ptr.vmem [resolvable:$true] %s3250
          %3256 = dma.vmem_to_hbm [thread:$0]  %s3251, 2048, %s3249, %s3237, 128, 128, 8
        $region64: #{tpu_custom_call.1} parent=47 // pred_fallthru
          _
      $region48: #{tpu_custom_call.1} parent=5 // pred_fallthru
        _
      %p3257 = scmp.le.s32.totalorder 2, %s20
      // Predicated region
      $region65: #{tpu_custom_call.1} parent=5 // pred_check
        %p3258 = pneg %p3257
      $region66: #{tpu_custom_call.1} parent=5 // pred_check_branch
        %3260 = sbr.rel (%p3258) target = $region68
      $region67: #{tpu_custom_call.1} parent=5 // pred_region
        %s3261 = ssub.s32 %s20, 2
        // Predicated region
        $region69: #{tpu_custom_call.1} parent=67 // pred_check
          %p3262 = pneg %p201
        $region70: #{tpu_custom_call.1} parent=67 // pred_check_branch
          %3264 = sbr.rel (%p3262) target = $region72
        $region71: #{tpu_custom_call.1} parent=67 // pred_region
          %s3265 = sand.u32 %s186, 1
          %s3266 = scalar_lea.sflag [#allocation4], %s3265
          %s3267 = sand.u32 %s186, 1
          %s3268 = smul.addr %s3267, 128
          %s3269 = scalar_lea.vmem [#allocation8], %s3268
          %3270 = dma.done %s3266, 2048
        $region72: #{tpu_custom_call.1} parent=67 // pred_fallthru
          _
      $region68: #{tpu_custom_call.1} parent=5 // pred_fallthru
        _
    $region6: #{tpu_custom_call.1} parent=1 // loop_footer
      %s24 = sadd.s32 1, %s20
    $region7: #{tpu_custom_call.1} parent=1 // loop_footer_branch
      %19 = sbr.rel target = $region3
    $region8: #{tpu_custom_call.1} parent=1 // loop_exit
      _
    %3271 = vsyncpa [#allocation3], 1
    %s3272 = scalar_lea.sflag [#allocation3], 1
    %3273 = vsyncpa %s3272, 1
    %3274 = vsyncpa [#allocation6], 1
    %3275 = vsyncpa [#allocation4], 1
    %s3276 = scalar_lea.sflag [#allocation4], 1
    %3277 = vsyncpa %s3276, 1

</llo_original>
